<compile_context>
chip_gen: v7x
topology: tpu7x:2x2x1
jax: 0.10.0
libtpu: 0.0.40
codegen_flags: <defaults>
</compile_context>

<pallas_src>
import functools

import jax
import jax.numpy as jnp
import numpy as np
from jax import lax
from jax.experimental import pallas as pl
from jax.experimental.pallas import tpu as pltpu

LN_EPS = 1e-5


def _layer_norm(x, gamma, beta):
    mean = jnp.mean(x, axis=-1, keepdims=True)
    var = jnp.mean((x - mean) ** 2, axis=-1, keepdims=True)
    inv = lax.rsqrt(var + LN_EPS)
    return (x - mean) * inv * gamma + beta


def _merge_kernel(y_ref, x_ref,
                  wq_ref, bq_ref, wk_ref, bk_ref, wv_ref, bv_ref, wo_ref, bo_ref,
                  g1_ref, be1_ref,
                  w1_ref, b1_ref, w2_ref, b2_ref,
                  g2_ref, be2_ref,
                  o_ref, *, num_heads):
    B, Ty, D = y_ref.shape
    head_dim = D // num_heads
    scale = 1.0 / np.sqrt(head_dim)

    # Hoist all weight loads out of the batch loop; fold the softmax scale into
    # Wq / bq once (D*D mul) instead of scaling every per-head score tile.
    wq = wq_ref[...] * scale
    bq = bq_ref[...] * scale
    wk = wk_ref[...]
    bk = bk_ref[...]
    wv = wv_ref[...]
    bv = bv_ref[...]
    wo = wo_ref[...]
    bo = bo_ref[...]
    g1 = g1_ref[...]
    be1 = be1_ref[...]
    w1 = w1_ref[...]
    b1 = b1_ref[...]
    w2 = w2_ref[...]
    b2 = b2_ref[...]
    g2 = g2_ref[...]
    be2 = be2_ref[...]

    for b in range(B):                      # static unroll: batch folded into one invocation
        y = y_ref[b]                        # (Ty, D)
        x = x_ref[b]                        # (Tx, D)

        # ---- cross attention: Q from y, K/V from x ----
        q = jnp.dot(y, wq, preferred_element_type=jnp.float32) + bq   # pre-scaled
        k = jnp.dot(x, wk, preferred_element_type=jnp.float32) + bk
        v = jnp.dot(x, wv, preferred_element_type=jnp.float32) + bv

        attn = None
        for h in range(num_heads):          # static unroll, static lane slices
            sl = slice(h * head_dim, (h + 1) * head_dim)
            qh = q[:, sl]                   # (Ty, hd)
            kh = k[:, sl]                   # (Tx, hd)
            vh = v[:, sl]                   # (Tx, hd)
            # contract over head_dim without materializing kh.T (no XLU transpose)
            s = lax.dot_general(qh, kh, (((1,), (1,)), ((), ())),
                                preferred_element_type=jnp.float32)    # (Ty, Tx)
            # TODO(synk): cross_attn_mask support (module forward accepts an optional mask).
            s = s - jnp.max(s, axis=-1, keepdims=True)
            p = jnp.exp(s)
            p = p * pl.reciprocal(jnp.sum(p, axis=-1, keepdims=True), approx=True)
            oh = jnp.dot(p, vh, preferred_element_type=jnp.float32)    # (Ty, hd)
            # Per-head accumulation into the output projection: static sublane
            # slice of Wo, no cross-lane concat of head outputs.
            contrib = jnp.dot(oh, wo[sl, :], preferred_element_type=jnp.float32)  # (Ty, D)
            attn = contrib if attn is None else attn + contrib
        attn = attn + bo

        # residual + LN1
        e = _layer_norm(y + attn, g1, be1)

        # ---- feed-forward ----
        h1 = jnp.maximum(jnp.dot(e, w1, preferred_element_type=jnp.float32) + b1, 0.0)
        m = jnp.dot(h1, w2, preferred_element_type=jnp.float32) + b2

        # residual + LN2
        out = _layer_norm(e + m, g2, be2)
        # TODO(synk): fp16 inf/nan clamp branch omitted (kernel runs in fp32 where it is a no-op).
        o_ref[b] = out.astype(o_ref.dtype)


def coordinates_merge(y_embed, x_embed, params, *, num_heads):
    B, Ty, D = y_embed.shape
    n_inputs = 18

    kernel = functools.partial(_merge_kernel, num_heads=num_heads)
    # Single invocation (no grid): all operands resident in VMEM, batch handled
    # inside the kernel. Footprint at these shapes is a few KB of activations
    # plus ~32 KB of weights, far below scoped-VMEM limits on all generations.
    return pl.pallas_call(
        kernel,
        out_shape=jax.ShapeDtypeStruct((B, Ty, D), jnp.float32),
        in_specs=[pl.BlockSpec(memory_space=pltpu.MemorySpace.VMEM)
                  for _ in range(n_inputs)],
        out_specs=pl.BlockSpec(memory_space=pltpu.MemorySpace.VMEM),
    )(
        y_embed, x_embed,
        params["wq"], params["bq"], params["wk"], params["bk"],
        params["wv"], params["bv"], params["wo"], params["bo"],
        params["ln1_g"], params["ln1_b"],
        params["w1"], params["b1"], params["w2"], params["b2"],
        params["ln2_g"], params["ln2_b"],
    )


# ---------------- pure-JAX reference (for correctness check) ----------------
def _reference(y, x, p, num_heads):
    B, Ty, D = y.shape
    hd = D // num_heads
    q = y @ p["wq"] + p["bq"]
    k = x @ p["wk"] + p["bk"]
    v = x @ p["wv"] + p["bv"]
    qh = q.reshape(B, Ty, num_heads, hd).transpose(0, 2, 1, 3)
    kh = k.reshape(B, -1, num_heads, hd).transpose(0, 2, 1, 3)
    vh = v.reshape(B, -1, num_heads, hd).transpose(0, 2, 1, 3)
    s = jnp.einsum("bhqd,bhkd->bhqk", qh, kh) / np.sqrt(hd)
    a = jax.nn.softmax(s, axis=-1)
    o = jnp.einsum("bhqk,bhkd->bhqd", a, vh).transpose(0, 2, 1, 3).reshape(B, Ty, D)
    o = o @ p["wo"] + p["bo"]

    def ln(t, g, b):
        mu = t.mean(-1, keepdims=True)
        var = ((t - mu) ** 2).mean(-1, keepdims=True)
        return (t - mu) * jax.lax.rsqrt(var + LN_EPS) * g + b

    e = ln(y + o, p["ln1_g"], p["ln1_b"])
    m = jnp.maximum(e @ p["w1"] + p["b1"], 0.0) @ p["w2"] + p["b2"]
    return ln(e + m, p["ln2_g"], p["ln2_b"])


if __name__ == "__main__":
    # cfg: d_model=32, attention_heads=4, ff_dim=64, dropout=0 (eval)
    B, Ty, Tx, D, H, FF = 2, 8, 16, 32, 4, 64

    key = jax.random.PRNGKey(0)
    ks = jax.random.split(key, 12)
    init = lambda k, shape, s=0.05: (jax.random.normal(k, shape, jnp.float32) * s)

    params = {
        "wq": init(ks[0], (D, D)), "bq": jnp.zeros((1, D), jnp.float32),
        "wk": init(ks[1], (D, D)), "bk": jnp.zeros((1, D), jnp.float32),
        "wv": init(ks[2], (D, D)), "bv": jnp.zeros((1, D), jnp.float32),
        "wo": init(ks[3], (D, D)), "bo": jnp.zeros((1, D), jnp.float32),
        "ln1_g": jnp.ones((1, D), jnp.float32), "ln1_b": jnp.zeros((1, D), jnp.float32),
        "w1": init(ks[4], (D, FF)), "b1": jnp.zeros((1, FF), jnp.float32),
        "w2": init(ks[5], (FF, D)), "b2": jnp.zeros((1, D), jnp.float32),
        "ln2_g": jnp.ones((1, D), jnp.float32), "ln2_b": jnp.zeros((1, D), jnp.float32),
    }

    y_embed = jax.random.normal(ks[6], (B, Ty, D), jnp.float32)
    x_embed = jax.random.normal(ks[7], (B, Tx, D), jnp.float32)

    out = coordinates_merge(y_embed, x_embed, params, num_heads=H)
    out = jax.block_until_ready(out)

    ref = _reference(y_embed, x_embed, params, H)
    # tolerance slightly loosened vs exact softmax: approx=True reciprocal on
    # the softmax denominator introduces ~1e-6-level relative error.
    np.testing.assert_allclose(np.asarray(out), np.asarray(ref), rtol=5e-5, atol=5e-5)

    print("KERNEL_OK")
</pallas_src>

<mosaic_0001>
module attributes {stable_mosaic.version = 11 : i64} {
  func.func @_merge_kernel(%arg0: memref<2x8x32xf32, #tpu.memory_space<vmem>>, %arg1: memref<2x16x32xf32, #tpu.memory_space<vmem>>, %arg2: memref<32x32xf32, #tpu.memory_space<vmem>>, %arg3: memref<1x32xf32, #tpu.memory_space<vmem>>, %arg4: memref<32x32xf32, #tpu.memory_space<vmem>>, %arg5: memref<1x32xf32, #tpu.memory_space<vmem>>, %arg6: memref<32x32xf32, #tpu.memory_space<vmem>>, %arg7: memref<1x32xf32, #tpu.memory_space<vmem>>, %arg8: memref<32x32xf32, #tpu.memory_space<vmem>>, %arg9: memref<1x32xf32, #tpu.memory_space<vmem>>, %arg10: memref<1x32xf32, #tpu.memory_space<vmem>>, %arg11: memref<1x32xf32, #tpu.memory_space<vmem>>, %arg12: memref<32x64xf32, #tpu.memory_space<vmem>>, %arg13: memref<1x64xf32, #tpu.memory_space<vmem>>, %arg14: memref<64x32xf32, #tpu.memory_space<vmem>>, %arg15: memref<1x32xf32, #tpu.memory_space<vmem>>, %arg16: memref<1x32xf32, #tpu.memory_space<vmem>>, %arg17: memref<1x32xf32, #tpu.memory_space<vmem>>, %arg18: memref<2x8x32xf32, #tpu.memory_space<vmem>>) attributes {dimension_semantics = [], scalar_prefetch = 0 : i64, scratch_operands = 0 : i64, tpu.core_type = #tpu.core_type<tc>} {
    %c0 = arith.constant 0 : index
    %c0_0 = arith.constant 0 : index
    %0 = vector.load %arg2[%c0, %c0_0] : memref<32x32xf32, #tpu.memory_space<vmem>>, vector<32x32xf32>
    %cst = arith.constant 0.353553385 : f32
    %1 = vector.broadcast %cst : f32 to vector<32x32xf32>
    %2 = arith.mulf %0, %1 : vector<32x32xf32>
    %c0_1 = arith.constant 0 : index
    %c0_2 = arith.constant 0 : index
    %3 = vector.load %arg3[%c0_1, %c0_2] : memref<1x32xf32, #tpu.memory_space<vmem>>, vector<1x32xf32>
    %cst_3 = arith.constant 0.353553385 : f32
    %4 = vector.broadcast %cst_3 : f32 to vector<1x32xf32>
    %5 = arith.mulf %3, %4 : vector<1x32xf32>
    %c0_4 = arith.constant 0 : index
    %c0_5 = arith.constant 0 : index
    %6 = vector.load %arg4[%c0_4, %c0_5] : memref<32x32xf32, #tpu.memory_space<vmem>>, vector<32x32xf32>
    %c0_6 = arith.constant 0 : index
    %c0_7 = arith.constant 0 : index
    %7 = vector.load %arg5[%c0_6, %c0_7] : memref<1x32xf32, #tpu.memory_space<vmem>>, vector<1x32xf32>
    %c0_8 = arith.constant 0 : index
    %c0_9 = arith.constant 0 : index
    %8 = vector.load %arg6[%c0_8, %c0_9] : memref<32x32xf32, #tpu.memory_space<vmem>>, vector<32x32xf32>
    %c0_10 = arith.constant 0 : index
    %c0_11 = arith.constant 0 : index
    %9 = vector.load %arg7[%c0_10, %c0_11] : memref<1x32xf32, #tpu.memory_space<vmem>>, vector<1x32xf32>
    %c0_12 = arith.constant 0 : index
    %c0_13 = arith.constant 0 : index
    %10 = vector.load %arg8[%c0_12, %c0_13] : memref<32x32xf32, #tpu.memory_space<vmem>>, vector<32x32xf32>
    %c0_14 = arith.constant 0 : index
    %c0_15 = arith.constant 0 : index
    %11 = vector.load %arg9[%c0_14, %c0_15] : memref<1x32xf32, #tpu.memory_space<vmem>>, vector<1x32xf32>
    %c0_16 = arith.constant 0 : index
    %c0_17 = arith.constant 0 : index
    %12 = vector.load %arg10[%c0_16, %c0_17] : memref<1x32xf32, #tpu.memory_space<vmem>>, vector<1x32xf32>
    %c0_18 = arith.constant 0 : index
    %c0_19 = arith.constant 0 : index
    %13 = vector.load %arg11[%c0_18, %c0_19] : memref<1x32xf32, #tpu.memory_space<vmem>>, vector<1x32xf32>
    %c0_20 = arith.constant 0 : index
    %c0_21 = arith.constant 0 : index
    %14 = vector.load %arg12[%c0_20, %c0_21] : memref<32x64xf32, #tpu.memory_space<vmem>>, vector<32x64xf32>
    %c0_22 = arith.constant 0 : index
    %c0_23 = arith.constant 0 : index
    %15 = vector.load %arg13[%c0_22, %c0_23] : memref<1x64xf32, #tpu.memory_space<vmem>>, vector<1x64xf32>
    %c0_24 = arith.constant 0 : index
    %c0_25 = arith.constant 0 : index
    %16 = vector.load %arg14[%c0_24, %c0_25] : memref<64x32xf32, #tpu.memory_space<vmem>>, vector<64x32xf32>
    %c0_26 = arith.constant 0 : index
    %c0_27 = arith.constant 0 : index
    %17 = vector.load %arg15[%c0_26, %c0_27] : memref<1x32xf32, #tpu.memory_space<vmem>>, vector<1x32xf32>
    %c0_28 = arith.constant 0 : index
    %c0_29 = arith.constant 0 : index
    %18 = vector.load %arg16[%c0_28, %c0_29] : memref<1x32xf32, #tpu.memory_space<vmem>>, vector<1x32xf32>
    %c0_30 = arith.constant 0 : index
    %c0_31 = arith.constant 0 : index
    %19 = vector.load %arg17[%c0_30, %c0_31] : memref<1x32xf32, #tpu.memory_space<vmem>>, vector<1x32xf32>
    %c0_32 = arith.constant 0 : index
    %c0_33 = arith.constant 0 : index
    %c0_34 = arith.constant 0 : index
    %20 = vector.load %arg0[%c0_32, %c0_33, %c0_34] : memref<2x8x32xf32, #tpu.memory_space<vmem>>, vector<1x8x32xf32>
    %21 = vector.shape_cast %20 : vector<1x8x32xf32> to vector<8x32xf32>
    %c0_35 = arith.constant 0 : index
    %c0_36 = arith.constant 0 : index
    %c0_37 = arith.constant 0 : index
    %22 = vector.load %arg1[%c0_35, %c0_36, %c0_37] : memref<2x16x32xf32, #tpu.memory_space<vmem>>, vector<1x16x32xf32>
    %23 = vector.shape_cast %22 : vector<1x16x32xf32> to vector<16x32xf32>
    %cst_38 = arith.constant dense<0.000000e+00> : vector<8x32xf32>
    %24 = tpu.matmul %21, %2, %cst_38 {dimension_numbers = #tpu.dot_dimension_numbers<[1], [0], [0], [1], [0, 0, 1, 1], [], []>} : vector<8x32xf32>, vector<32x32xf32>, vector<8x32xf32> -> vector<8x32xf32>
    %25 = vector.broadcast %5 : vector<1x32xf32> to vector<8x32xf32>
    %26 = arith.addf %24, %25 : vector<8x32xf32>
    %cst_39 = arith.constant dense<0.000000e+00> : vector<16x32xf32>
    %27 = tpu.matmul %23, %6, %cst_39 {dimension_numbers = #tpu.dot_dimension_numbers<[1], [0], [0], [1], [0, 0, 1, 1], [], []>} : vector<16x32xf32>, vector<32x32xf32>, vector<16x32xf32> -> vector<16x32xf32>
    %28 = vector.broadcast %7 : vector<1x32xf32> to vector<16x32xf32>
    %29 = arith.addf %27, %28 : vector<16x32xf32>
    %cst_40 = arith.constant dense<0.000000e+00> : vector<16x32xf32>
    %30 = tpu.matmul %23, %8, %cst_40 {dimension_numbers = #tpu.dot_dimension_numbers<[1], [0], [0], [1], [0, 0, 1, 1], [], []>} : vector<16x32xf32>, vector<32x32xf32>, vector<16x32xf32> -> vector<16x32xf32>
    %31 = vector.broadcast %9 : vector<1x32xf32> to vector<16x32xf32>
    %32 = arith.addf %30, %31 : vector<16x32xf32>
    %33 = vector.extract_strided_slice %26 {offsets = [0, 0], sizes = [8, 8], strides = [1, 1]} : vector<8x32xf32> to vector<8x8xf32>
    %34 = vector.extract_strided_slice %29 {offsets = [0, 0], sizes = [16, 8], strides = [1, 1]} : vector<16x32xf32> to vector<16x8xf32>
    %35 = vector.extract_strided_slice %32 {offsets = [0, 0], sizes = [16, 8], strides = [1, 1]} : vector<16x32xf32> to vector<16x8xf32>
    %cst_41 = arith.constant dense<0.000000e+00> : vector<8x16xf32>
    %36 = tpu.matmul %33, %34, %cst_41 {dimension_numbers = #tpu.dot_dimension_numbers<[1], [1], [0], [0], [0, 0, 1, 0], [], []>} : vector<8x8xf32>, vector<16x8xf32>, vector<8x16xf32> -> vector<8x16xf32>
    %cst_42 = arith.constant dense<0xFF800000> : vector<8xf32>
    %37 = vector.multi_reduction <maximumf>, %36, %cst_42 [1] : vector<8x16xf32> to vector<8xf32>
    %38 = vector.shape_cast %37 : vector<8xf32> to vector<8x1xf32>
    %39 = vector.broadcast %38 : vector<8x1xf32> to vector<8x16xf32>
    %40 = arith.subf %36, %39 : vector<8x16xf32>
    %41 = math.exp %40 : vector<8x16xf32>
    %cst_43 = arith.constant dense<0.000000e+00> : vector<8xf32>
    %42 = vector.multi_reduction <add>, %41, %cst_43 [1] : vector<8x16xf32> to vector<8xf32>
    %43 = vector.shape_cast %42 : vector<8xf32> to vector<8x1xf32>
    %44 = tpu.reciprocal %43 {approx = true} : vector<8x1xf32> -> vector<8x1xf32>
    %45 = vector.broadcast %44 : vector<8x1xf32> to vector<8x16xf32>
    %46 = arith.mulf %41, %45 : vector<8x16xf32>
    %cst_44 = arith.constant dense<0.000000e+00> : vector<8x8xf32>
    %47 = tpu.matmul %46, %35, %cst_44 {dimension_numbers = #tpu.dot_dimension_numbers<[1], [0], [0], [1], [0, 0, 1, 1], [], []>} : vector<8x16xf32>, vector<16x8xf32>, vector<8x8xf32> -> vector<8x8xf32>
    %48 = vector.extract_strided_slice %10 {offsets = [0, 0], sizes = [8, 32], strides = [1, 1]} : vector<32x32xf32> to vector<8x32xf32>
    %cst_45 = arith.constant dense<0.000000e+00> : vector<8x32xf32>
    %49 = tpu.matmul %47, %48, %cst_45 {dimension_numbers = #tpu.dot_dimension_numbers<[1], [0], [0], [1], [0, 0, 1, 1], [], []>} : vector<8x8xf32>, vector<8x32xf32>, vector<8x32xf32> -> vector<8x32xf32>
    %50 = vector.extract_strided_slice %26 {offsets = [0, 8], sizes = [8, 8], strides = [1, 1]} : vector<8x32xf32> to vector<8x8xf32>
    %51 = vector.extract_strided_slice %29 {offsets = [0, 8], sizes = [16, 8], strides = [1, 1]} : vector<16x32xf32> to vector<16x8xf32>
    %52 = vector.extract_strided_slice %32 {offsets = [0, 8], sizes = [16, 8], strides = [1, 1]} : vector<16x32xf32> to vector<16x8xf32>
    %cst_46 = arith.constant dense<0.000000e+00> : vector<8x16xf32>
    %53 = tpu.matmul %50, %51, %cst_46 {dimension_numbers = #tpu.dot_dimension_numbers<[1], [1], [0], [0], [0, 0, 1, 0], [], []>} : vector<8x8xf32>, vector<16x8xf32>, vector<8x16xf32> -> vector<8x16xf32>
    %cst_47 = arith.constant dense<0xFF800000> : vector<8xf32>
    %54 = vector.multi_reduction <maximumf>, %53, %cst_47 [1] : vector<8x16xf32> to vector<8xf32>
    %55 = vector.shape_cast %54 : vector<8xf32> to vector<8x1xf32>
    %56 = vector.broadcast %55 : vector<8x1xf32> to vector<8x16xf32>
    %57 = arith.subf %53, %56 : vector<8x16xf32>
    %58 = math.exp %57 : vector<8x16xf32>
    %cst_48 = arith.constant dense<0.000000e+00> : vector<8xf32>
    %59 = vector.multi_reduction <add>, %58, %cst_48 [1] : vector<8x16xf32> to vector<8xf32>
    %60 = vector.shape_cast %59 : vector<8xf32> to vector<8x1xf32>
    %61 = tpu.reciprocal %60 {approx = true} : vector<8x1xf32> -> vector<8x1xf32>
    %62 = vector.broadcast %61 : vector<8x1xf32> to vector<8x16xf32>
    %63 = arith.mulf %58, %62 : vector<8x16xf32>
    %cst_49 = arith.constant dense<0.000000e+00> : vector<8x8xf32>
    %64 = tpu.matmul %63, %52, %cst_49 {dimension_numbers = #tpu.dot_dimension_numbers<[1], [0], [0], [1], [0, 0, 1, 1], [], []>} : vector<8x16xf32>, vector<16x8xf32>, vector<8x8xf32> -> vector<8x8xf32>
    %65 = vector.extract_strided_slice %10 {offsets = [8, 0], sizes = [8, 32], strides = [1, 1]} : vector<32x32xf32> to vector<8x32xf32>
    %cst_50 = arith.constant dense<0.000000e+00> : vector<8x32xf32>
    %66 = tpu.matmul %64, %65, %cst_50 {dimension_numbers = #tpu.dot_dimension_numbers<[1], [0], [0], [1], [0, 0, 1, 1], [], []>} : vector<8x8xf32>, vector<8x32xf32>, vector<8x32xf32> -> vector<8x32xf32>
    %67 = arith.addf %49, %66 : vector<8x32xf32>
    %68 = vector.extract_strided_slice %26 {offsets = [0, 16], sizes = [8, 8], strides = [1, 1]} : vector<8x32xf32> to vector<8x8xf32>
    %69 = vector.extract_strided_slice %29 {offsets = [0, 16], sizes = [16, 8], strides = [1, 1]} : vector<16x32xf32> to vector<16x8xf32>
    %70 = vector.extract_strided_slice %32 {offsets = [0, 16], sizes = [16, 8], strides = [1, 1]} : vector<16x32xf32> to vector<16x8xf32>
    %cst_51 = arith.constant dense<0.000000e+00> : vector<8x16xf32>
    %71 = tpu.matmul %68, %69, %cst_51 {dimension_numbers = #tpu.dot_dimension_numbers<[1], [1], [0], [0], [0, 0, 1, 0], [], []>} : vector<8x8xf32>, vector<16x8xf32>, vector<8x16xf32> -> vector<8x16xf32>
    %cst_52 = arith.constant dense<0xFF800000> : vector<8xf32>
    %72 = vector.multi_reduction <maximumf>, %71, %cst_52 [1] : vector<8x16xf32> to vector<8xf32>
    %73 = vector.shape_cast %72 : vector<8xf32> to vector<8x1xf32>
    %74 = vector.broadcast %73 : vector<8x1xf32> to vector<8x16xf32>
    %75 = arith.subf %71, %74 : vector<8x16xf32>
    %76 = math.exp %75 : vector<8x16xf32>
    %cst_53 = arith.constant dense<0.000000e+00> : vector<8xf32>
    %77 = vector.multi_reduction <add>, %76, %cst_53 [1] : vector<8x16xf32> to vector<8xf32>
    %78 = vector.shape_cast %77 : vector<8xf32> to vector<8x1xf32>
    %79 = tpu.reciprocal %78 {approx = true} : vector<8x1xf32> -> vector<8x1xf32>
    %80 = vector.broadcast %79 : vector<8x1xf32> to vector<8x16xf32>
    %81 = arith.mulf %76, %80 : vector<8x16xf32>
    %cst_54 = arith.constant dense<0.000000e+00> : vector<8x8xf32>
    %82 = tpu.matmul %81, %70, %cst_54 {dimension_numbers = #tpu.dot_dimension_numbers<[1], [0], [0], [1], [0, 0, 1, 1], [], []>} : vector<8x16xf32>, vector<16x8xf32>, vector<8x8xf32> -> vector<8x8xf32>
    %83 = vector.extract_strided_slice %10 {offsets = [16, 0], sizes = [8, 32], strides = [1, 1]} : vector<32x32xf32> to vector<8x32xf32>
    %cst_55 = arith.constant dense<0.000000e+00> : vector<8x32xf32>
    %84 = tpu.matmul %82, %83, %cst_55 {dimension_numbers = #tpu.dot_dimension_numbers<[1], [0], [0], [1], [0, 0, 1, 1], [], []>} : vector<8x8xf32>, vector<8x32xf32>, vector<8x32xf32> -> vector<8x32xf32>
    %85 = arith.addf %67, %84 : vector<8x32xf32>
    %86 = vector.extract_strided_slice %26 {offsets = [0, 24], sizes = [8, 8], strides = [1, 1]} : vector<8x32xf32> to vector<8x8xf32>
    %87 = vector.extract_strided_slice %29 {offsets = [0, 24], sizes = [16, 8], strides = [1, 1]} : vector<16x32xf32> to vector<16x8xf32>
    %88 = vector.extract_strided_slice %32 {offsets = [0, 24], sizes = [16, 8], strides = [1, 1]} : vector<16x32xf32> to vector<16x8xf32>
    %cst_56 = arith.constant dense<0.000000e+00> : vector<8x16xf32>
    %89 = tpu.matmul %86, %87, %cst_56 {dimension_numbers = #tpu.dot_dimension_numbers<[1], [1], [0], [0], [0, 0, 1, 0], [], []>} : vector<8x8xf32>, vector<16x8xf32>, vector<8x16xf32> -> vector<8x16xf32>
    %cst_57 = arith.constant dense<0xFF800000> : vector<8xf32>
    %90 = vector.multi_reduction <maximumf>, %89, %cst_57 [1] : vector<8x16xf32> to vector<8xf32>
    %91 = vector.shape_cast %90 : vector<8xf32> to vector<8x1xf32>
    %92 = vector.broadcast %91 : vector<8x1xf32> to vector<8x16xf32>
    %93 = arith.subf %89, %92 : vector<8x16xf32>
    %94 = math.exp %93 : vector<8x16xf32>
    %cst_58 = arith.constant dense<0.000000e+00> : vector<8xf32>
    %95 = vector.multi_reduction <add>, %94, %cst_58 [1] : vector<8x16xf32> to vector<8xf32>
    %96 = vector.shape_cast %95 : vector<8xf32> to vector<8x1xf32>
    %97 = tpu.reciprocal %96 {approx = true} : vector<8x1xf32> -> vector<8x1xf32>
    %98 = vector.broadcast %97 : vector<8x1xf32> to vector<8x16xf32>
    %99 = arith.mulf %94, %98 : vector<8x16xf32>
    %cst_59 = arith.constant dense<0.000000e+00> : vector<8x8xf32>
    %100 = tpu.matmul %99, %88, %cst_59 {dimension_numbers = #tpu.dot_dimension_numbers<[1], [0], [0], [1], [0, 0, 1, 1], [], []>} : vector<8x16xf32>, vector<16x8xf32>, vector<8x8xf32> -> vector<8x8xf32>
    %101 = vector.extract_strided_slice %10 {offsets = [24, 0], sizes = [8, 32], strides = [1, 1]} : vector<32x32xf32> to vector<8x32xf32>
    %cst_60 = arith.constant dense<0.000000e+00> : vector<8x32xf32>
    %102 = tpu.matmul %100, %101, %cst_60 {dimension_numbers = #tpu.dot_dimension_numbers<[1], [0], [0], [1], [0, 0, 1, 1], [], []>} : vector<8x8xf32>, vector<8x32xf32>, vector<8x32xf32> -> vector<8x32xf32>
    %103 = arith.addf %85, %102 : vector<8x32xf32>
    %104 = vector.broadcast %11 : vector<1x32xf32> to vector<8x32xf32>
    %105 = arith.addf %103, %104 : vector<8x32xf32>
    %106 = arith.addf %21, %105 : vector<8x32xf32>
    %cst_61 = arith.constant dense<0.000000e+00> : vector<8xf32>
    %107 = vector.multi_reduction <add>, %106, %cst_61 [1] : vector<8x32xf32> to vector<8xf32>
    %108 = vector.shape_cast %107 : vector<8xf32> to vector<8x1xf32>
    %cst_62 = arith.constant 3.200000e+01 : f32
    %109 = vector.broadcast %cst_62 : f32 to vector<8x1xf32>
    %110 = arith.divf %108, %109 : vector<8x1xf32>
    %111 = vector.broadcast %110 : vector<8x1xf32> to vector<8x32xf32>
    %112 = arith.subf %106, %111 : vector<8x32xf32>
    %113 = arith.mulf %112, %112 : vector<8x32xf32>
    %cst_63 = arith.constant dense<0.000000e+00> : vector<8xf32>
    %114 = vector.multi_reduction <add>, %113, %cst_63 [1] : vector<8x32xf32> to vector<8xf32>
    %115 = vector.shape_cast %114 : vector<8xf32> to vector<8x1xf32>
    %cst_64 = arith.constant 3.200000e+01 : f32
    %116 = vector.broadcast %cst_64 : f32 to vector<8x1xf32>
    %117 = arith.divf %115, %116 : vector<8x1xf32>
    %cst_65 = arith.constant 9.99999974E-6 : f32
    %118 = vector.broadcast %cst_65 : f32 to vector<8x1xf32>
    %119 = arith.addf %117, %118 : vector<8x1xf32>
    %120 = math.rsqrt %119 : vector<8x1xf32>
    %121 = vector.broadcast %110 : vector<8x1xf32> to vector<8x32xf32>
    %122 = arith.subf %106, %121 : vector<8x32xf32>
    %123 = vector.broadcast %120 : vector<8x1xf32> to vector<8x32xf32>
    %124 = arith.mulf %122, %123 : vector<8x32xf32>
    %125 = vector.broadcast %12 : vector<1x32xf32> to vector<8x32xf32>
    %126 = arith.mulf %124, %125 : vector<8x32xf32>
    %127 = vector.broadcast %13 : vector<1x32xf32> to vector<8x32xf32>
    %128 = arith.addf %126, %127 : vector<8x32xf32>
    %cst_66 = arith.constant dense<0.000000e+00> : vector<8x64xf32>
    %129 = tpu.matmul %128, %14, %cst_66 {dimension_numbers = #tpu.dot_dimension_numbers<[1], [0], [0], [1], [0, 0, 1, 1], [], []>} : vector<8x32xf32>, vector<32x64xf32>, vector<8x64xf32> -> vector<8x64xf32>
    %130 = vector.broadcast %15 : vector<1x64xf32> to vector<8x64xf32>
    %131 = arith.addf %129, %130 : vector<8x64xf32>
    %cst_67 = arith.constant 0.000000e+00 : f32
    %132 = vector.broadcast %cst_67 : f32 to vector<8x64xf32>
    %133 = arith.maximumf %131, %132 : vector<8x64xf32>
    %cst_68 = arith.constant dense<0.000000e+00> : vector<8x32xf32>
    %134 = tpu.matmul %133, %16, %cst_68 {dimension_numbers = #tpu.dot_dimension_numbers<[1], [0], [0], [1], [0, 0, 1, 1], [], []>} : vector<8x64xf32>, vector<64x32xf32>, vector<8x32xf32> -> vector<8x32xf32>
    %135 = vector.broadcast %17 : vector<1x32xf32> to vector<8x32xf32>
    %136 = arith.addf %134, %135 : vector<8x32xf32>
    %137 = arith.addf %128, %136 : vector<8x32xf32>
    %cst_69 = arith.constant dense<0.000000e+00> : vector<8xf32>
    %138 = vector.multi_reduction <add>, %137, %cst_69 [1] : vector<8x32xf32> to vector<8xf32>
    %139 = vector.shape_cast %138 : vector<8xf32> to vector<8x1xf32>
    %cst_70 = arith.constant 3.200000e+01 : f32
    %140 = vector.broadcast %cst_70 : f32 to vector<8x1xf32>
    %141 = arith.divf %139, %140 : vector<8x1xf32>
    %142 = vector.broadcast %141 : vector<8x1xf32> to vector<8x32xf32>
    %143 = arith.subf %137, %142 : vector<8x32xf32>
    %144 = arith.mulf %143, %143 : vector<8x32xf32>
    %cst_71 = arith.constant dense<0.000000e+00> : vector<8xf32>
    %145 = vector.multi_reduction <add>, %144, %cst_71 [1] : vector<8x32xf32> to vector<8xf32>
    %146 = vector.shape_cast %145 : vector<8xf32> to vector<8x1xf32>
    %cst_72 = arith.constant 3.200000e+01 : f32
    %147 = vector.broadcast %cst_72 : f32 to vector<8x1xf32>
    %148 = arith.divf %146, %147 : vector<8x1xf32>
    %cst_73 = arith.constant 9.99999974E-6 : f32
    %149 = vector.broadcast %cst_73 : f32 to vector<8x1xf32>
    %150 = arith.addf %148, %149 : vector<8x1xf32>
    %151 = math.rsqrt %150 : vector<8x1xf32>
    %152 = vector.broadcast %141 : vector<8x1xf32> to vector<8x32xf32>
    %153 = arith.subf %137, %152 : vector<8x32xf32>
    %154 = vector.broadcast %151 : vector<8x1xf32> to vector<8x32xf32>
    %155 = arith.mulf %153, %154 : vector<8x32xf32>
    %156 = vector.broadcast %18 : vector<1x32xf32> to vector<8x32xf32>
    %157 = arith.mulf %155, %156 : vector<8x32xf32>
    %158 = vector.broadcast %19 : vector<1x32xf32> to vector<8x32xf32>
    %159 = arith.addf %157, %158 : vector<8x32xf32>
    %c0_74 = arith.constant 0 : index
    %c0_75 = arith.constant 0 : index
    %c0_76 = arith.constant 0 : index
    %160 = vector.load %arg18[%c0_74, %c0_75, %c0_76] : memref<2x8x32xf32, #tpu.memory_space<vmem>>, vector<1x8x32xf32>
    %161 = vector.shape_cast %160 : vector<1x8x32xf32> to vector<8x32xf32>
    %162 = vector.shape_cast %159 : vector<8x32xf32> to vector<1x8x32xf32>
    tpu.vector_store %arg18[%c0_74, %c0_75, %c0_76], %162 {strides = array<i32>} : memref<2x8x32xf32, #tpu.memory_space<vmem>>, vector<1x8x32xf32>,
    %c1 = arith.constant 1 : index
    %c0_77 = arith.constant 0 : index
    %c0_78 = arith.constant 0 : index
    %163 = vector.load %arg0[%c1, %c0_77, %c0_78] : memref<2x8x32xf32, #tpu.memory_space<vmem>>, vector<1x8x32xf32>
    %164 = vector.shape_cast %163 : vector<1x8x32xf32> to vector<8x32xf32>
    %c1_79 = arith.constant 1 : index
    %c0_80 = arith.constant 0 : index
    %c0_81 = arith.constant 0 : index
    %165 = vector.load %arg1[%c1_79, %c0_80, %c0_81] : memref<2x16x32xf32, #tpu.memory_space<vmem>>, vector<1x16x32xf32>
    %166 = vector.shape_cast %165 : vector<1x16x32xf32> to vector<16x32xf32>
    %cst_82 = arith.constant dense<0.000000e+00> : vector<8x32xf32>
    %167 = tpu.matmul %164, %2, %cst_82 {dimension_numbers = #tpu.dot_dimension_numbers<[1], [0], [0], [1], [0, 0, 1, 1], [], []>} : vector<8x32xf32>, vector<32x32xf32>, vector<8x32xf32> -> vector<8x32xf32>
    %168 = vector.broadcast %5 : vector<1x32xf32> to vector<8x32xf32>
    %169 = arith.addf %167, %168 : vector<8x32xf32>
    %cst_83 = arith.constant dense<0.000000e+00> : vector<16x32xf32>
    %170 = tpu.matmul %166, %6, %cst_83 {dimension_numbers = #tpu.dot_dimension_numbers<[1], [0], [0], [1], [0, 0, 1, 1], [], []>} : vector<16x32xf32>, vector<32x32xf32>, vector<16x32xf32> -> vector<16x32xf32>
    %171 = vector.broadcast %7 : vector<1x32xf32> to vector<16x32xf32>
    %172 = arith.addf %170, %171 : vector<16x32xf32>
    %cst_84 = arith.constant dense<0.000000e+00> : vector<16x32xf32>
    %173 = tpu.matmul %166, %8, %cst_84 {dimension_numbers = #tpu.dot_dimension_numbers<[1], [0], [0], [1], [0, 0, 1, 1], [], []>} : vector<16x32xf32>, vector<32x32xf32>, vector<16x32xf32> -> vector<16x32xf32>
    %174 = vector.broadcast %9 : vector<1x32xf32> to vector<16x32xf32>
    %175 = arith.addf %173, %174 : vector<16x32xf32>
    %176 = vector.extract_strided_slice %169 {offsets = [0, 0], sizes = [8, 8], strides = [1, 1]} : vector<8x32xf32> to vector<8x8xf32>
    %177 = vector.extract_strided_slice %172 {offsets = [0, 0], sizes = [16, 8], strides = [1, 1]} : vector<16x32xf32> to vector<16x8xf32>
    %178 = vector.extract_strided_slice %175 {offsets = [0, 0], sizes = [16, 8], strides = [1, 1]} : vector<16x32xf32> to vector<16x8xf32>
    %cst_85 = arith.constant dense<0.000000e+00> : vector<8x16xf32>
    %179 = tpu.matmul %176, %177, %cst_85 {dimension_numbers = #tpu.dot_dimension_numbers<[1], [1], [0], [0], [0, 0, 1, 0], [], []>} : vector<8x8xf32>, vector<16x8xf32>, vector<8x16xf32> -> vector<8x16xf32>
    %cst_86 = arith.constant dense<0xFF800000> : vector<8xf32>
    %180 = vector.multi_reduction <maximumf>, %179, %cst_86 [1] : vector<8x16xf32> to vector<8xf32>
    %181 = vector.shape_cast %180 : vector<8xf32> to vector<8x1xf32>
    %182 = vector.broadcast %181 : vector<8x1xf32> to vector<8x16xf32>
    %183 = arith.subf %179, %182 : vector<8x16xf32>
    %184 = math.exp %183 : vector<8x16xf32>
    %cst_87 = arith.constant dense<0.000000e+00> : vector<8xf32>
    %185 = vector.multi_reduction <add>, %184, %cst_87 [1] : vector<8x16xf32> to vector<8xf32>
    %186 = vector.shape_cast %185 : vector<8xf32> to vector<8x1xf32>
    %187 = tpu.reciprocal %186 {approx = true} : vector<8x1xf32> -> vector<8x1xf32>
    %188 = vector.broadcast %187 : vector<8x1xf32> to vector<8x16xf32>
    %189 = arith.mulf %184, %188 : vector<8x16xf32>
    %cst_88 = arith.constant dense<0.000000e+00> : vector<8x8xf32>
    %190 = tpu.matmul %189, %178, %cst_88 {dimension_numbers = #tpu.dot_dimension_numbers<[1], [0], [0], [1], [0, 0, 1, 1], [], []>} : vector<8x16xf32>, vector<16x8xf32>, vector<8x8xf32> -> vector<8x8xf32>
    %191 = vector.extract_strided_slice %10 {offsets = [0, 0], sizes = [8, 32], strides = [1, 1]} : vector<32x32xf32> to vector<8x32xf32>
    %cst_89 = arith.constant dense<0.000000e+00> : vector<8x32xf32>
    %192 = tpu.matmul %190, %191, %cst_89 {dimension_numbers = #tpu.dot_dimension_numbers<[1], [0], [0], [1], [0, 0, 1, 1], [], []>} : vector<8x8xf32>, vector<8x32xf32>, vector<8x32xf32> -> vector<8x32xf32>
    %193 = vector.extract_strided_slice %169 {offsets = [0, 8], sizes = [8, 8], strides = [1, 1]} : vector<8x32xf32> to vector<8x8xf32>
    %194 = vector.extract_strided_slice %172 {offsets = [0, 8], sizes = [16, 8], strides = [1, 1]} : vector<16x32xf32> to vector<16x8xf32>
    %195 = vector.extract_strided_slice %175 {offsets = [0, 8], sizes = [16, 8], strides = [1, 1]} : vector<16x32xf32> to vector<16x8xf32>
    %cst_90 = arith.constant dense<0.000000e+00> : vector<8x16xf32>
    %196 = tpu.matmul %193, %194, %cst_90 {dimension_numbers = #tpu.dot_dimension_numbers<[1], [1], [0], [0], [0, 0, 1, 0], [], []>} : vector<8x8xf32>, vector<16x8xf32>, vector<8x16xf32> -> vector<8x16xf32>
    %cst_91 = arith.constant dense<0xFF800000> : vector<8xf32>
    %197 = vector.multi_reduction <maximumf>, %196, %cst_91 [1] : vector<8x16xf32> to vector<8xf32>
    %198 = vector.shape_cast %197 : vector<8xf32> to vector<8x1xf32>
    %199 = vector.broadcast %198 : vector<8x1xf32> to vector<8x16xf32>
    %200 = arith.subf %196, %199 : vector<8x16xf32>
    %201 = math.exp %200 : vector<8x16xf32>
    %cst_92 = arith.constant dense<0.000000e+00> : vector<8xf32>
    %202 = vector.multi_reduction <add>, %201, %cst_92 [1] : vector<8x16xf32> to vector<8xf32>
    %203 = vector.shape_cast %202 : vector<8xf32> to vector<8x1xf32>
    %204 = tpu.reciprocal %203 {approx = true} : vector<8x1xf32> -> vector<8x1xf32>
    %205 = vector.broadcast %204 : vector<8x1xf32> to vector<8x16xf32>
    %206 = arith.mulf %201, %205 : vector<8x16xf32>
    %cst_93 = arith.constant dense<0.000000e+00> : vector<8x8xf32>
    %207 = tpu.matmul %206, %195, %cst_93 {dimension_numbers = #tpu.dot_dimension_numbers<[1], [0], [0], [1], [0, 0, 1, 1], [], []>} : vector<8x16xf32>, vector<16x8xf32>, vector<8x8xf32> -> vector<8x8xf32>
    %208 = vector.extract_strided_slice %10 {offsets = [8, 0], sizes = [8, 32], strides = [1, 1]} : vector<32x32xf32> to vector<8x32xf32>
    %cst_94 = arith.constant dense<0.000000e+00> : vector<8x32xf32>
    %209 = tpu.matmul %207, %208, %cst_94 {dimension_numbers = #tpu.dot_dimension_numbers<[1], [0], [0], [1], [0, 0, 1, 1], [], []>} : vector<8x8xf32>, vector<8x32xf32>, vector<8x32xf32> -> vector<8x32xf32>
    %210 = arith.addf %192, %209 : vector<8x32xf32>
    %211 = vector.extract_strided_slice %169 {offsets = [0, 16], sizes = [8, 8], strides = [1, 1]} : vector<8x32xf32> to vector<8x8xf32>
    %212 = vector.extract_strided_slice %172 {offsets = [0, 16], sizes = [16, 8], strides = [1, 1]} : vector<16x32xf32> to vector<16x8xf32>
    %213 = vector.extract_strided_slice %175 {offsets = [0, 16], sizes = [16, 8], strides = [1, 1]} : vector<16x32xf32> to vector<16x8xf32>
    %cst_95 = arith.constant dense<0.000000e+00> : vector<8x16xf32>
    %214 = tpu.matmul %211, %212, %cst_95 {dimension_numbers = #tpu.dot_dimension_numbers<[1], [1], [0], [0], [0, 0, 1, 0], [], []>} : vector<8x8xf32>, vector<16x8xf32>, vector<8x16xf32> -> vector<8x16xf32>
    %cst_96 = arith.constant dense<0xFF800000> : vector<8xf32>
    %215 = vector.multi_reduction <maximumf>, %214, %cst_96 [1] : vector<8x16xf32> to vector<8xf32>
    %216 = vector.shape_cast %215 : vector<8xf32> to vector<8x1xf32>
    %217 = vector.broadcast %216 : vector<8x1xf32> to vector<8x16xf32>
    %218 = arith.subf %214, %217 : vector<8x16xf32>
    %219 = math.exp %218 : vector<8x16xf32>
    %cst_97 = arith.constant dense<0.000000e+00> : vector<8xf32>
    %220 = vector.multi_reduction <add>, %219, %cst_97 [1] : vector<8x16xf32> to vector<8xf32>
    %221 = vector.shape_cast %220 : vector<8xf32> to vector<8x1xf32>
    %222 = tpu.reciprocal %221 {approx = true} : vector<8x1xf32> -> vector<8x1xf32>
    %223 = vector.broadcast %222 : vector<8x1xf32> to vector<8x16xf32>
    %224 = arith.mulf %219, %223 : vector<8x16xf32>
    %cst_98 = arith.constant dense<0.000000e+00> : vector<8x8xf32>
    %225 = tpu.matmul %224, %213, %cst_98 {dimension_numbers = #tpu.dot_dimension_numbers<[1], [0], [0], [1], [0, 0, 1, 1], [], []>} : vector<8x16xf32>, vector<16x8xf32>, vector<8x8xf32> -> vector<8x8xf32>
    %226 = vector.extract_strided_slice %10 {offsets = [16, 0], sizes = [8, 32], strides = [1, 1]} : vector<32x32xf32> to vector<8x32xf32>
    %cst_99 = arith.constant dense<0.000000e+00> : vector<8x32xf32>
    %227 = tpu.matmul %225, %226, %cst_99 {dimension_numbers = #tpu.dot_dimension_numbers<[1], [0], [0], [1], [0, 0, 1, 1], [], []>} : vector<8x8xf32>, vector<8x32xf32>, vector<8x32xf32> -> vector<8x32xf32>
    %228 = arith.addf %210, %227 : vector<8x32xf32>
    %229 = vector.extract_strided_slice %169 {offsets = [0, 24], sizes = [8, 8], strides = [1, 1]} : vector<8x32xf32> to vector<8x8xf32>
    %230 = vector.extract_strided_slice %172 {offsets = [0, 24], sizes = [16, 8], strides = [1, 1]} : vector<16x32xf32> to vector<16x8xf32>
    %231 = vector.extract_strided_slice %175 {offsets = [0, 24], sizes = [16, 8], strides = [1, 1]} : vector<16x32xf32> to vector<16x8xf32>
    %cst_100 = arith.constant dense<0.000000e+00> : vector<8x16xf32>
    %232 = tpu.matmul %229, %230, %cst_100 {dimension_numbers = #tpu.dot_dimension_numbers<[1], [1], [0], [0], [0, 0, 1, 0], [], []>} : vector<8x8xf32>, vector<16x8xf32>, vector<8x16xf32> -> vector<8x16xf32>
    %cst_101 = arith.constant dense<0xFF800000> : vector<8xf32>
    %233 = vector.multi_reduction <maximumf>, %232, %cst_101 [1] : vector<8x16xf32> to vector<8xf32>
    %234 = vector.shape_cast %233 : vector<8xf32> to vector<8x1xf32>
    %235 = vector.broadcast %234 : vector<8x1xf32> to vector<8x16xf32>
    %236 = arith.subf %232, %235 : vector<8x16xf32>
    %237 = math.exp %236 : vector<8x16xf32>
    %cst_102 = arith.constant dense<0.000000e+00> : vector<8xf32>
    %238 = vector.multi_reduction <add>, %237, %cst_102 [1] : vector<8x16xf32> to vector<8xf32>
    %239 = vector.shape_cast %238 : vector<8xf32> to vector<8x1xf32>
    %240 = tpu.reciprocal %239 {approx = true} : vector<8x1xf32> -> vector<8x1xf32>
    %241 = vector.broadcast %240 : vector<8x1xf32> to vector<8x16xf32>
    %242 = arith.mulf %237, %241 : vector<8x16xf32>
    %cst_103 = arith.constant dense<0.000000e+00> : vector<8x8xf32>
    %243 = tpu.matmul %242, %231, %cst_103 {dimension_numbers = #tpu.dot_dimension_numbers<[1], [0], [0], [1], [0, 0, 1, 1], [], []>} : vector<8x16xf32>, vector<16x8xf32>, vector<8x8xf32> -> vector<8x8xf32>
    %244 = vector.extract_strided_slice %10 {offsets = [24, 0], sizes = [8, 32], strides = [1, 1]} : vector<32x32xf32> to vector<8x32xf32>
    %cst_104 = arith.constant dense<0.000000e+00> : vector<8x32xf32>
    %245 = tpu.matmul %243, %244, %cst_104 {dimension_numbers = #tpu.dot_dimension_numbers<[1], [0], [0], [1], [0, 0, 1, 1], [], []>} : vector<8x8xf32>, vector<8x32xf32>, vector<8x32xf32> -> vector<8x32xf32>
    %246 = arith.addf %228, %245 : vector<8x32xf32>
    %247 = vector.broadcast %11 : vector<1x32xf32> to vector<8x32xf32>
    %248 = arith.addf %246, %247 : vector<8x32xf32>
    %249 = arith.addf %164, %248 : vector<8x32xf32>
    %cst_105 = arith.constant dense<0.000000e+00> : vector<8xf32>
    %250 = vector.multi_reduction <add>, %249, %cst_105 [1] : vector<8x32xf32> to vector<8xf32>
    %251 = vector.shape_cast %250 : vector<8xf32> to vector<8x1xf32>
    %cst_106 = arith.constant 3.200000e+01 : f32
    %252 = vector.broadcast %cst_106 : f32 to vector<8x1xf32>
    %253 = arith.divf %251, %252 : vector<8x1xf32>
    %254 = vector.broadcast %253 : vector<8x1xf32> to vector<8x32xf32>
    %255 = arith.subf %249, %254 : vector<8x32xf32>
    %256 = arith.mulf %255, %255 : vector<8x32xf32>
    %cst_107 = arith.constant dense<0.000000e+00> : vector<8xf32>
    %257 = vector.multi_reduction <add>, %256, %cst_107 [1] : vector<8x32xf32> to vector<8xf32>
    %258 = vector.shape_cast %257 : vector<8xf32> to vector<8x1xf32>
    %cst_108 = arith.constant 3.200000e+01 : f32
    %259 = vector.broadcast %cst_108 : f32 to vector<8x1xf32>
    %260 = arith.divf %258, %259 : vector<8x1xf32>
    %cst_109 = arith.constant 9.99999974E-6 : f32
    %261 = vector.broadcast %cst_109 : f32 to vector<8x1xf32>
    %262 = arith.addf %260, %261 : vector<8x1xf32>
    %263 = math.rsqrt %262 : vector<8x1xf32>
    %264 = vector.broadcast %253 : vector<8x1xf32> to vector<8x32xf32>
    %265 = arith.subf %249, %264 : vector<8x32xf32>
    %266 = vector.broadcast %263 : vector<8x1xf32> to vector<8x32xf32>
    %267 = arith.mulf %265, %266 : vector<8x32xf32>
    %268 = vector.broadcast %12 : vector<1x32xf32> to vector<8x32xf32>
    %269 = arith.mulf %267, %268 : vector<8x32xf32>
    %270 = vector.broadcast %13 : vector<1x32xf32> to vector<8x32xf32>
    %271 = arith.addf %269, %270 : vector<8x32xf32>
    %cst_110 = arith.constant dense<0.000000e+00> : vector<8x64xf32>
    %272 = tpu.matmul %271, %14, %cst_110 {dimension_numbers = #tpu.dot_dimension_numbers<[1], [0], [0], [1], [0, 0, 1, 1], [], []>} : vector<8x32xf32>, vector<32x64xf32>, vector<8x64xf32> -> vector<8x64xf32>
    %273 = vector.broadcast %15 : vector<1x64xf32> to vector<8x64xf32>
    %274 = arith.addf %272, %273 : vector<8x64xf32>
    %cst_111 = arith.constant 0.000000e+00 : f32
    %275 = vector.broadcast %cst_111 : f32 to vector<8x64xf32>
    %276 = arith.maximumf %274, %275 : vector<8x64xf32>
    %cst_112 = arith.constant dense<0.000000e+00> : vector<8x32xf32>
    %277 = tpu.matmul %276, %16, %cst_112 {dimension_numbers = #tpu.dot_dimension_numbers<[1], [0], [0], [1], [0, 0, 1, 1], [], []>} : vector<8x64xf32>, vector<64x32xf32>, vector<8x32xf32> -> vector<8x32xf32>
    %278 = vector.broadcast %17 : vector<1x32xf32> to vector<8x32xf32>
    %279 = arith.addf %277, %278 : vector<8x32xf32>
    %280 = arith.addf %271, %279 : vector<8x32xf32>
    %cst_113 = arith.constant dense<0.000000e+00> : vector<8xf32>
    %281 = vector.multi_reduction <add>, %280, %cst_113 [1] : vector<8x32xf32> to vector<8xf32>
    %282 = vector.shape_cast %281 : vector<8xf32> to vector<8x1xf32>
    %cst_114 = arith.constant 3.200000e+01 : f32
    %283 = vector.broadcast %cst_114 : f32 to vector<8x1xf32>
    %284 = arith.divf %282, %283 : vector<8x1xf32>
    %285 = vector.broadcast %284 : vector<8x1xf32> to vector<8x32xf32>
    %286 = arith.subf %280, %285 : vector<8x32xf32>
    %287 = arith.mulf %286, %286 : vector<8x32xf32>
    %cst_115 = arith.constant dense<0.000000e+00> : vector<8xf32>
    %288 = vector.multi_reduction <add>, %287, %cst_115 [1] : vector<8x32xf32> to vector<8xf32>
    %289 = vector.shape_cast %288 : vector<8xf32> to vector<8x1xf32>
    %cst_116 = arith.constant 3.200000e+01 : f32
    %290 = vector.broadcast %cst_116 : f32 to vector<8x1xf32>
    %291 = arith.divf %289, %290 : vector<8x1xf32>
    %cst_117 = arith.constant 9.99999974E-6 : f32
    %292 = vector.broadcast %cst_117 : f32 to vector<8x1xf32>
    %293 = arith.addf %291, %292 : vector<8x1xf32>
    %294 = math.rsqrt %293 : vector<8x1xf32>
    %295 = vector.broadcast %284 : vector<8x1xf32> to vector<8x32xf32>
    %296 = arith.subf %280, %295 : vector<8x32xf32>
    %297 = vector.broadcast %294 : vector<8x1xf32> to vector<8x32xf32>
    %298 = arith.mulf %296, %297 : vector<8x32xf32>
    %299 = vector.broadcast %18 : vector<1x32xf32> to vector<8x32xf32>
    %300 = arith.mulf %298, %299 : vector<8x32xf32>
    %301 = vector.broadcast %19 : vector<1x32xf32> to vector<8x32xf32>
    %302 = arith.addf %300, %301 : vector<8x32xf32>
    %c1_118 = arith.constant 1 : index
    %c0_119 = arith.constant 0 : index
    %c0_120 = arith.constant 0 : index
    %303 = vector.load %arg18[%c1_118, %c0_119, %c0_120] : memref<2x8x32xf32, #tpu.memory_space<vmem>>, vector<1x8x32xf32>
    %304 = vector.shape_cast %303 : vector<1x8x32xf32> to vector<8x32xf32>
    %305 = vector.shape_cast %302 : vector<8x32xf32> to vector<1x8x32xf32>
    tpu.vector_store %arg18[%c1_118, %c0_119, %c0_120], %305 {strides = array<i32>} : memref<2x8x32xf32, #tpu.memory_space<vmem>>, vector<1x8x32xf32>,
    return
  }
}

</mosaic_0001>

<llo_original>
// kernel: tpu_custom_call.1
$region0: #{tpu_custom_call.1}
  #allocation0 [shape = 'u32[]', space=smem, size = 0x4, offset = 0x4, fixed_abs, tag = 'smem constant byte address 0x4 - core index']
  #allocation1 [shape = 'u32[144,128]{1,0:T(1,128)}', space=vmem, size = 0x12000, scoped, tag = 'internal scratch']
  %s0 = inlined_call_operand.hbm [shape: f32[2,8,32], index: 0, kind: input, shape index: {}]
  %s1 = inlined_call_operand.vmem [shape: f32[2,16,32], index: 1, kind: input, shape index: {}]
  %s2 = inlined_call_operand.vmem [shape: f32[32,32], index: 2, kind: input, shape index: {}]
  %s3 = inlined_call_operand.vmem [shape: f32[1,32], index: 3, kind: input, shape index: {}]
  %s4 = inlined_call_operand.vmem [shape: f32[32,32], index: 4, kind: input, shape index: {}]
  %s5 = inlined_call_operand.vmem [shape: f32[1,32], index: 5, kind: input, shape index: {}]
  %s6 = inlined_call_operand.hbm [shape: f32[32,32], index: 6, kind: input, shape index: {}]
  %s7 = inlined_call_operand.vmem [shape: f32[1,32], index: 7, kind: input, shape index: {}]
  %s8 = inlined_call_operand.hbm [shape: f32[32,32], index: 8, kind: input, shape index: {}]
  %s9 = inlined_call_operand.vmem [shape: f32[1,32], index: 9, kind: input, shape index: {}]
  %s10 = inlined_call_operand.vmem [shape: f32[1,32], index: 10, kind: input, shape index: {}]
  %s11 = inlined_call_operand.vmem [shape: f32[1,32], index: 11, kind: input, shape index: {}]
  %s12 = inlined_call_operand.hbm [shape: f32[32,64], index: 12, kind: input, shape index: {}]
  %s13 = inlined_call_operand.vmem [shape: f32[1,64], index: 13, kind: input, shape index: {}]
  %s14 = inlined_call_operand.vmem [shape: f32[64,32], index: 14, kind: input, shape index: {}]
  %s15 = inlined_call_operand.vmem [shape: f32[1,32], index: 15, kind: input, shape index: {}]
  %s16 = inlined_call_operand.vmem [shape: f32[1,32], index: 16, kind: input, shape index: {}]
  %s17 = inlined_call_operand.vmem [shape: f32[1,32], index: 17, kind: input, shape index: {}]
  %s18 = inlined_call_operand.hbm [shape: f32[2,8,32], index: 18, kind: output, shape index: {}]
  %s19 = sld [smem:[#allocation0]]
  $region98: #{tpu_custom_call.1} parent=0
    _
  %s21 = ssub.s32 1, %s19
  %s22 = scalar_select 0, %s21, %s19
  $region1: #{tpu_custom_call.1} parent=0
    #allocation2 [shape = 'u8[8192]{0}', space=vmem, size = 0x2000, scoped, tag = 'input window, operand 0, single buffered']
    #allocation3 [shape = 's32[1]{0}', space=sflag, size = 0x4, scoped, tag = 'scoped memory for tpu_custom_call.1']
    #allocation4 [shape = 's32[1]{0}', space=sflag, size = 0x4, scoped, tag = 'scoped memory for tpu_custom_call.1']
    #allocation5 [shape = 'u8[16384]{0}', space=vmem, size = 0x4000, scoped, tag = 'input window, operand 6, single buffered']
    #allocation6 [shape = 's32[1]{0}', space=sflag, size = 0x4, scoped, tag = 'scoped memory for tpu_custom_call.1']
    #allocation7 [shape = 'u8[16384]{0}', space=vmem, size = 0x4000, scoped, tag = 'input window, operand 8, single buffered']
    #allocation8 [shape = 'u8[16384]{0}', space=vmem, size = 0x4000, scoped, tag = 'input window, operand 12, single buffered']
    #allocation9 [shape = 's32[1]{0}', space=sflag, size = 0x4, scoped, tag = 'scoped memory for tpu_custom_call.1']
    #allocation10 [shape = 'u8[8192]{0}', space=vmem, size = 0x2000, scoped, tag = 'output window, operand 0, single buffered']
    %23 = vsyncpa [#allocation3], 0
    %24 = vsyncpa [#allocation6], 0
    %25 = vsyncpa [#allocation9], 0
    %26 = vsyncpa [#allocation4], 0
    // Predicated region
    $region2: #{tpu_custom_call.1} parent=1 // pred_check
      _
    $region3: #{tpu_custom_call.1} parent=1 // pred_check_branch
      %28 = sbr.rel (0) target = $region5
    $region4: #{tpu_custom_call.1} parent=1 // pred_region
      %s30 = ssub.s32 256, 256
      %31 = vsyncadd [#allocation3], %s30
      %s32 = sshll.u32 [#allocation2], 4
      %s33 = int_to_ptr.vmem [resolvable:$true] %s32
      %38 = dma.hbm_to_vmem [thread:$0]  %s0, 256, %s33, [#allocation3], 128, 128, 8
    $region5: #{tpu_custom_call.1} parent=1 // pred_fallthru
      _
    // Predicated region
    $region6: #{tpu_custom_call.1} parent=1 // pred_check
      _
    $region7: #{tpu_custom_call.1} parent=1 // pred_check_branch
      %40 = sbr.rel (0) target = $region9
    $region8: #{tpu_custom_call.1} parent=1 // pred_region
      _
    $region9: #{tpu_custom_call.1} parent=1 // pred_fallthru
      _
    // Predicated region
    $region10: #{tpu_custom_call.1} parent=1 // pred_check
      _
    $region11: #{tpu_custom_call.1} parent=1 // pred_check_branch
      %42 = sbr.rel (0) target = $region13
    $region12: #{tpu_custom_call.1} parent=1 // pred_region
      _
    $region13: #{tpu_custom_call.1} parent=1 // pred_fallthru
      _
    // Predicated region
    $region14: #{tpu_custom_call.1} parent=1 // pred_check
      _
    $region15: #{tpu_custom_call.1} parent=1 // pred_check_branch
      %44 = sbr.rel (0) target = $region17
    $region16: #{tpu_custom_call.1} parent=1 // pred_region
      _
    $region17: #{tpu_custom_call.1} parent=1 // pred_fallthru
      _
    // Predicated region
    $region18: #{tpu_custom_call.1} parent=1 // pred_check
      _
    $region19: #{tpu_custom_call.1} parent=1 // pred_check_branch
      %46 = sbr.rel (0) target = $region21
    $region20: #{tpu_custom_call.1} parent=1 // pred_region
      _
    $region21: #{tpu_custom_call.1} parent=1 // pred_fallthru
      _
    // Predicated region
    $region22: #{tpu_custom_call.1} parent=1 // pred_check
      _
    $region23: #{tpu_custom_call.1} parent=1 // pred_check_branch
      %48 = sbr.rel (0) target = $region25
    $region24: #{tpu_custom_call.1} parent=1 // pred_region
      _
    $region25: #{tpu_custom_call.1} parent=1 // pred_fallthru
      _
    // Predicated region
    $region26: #{tpu_custom_call.1} parent=1 // pred_check
      _
    $region27: #{tpu_custom_call.1} parent=1 // pred_check_branch
      %50 = sbr.rel (0) target = $region29
    $region28: #{tpu_custom_call.1} parent=1 // pred_region
      %s52 = ssub.s32 512, 512
      %53 = vsyncadd [#allocation6], %s52
      %s54 = sshll.u32 [#allocation5], 4
      %s55 = int_to_ptr.vmem [resolvable:$true] %s54
      %60 = dma.hbm_to_vmem [thread:$0]  %s6, 512, %s55, [#allocation6], 128, 128, 8
    $region29: #{tpu_custom_call.1} parent=1 // pred_fallthru
      _
    // Predicated region
    $region30: #{tpu_custom_call.1} parent=1 // pred_check
      _
    $region31: #{tpu_custom_call.1} parent=1 // pred_check_branch
      %62 = sbr.rel (0) target = $region33
    $region32: #{tpu_custom_call.1} parent=1 // pred_region
      _
    $region33: #{tpu_custom_call.1} parent=1 // pred_fallthru
      _
    // Predicated region
    $region34: #{tpu_custom_call.1} parent=1 // pred_check
      _
    $region35: #{tpu_custom_call.1} parent=1 // pred_check_branch
      %64 = sbr.rel (0) target = $region37
    $region36: #{tpu_custom_call.1} parent=1 // pred_region
      %s66 = ssub.s32 512, 512
      %67 = vsyncadd [#allocation6], %s66
      %s68 = sshll.u32 [#allocation7], 4
      %s69 = int_to_ptr.vmem [resolvable:$true] %s68
      %74 = dma.hbm_to_vmem [thread:$0]  %s8, 512, %s69, [#allocation6], 128, 128, 8
    $region37: #{tpu_custom_call.1} parent=1 // pred_fallthru
      _
    // Predicated region
    $region38: #{tpu_custom_call.1} parent=1 // pred_check
      _
    $region39: #{tpu_custom_call.1} parent=1 // pred_check_branch
      %76 = sbr.rel (0) target = $region41
    $region40: #{tpu_custom_call.1} parent=1 // pred_region
      _
    $region41: #{tpu_custom_call.1} parent=1 // pred_fallthru
      _
    // Predicated region
    $region42: #{tpu_custom_call.1} parent=1 // pred_check
      _
    $region43: #{tpu_custom_call.1} parent=1 // pred_check_branch
      %78 = sbr.rel (0) target = $region45
    $region44: #{tpu_custom_call.1} parent=1 // pred_region
      _
    $region45: #{tpu_custom_call.1} parent=1 // pred_fallthru
      _
    // Predicated region
    $region46: #{tpu_custom_call.1} parent=1 // pred_check
      _
    $region47: #{tpu_custom_call.1} parent=1 // pred_check_branch
      %80 = sbr.rel (0) target = $region49
    $region48: #{tpu_custom_call.1} parent=1 // pred_region
      _
    $region49: #{tpu_custom_call.1} parent=1 // pred_fallthru
      _
    // Predicated region
    $region50: #{tpu_custom_call.1} parent=1 // pred_check
      _
    $region51: #{tpu_custom_call.1} parent=1 // pred_check_branch
      %82 = sbr.rel (0) target = $region53
    $region52: #{tpu_custom_call.1} parent=1 // pred_region
      %s84 = ssub.s32 512, 512
      %85 = vsyncadd [#allocation9], %s84
      %s86 = sshll.u32 [#allocation8], 4
      %s87 = int_to_ptr.vmem [resolvable:$true] %s86
      %92 = dma.hbm_to_vmem [thread:$0]  %s12, 512, %s87, [#allocation9], 128, 128, 8
    $region53: #{tpu_custom_call.1} parent=1 // pred_fallthru
      _
    // Predicated region
    $region54: #{tpu_custom_call.1} parent=1 // pred_check
      _
    $region55: #{tpu_custom_call.1} parent=1 // pred_check_branch
      %94 = sbr.rel (0) target = $region57
    $region56: #{tpu_custom_call.1} parent=1 // pred_region
      _
    $region57: #{tpu_custom_call.1} parent=1 // pred_fallthru
      _
    // Predicated region
    $region58: #{tpu_custom_call.1} parent=1 // pred_check
      _
    $region59: #{tpu_custom_call.1} parent=1 // pred_check_branch
      %96 = sbr.rel (0) target = $region61
    $region60: #{tpu_custom_call.1} parent=1 // pred_region
      _
    $region61: #{tpu_custom_call.1} parent=1 // pred_fallthru
      _
    // Predicated region
    $region62: #{tpu_custom_call.1} parent=1 // pred_check
      _
    $region63: #{tpu_custom_call.1} parent=1 // pred_check_branch
      %98 = sbr.rel (0) target = $region65
    $region64: #{tpu_custom_call.1} parent=1 // pred_region
      _
    $region65: #{tpu_custom_call.1} parent=1 // pred_fallthru
      _
    // Predicated region
    $region66: #{tpu_custom_call.1} parent=1 // pred_check
      _
    $region67: #{tpu_custom_call.1} parent=1 // pred_check_branch
      %100 = sbr.rel (0) target = $region69
    $region68: #{tpu_custom_call.1} parent=1 // pred_region
      _
    $region69: #{tpu_custom_call.1} parent=1 // pred_fallthru
      _
    // Predicated region
    $region70: #{tpu_custom_call.1} parent=1 // pred_check
      _
    $region71: #{tpu_custom_call.1} parent=1 // pred_check_branch
      %102 = sbr.rel (0) target = $region73
    $region72: #{tpu_custom_call.1} parent=1 // pred_region
      _
    $region73: #{tpu_custom_call.1} parent=1 // pred_fallthru
      _
    // Predicated region
    $region74: #{tpu_custom_call.1} parent=1 // pred_check
      _
    $region75: #{tpu_custom_call.1} parent=1 // pred_check_branch
      %104 = sbr.rel (0) target = $region77
    $region76: #{tpu_custom_call.1} parent=1 // pred_region
      %105 = dma.done [#allocation3], 256
    $region77: #{tpu_custom_call.1} parent=1 // pred_fallthru
      _
    // Predicated region
    $region78: #{tpu_custom_call.1} parent=1 // pred_check
      _
    $region79: #{tpu_custom_call.1} parent=1 // pred_check_branch
      %107 = sbr.rel (0) target = $region81
    $region80: #{tpu_custom_call.1} parent=1 // pred_region
      %108 = dma.done [#allocation6], 512
    $region81: #{tpu_custom_call.1} parent=1 // pred_fallthru
      _
    // Predicated region
    $region82: #{tpu_custom_call.1} parent=1 // pred_check
      _
    $region83: #{tpu_custom_call.1} parent=1 // pred_check_branch
      %110 = sbr.rel (0) target = $region85
    $region84: #{tpu_custom_call.1} parent=1 // pred_region
      %111 = dma.done [#allocation6], 512
    $region85: #{tpu_custom_call.1} parent=1 // pred_fallthru
      _
    // Predicated region
    $region86: #{tpu_custom_call.1} parent=1 // pred_check
      _
    $region87: #{tpu_custom_call.1} parent=1 // pred_check_branch
      %113 = sbr.rel (0) target = $region89
    $region88: #{tpu_custom_call.1} parent=1 // pred_region
      %114 = dma.done [#allocation9], 512
    $region89: #{tpu_custom_call.1} parent=1 // pred_fallthru
      _
    %v115 = vld [vmem:[%s2] sm:$0xff]
    %v116 = vld [vmem:[%s2 + $0x8] sm:$0xff]
    %v117 = vld [vmem:[%s2 + $0x10] sm:$0xff]
    %v118 = vld [vmem:[%s2 + $0x18] sm:$0xff]
    %v119 = vmul.f32 %v115, 0.35355338
    %v120 = vmul.f32 %v116, 0.35355338
    %v121 = vmul.f32 %v117, 0.35355338
    %v122 = vmul.f32 %v118, 0.35355338
    %v123 = vld [vmem:[%s3] sm:$0x1]
    %v124 = vmul.f32 %v123, 0.35355338
    %v125 = vld [vmem:[%s4] sm:$0xff]
    %v126 = vld [vmem:[%s4 + $0x8] sm:$0xff]
    %v127 = vld [vmem:[%s4 + $0x10] sm:$0xff]
    %v128 = vld [vmem:[%s4 + $0x18] sm:$0xff]
    %v129 = vld [vmem:[%s5] sm:$0x1]
    %v130 = vld [vmem:[#allocation5] sm:$0xff]
    %v131 = vld [vmem:[#allocation5 + $0x8] sm:$0xff]
    %v132 = vld [vmem:[#allocation5 + $0x10] sm:$0xff]
    %v133 = vld [vmem:[#allocation5 + $0x18] sm:$0xff]
    %v134 = vld [vmem:[%s7] sm:$0x1]
    %v135 = vld [vmem:[#allocation7] sm:$0xff]
    %v136 = vld [vmem:[#allocation7 + $0x8] sm:$0xff]
    %v137 = vld [vmem:[#allocation7 + $0x10] sm:$0xff]
    %v138 = vld [vmem:[#allocation7 + $0x18] sm:$0xff]
    %v139 = vld [vmem:[%s9] sm:$0x1]
    %v140 = vld [vmem:[%s10] sm:$0x1]
    %v141 = vld [vmem:[%s11] sm:$0x1]
    %v142 = vld [vmem:[#allocation8] sm:$0xff]
    %v143 = vld [vmem:[#allocation8 + $0x8] sm:$0xff]
    %v144 = vld [vmem:[#allocation8 + $0x10] sm:$0xff]
    %v145 = vld [vmem:[#allocation8 + $0x18] sm:$0xff]
    %v146 = vld [vmem:[%s13] sm:$0x1]
    %v147 = vld [vmem:[%s14] sm:$0xff]
    %v148 = vld [vmem:[%s14 + $0x8] sm:$0xff]
    %v149 = vld [vmem:[%s14 + $0x10] sm:$0xff]
    %v150 = vld [vmem:[%s14 + $0x18] sm:$0xff]
    %v151 = vld [vmem:[%s14 + $0x20] sm:$0xff]
    %v152 = vld [vmem:[%s14 + $0x28] sm:$0xff]
    %v153 = vld [vmem:[%s14 + $0x30] sm:$0xff]
    %v154 = vld [vmem:[%s14 + $0x38] sm:$0xff]
    %v155 = vld [vmem:[%s15] sm:$0x1]
    %v156 = vld [vmem:[%s16] sm:$0x1]
    %v157 = vld [vmem:[%s17] sm:$0x1]
    %v158 = vld [vmem:[#allocation2] sm:$0xff]
    %v159 = vld [vmem:[%s1] sm:$0xff]
    %v160 = vld [vmem:[%s1 + $0x8] sm:$0xff]
    %v162 = vlaneseq
    %v163 = vshrl.u32 %v162, 7
    %v164 = vsub.s32 0, %v163
    %v165 = vrot.slane %v124, %v164
    %vm167 = vcmask 261120
    %v169 = vsel %vm167, %v158, 0
    %171 = vmatprep.subr.mxu0 0.0
    %172 = vmatpush1.msra.mxu0 %v119
    %173 = vmatprep.subr.mxu0 0.0
    %174 = vmatpush1.msra.mxu0 %v120
    %175 = vmatprep.subr.mxu0 0.0
    %176 = vmatpush1.msra.mxu0 %v121
    %177 = vmatprep.subr.mxu0 0.0
    %178 = vmatpush1.msra.mxu0 %v122
    %179 = vmatprep.subr.mxu0 0.0
    %180 = vmatpush1.msra.mxu0 0.0
    %181 = vmatprep.subr.mxu0 0.0
    %182 = vmatpush1.msra.mxu0 0.0
    %183 = vmatprep.subr.mxu0 0.0
    %184 = vmatpush1.msra.mxu0 0.0
    %185 = vmatprep.subr.mxu0 0.0
    %186 = vmatpush1.msra.mxu0 0.0
    %187 = vmatprep.subr.mxu0 0.0
    %188 = vmatpush1.msra.mxu0 0.0
    %189 = vmatprep.subr.mxu0 0.0
    %190 = vmatpush1.msra.mxu0 0.0
    %191 = vmatprep.subr.mxu0 0.0
    %192 = vmatpush1.msra.mxu0 0.0
    %193 = vmatprep.subr.mxu0 0.0
    %194 = vmatpush1.msra.mxu0 0.0
    %195 = vmatprep.subr.mxu0 0.0
    %196 = vmatpush1.msra.mxu0 0.0
    %197 = vmatprep.subr.mxu0 0.0
    %198 = vmatpush1.msra.mxu0 0.0
    %199 = vmatprep.subr.mxu0 0.0
    %200 = vmatpush1.msra.mxu0 0.0
    %201 = vmatprep.subr.mxu0 0.0
    %202 = vmatpush1.msra.mxu0 0.0
    %203 = vmatprep.subr.mxu0 0.0
    %204 = vmatpush1.msra.mxu0 0.0
    %205 = vmatprep.subr.mxu0 0.0
    %206 = vmatpush1.msra.mxu0 0.0
    %207 = vmatprep.subr.mxu0 0.0
    %208 = vmatpush1.msra.mxu0 0.0
    %209 = vmatprep.subr.mxu0 0.0
    %210 = vmatpush1.msra.mxu0 0.0
    %211 = vmatprep.subr.mxu0 0.0
    %212 = vmatpush1.msra.mxu0 0.0
    %213 = vmatprep.subr.mxu0 0.0
    %214 = vmatpush1.msra.mxu0 0.0
    %215 = vmatprep.subr.mxu0 0.0
    %216 = vmatpush1.msra.mxu0 0.0
    %217 = vmatprep.subr.mxu0 0.0
    %218 = vmatpush1.msra.mxu0 0.0
    %219 = vmatprep.subr.mxu0 0.0
    %220 = vmatpush1.msra.mxu0 0.0
    %221 = vmatprep.subr.mxu0 0.0
    %222 = vmatpush1.msra.mxu0 0.0
    %223 = vmatprep.subr.mxu0 0.0
    %224 = vmatpush1.msra.mxu0 0.0
    %225 = vmatprep.subr.mxu0 0.0
    %226 = vmatpush1.msra.mxu0 0.0
    %227 = vmatprep.subr.mxu0 0.0
    %228 = vmatpush1.msra.mxu0 0.0
    %229 = vmatprep.subr.mxu0 0.0
    %230 = vmatpush1.msra.mxu0 0.0
    %231 = vmatprep.subr.mxu0 0.0
    %232 = vmatpush1.msra.mxu0 0.0
    %233 = vmatprep.subr.mxu0 0.0
    %234 = vmatpush1.msra.mxu0 0.0
    %235 = vmatprep.mubr.f32.mxu0 0.0
    %236 = vmatmul.mubr.f32.gmra.mrb[0].mxu0 %v169
    %v237 = vpop.f32.mrb[0].mxu0
    %v238 = vadd.f32 %v165, %v237
    %v239 = vpop.f32.mrb[0].mxu0
    %240 = vdwg.mxu0
    %v242 = vlaneseq
    %v243 = vshrl.u32 %v242, 7
    %v244 = vsub.s32 0, %v243
    %v245 = vrot.slane %v129, %v244
    %v248 = vsel %vm167, %v159, 0
    %v251 = vsel %vm167, %v160, 0
    %253 = vmatprep.subr.mxu0 0.0
    %254 = vmatpush1.msra.mxu0 %v125
    %255 = vmatprep.subr.mxu0 0.0
    %256 = vmatpush1.msra.mxu0 %v126
    %257 = vmatprep.subr.mxu0 0.0
    %258 = vmatpush1.msra.mxu0 %v127
    %259 = vmatprep.subr.mxu0 0.0
    %260 = vmatpush1.msra.mxu0 %v128
    %261 = vmatprep.subr.mxu0 0.0
    %262 = vmatpush1.msra.mxu0 0.0
    %263 = vmatprep.subr.mxu0 0.0
    %264 = vmatpush1.msra.mxu0 0.0
    %265 = vmatprep.subr.mxu0 0.0
    %266 = vmatpush1.msra.mxu0 0.0
    %267 = vmatprep.subr.mxu0 0.0
    %268 = vmatpush1.msra.mxu0 0.0
    %269 = vmatprep.subr.mxu0 0.0
    %270 = vmatpush1.msra.mxu0 0.0
    %271 = vmatprep.subr.mxu0 0.0
    %272 = vmatpush1.msra.mxu0 0.0
    %273 = vmatprep.subr.mxu0 0.0
    %274 = vmatpush1.msra.mxu0 0.0
    %275 = vmatprep.subr.mxu0 0.0
    %276 = vmatpush1.msra.mxu0 0.0
    %277 = vmatprep.subr.mxu0 0.0
    %278 = vmatpush1.msra.mxu0 0.0
    %279 = vmatprep.subr.mxu0 0.0
    %280 = vmatpush1.msra.mxu0 0.0
    %281 = vmatprep.subr.mxu0 0.0
    %282 = vmatpush1.msra.mxu0 0.0
    %283 = vmatprep.subr.mxu0 0.0
    %284 = vmatpush1.msra.mxu0 0.0
    %285 = vmatprep.subr.mxu0 0.0
    %286 = vmatpush1.msra.mxu0 0.0
    %287 = vmatprep.subr.mxu0 0.0
    %288 = vmatpush1.msra.mxu0 0.0
    %289 = vmatprep.subr.mxu0 0.0
    %290 = vmatpush1.msra.mxu0 0.0
    %291 = vmatprep.subr.mxu0 0.0
    %292 = vmatpush1.msra.mxu0 0.0
    %293 = vmatprep.subr.mxu0 0.0
    %294 = vmatpush1.msra.mxu0 0.0
    %295 = vmatprep.subr.mxu0 0.0
    %296 = vmatpush1.msra.mxu0 0.0
    %297 = vmatprep.subr.mxu0 0.0
    %298 = vmatpush1.msra.mxu0 0.0
    %299 = vmatprep.subr.mxu0 0.0
    %300 = vmatpush1.msra.mxu0 0.0
    %301 = vmatprep.subr.mxu0 0.0
    %302 = vmatpush1.msra.mxu0 0.0
    %303 = vmatprep.subr.mxu0 0.0
    %304 = vmatpush1.msra.mxu0 0.0
    %305 = vmatprep.subr.mxu0 0.0
    %306 = vmatpush1.msra.mxu0 0.0
    %307 = vmatprep.subr.mxu0 0.0
    %308 = vmatpush1.msra.mxu0 0.0
    %309 = vmatprep.subr.mxu0 0.0
    %310 = vmatpush1.msra.mxu0 0.0
    %311 = vmatprep.subr.mxu0 0.0
    %312 = vmatpush1.msra.mxu0 0.0
    %313 = vmatprep.subr.mxu0 0.0
    %314 = vmatpush1.msra.mxu0 0.0
    %315 = vmatprep.subr.mxu0 0.0
    %316 = vmatpush1.msra.mxu0 0.0
    %317 = vmatprep.mubr.f32.mxu0 0.0
    %318 = vmatmul.mubr.f32.gmra.mrb[0].mxu0 %v248
    %v319 = vpop.f32.mrb[0].mxu0
    %v320 = vadd.f32 %v245, %v319
    %v321 = vpop.f32.mrb[0].mxu0
    %322 = vmatprep.mubr.f32.mxu0 0.0
    %323 = vmatmul.mubr.f32.gmra.mrb[0].mxu0 %v251
    %v324 = vpop.f32.mrb[0].mxu0
    %v325 = vadd.f32 %v245, %v324
    %v326 = vpop.f32.mrb[0].mxu0
    %327 = vdwg.mxu0
    %v329 = vlaneseq
    %v330 = vshrl.u32 %v329, 7
    %v331 = vsub.s32 0, %v330
    %v332 = vrot.slane %v134, %v331
    %334 = vmatprep.subr.mxu0 0.0
    %335 = vmatpush1.msra.mxu0 %v130
    %336 = vmatprep.subr.mxu0 0.0
    %337 = vmatpush1.msra.mxu0 %v131
    %338 = vmatprep.subr.mxu0 0.0
    %339 = vmatpush1.msra.mxu0 %v132
    %340 = vmatprep.subr.mxu0 0.0
    %341 = vmatpush1.msra.mxu0 %v133
    %342 = vmatprep.subr.mxu0 0.0
    %343 = vmatpush1.msra.mxu0 0.0
    %344 = vmatprep.subr.mxu0 0.0
    %345 = vmatpush1.msra.mxu0 0.0
    %346 = vmatprep.subr.mxu0 0.0
    %347 = vmatpush1.msra.mxu0 0.0
    %348 = vmatprep.subr.mxu0 0.0
    %349 = vmatpush1.msra.mxu0 0.0
    %350 = vmatprep.subr.mxu0 0.0
    %351 = vmatpush1.msra.mxu0 0.0
    %352 = vmatprep.subr.mxu0 0.0
    %353 = vmatpush1.msra.mxu0 0.0
    %354 = vmatprep.subr.mxu0 0.0
    %355 = vmatpush1.msra.mxu0 0.0
    %356 = vmatprep.subr.mxu0 0.0
    %357 = vmatpush1.msra.mxu0 0.0
    %358 = vmatprep.subr.mxu0 0.0
    %359 = vmatpush1.msra.mxu0 0.0
    %360 = vmatprep.subr.mxu0 0.0
    %361 = vmatpush1.msra.mxu0 0.0
    %362 = vmatprep.subr.mxu0 0.0
    %363 = vmatpush1.msra.mxu0 0.0
    %364 = vmatprep.subr.mxu0 0.0
    %365 = vmatpush1.msra.mxu0 0.0
    %366 = vmatprep.subr.mxu0 0.0
    %367 = vmatpush1.msra.mxu0 0.0
    %368 = vmatprep.subr.mxu0 0.0
    %369 = vmatpush1.msra.mxu0 0.0
    %370 = vmatprep.subr.mxu0 0.0
    %371 = vmatpush1.msra.mxu0 0.0
    %372 = vmatprep.subr.mxu0 0.0
    %373 = vmatpush1.msra.mxu0 0.0
    %374 = vmatprep.subr.mxu0 0.0
    %375 = vmatpush1.msra.mxu0 0.0
    %376 = vmatprep.subr.mxu0 0.0
    %377 = vmatpush1.msra.mxu0 0.0
    %378 = vmatprep.subr.mxu0 0.0
    %379 = vmatpush1.msra.mxu0 0.0
    %380 = vmatprep.subr.mxu0 0.0
    %381 = vmatpush1.msra.mxu0 0.0
    %382 = vmatprep.subr.mxu0 0.0
    %383 = vmatpush1.msra.mxu0 0.0
    %384 = vmatprep.subr.mxu0 0.0
    %385 = vmatpush1.msra.mxu0 0.0
    %386 = vmatprep.subr.mxu0 0.0
    %387 = vmatpush1.msra.mxu0 0.0
    %388 = vmatprep.subr.mxu0 0.0
    %389 = vmatpush1.msra.mxu0 0.0
    %390 = vmatprep.subr.mxu0 0.0
    %391 = vmatpush1.msra.mxu0 0.0
    %392 = vmatprep.subr.mxu0 0.0
    %393 = vmatpush1.msra.mxu0 0.0
    %394 = vmatprep.subr.mxu0 0.0
    %395 = vmatpush1.msra.mxu0 0.0
    %396 = vmatprep.subr.mxu0 0.0
    %397 = vmatpush1.msra.mxu0 0.0
    %398 = vmatprep.mubr.f32.mxu0 0.0
    %399 = vmatmul.mubr.f32.gmra.mrb[0].mxu0 %v248
    %v400 = vpop.f32.mrb[0].mxu0
    %v401 = vadd.f32 %v332, %v400
    %v402 = vpop.f32.mrb[0].mxu0
    %403 = vmatprep.mubr.f32.mxu0 0.0
    %404 = vmatmul.mubr.f32.gmra.mrb[0].mxu0 %v251
    %v405 = vpop.f32.mrb[0].mxu0
    %v406 = vadd.f32 %v332, %v405
    %v407 = vpop.f32.mrb[0].mxu0
    %408 = vdwg.mxu0
    %vm409 = vcmask 64512
    %v411 = vsel %vm409, %v238, 0
    %v414 = vsel %vm409, %v320, 0
    %v417 = vsel %vm409, %v325, 0
    %419 = vmatprep.subr.mxu0 0.0
    %420 = vmatpush1.xpose.msra.mxu0 %v414
    %421 = vmatprep.subr.mxu0 0.0
    %422 = vmatpush1.xpose.msra.mxu0 %v417
    %423 = vmatprep.subr.mxu0 0.0
    %424 = vmatpush1.xpose.msra.mxu0 0.0
    %425 = vmatprep.subr.mxu0 0.0
    %426 = vmatpush1.xpose.msra.mxu0 0.0
    %427 = vmatprep.subr.mxu0 0.0
    %428 = vmatpush1.xpose.msra.mxu0 0.0
    %429 = vmatprep.subr.mxu0 0.0
    %430 = vmatpush1.xpose.msra.mxu0 0.0
    %431 = vmatprep.subr.mxu0 0.0
    %432 = vmatpush1.xpose.msra.mxu0 0.0
    %433 = vmatprep.subr.mxu0 0.0
    %434 = vmatpush1.xpose.msra.mxu0 0.0
    %435 = vmatprep.subr.mxu0 0.0
    %436 = vmatpush1.xpose.msra.mxu0 0.0
    %437 = vmatprep.subr.mxu0 0.0
    %438 = vmatpush1.xpose.msra.mxu0 0.0
    %439 = vmatprep.subr.mxu0 0.0
    %440 = vmatpush1.xpose.msra.mxu0 0.0
    %441 = vmatprep.subr.mxu0 0.0
    %442 = vmatpush1.xpose.msra.mxu0 0.0
    %443 = vmatprep.subr.mxu0 0.0
    %444 = vmatpush1.xpose.msra.mxu0 0.0
    %445 = vmatprep.subr.mxu0 0.0
    %446 = vmatpush1.xpose.msra.mxu0 0.0
    %447 = vmatprep.subr.mxu0 0.0
    %448 = vmatpush1.xpose.msra.mxu0 0.0
    %449 = vmatprep.subr.mxu0 0.0
    %450 = vmatpush1.xpose.msra.mxu0 0.0
    %451 = vmatprep.subr.mxu0 0.0
    %452 = vmatpush1.xpose.msra.mxu0 0.0
    %453 = vmatprep.subr.mxu0 0.0
    %454 = vmatpush1.xpose.msra.mxu0 0.0
    %455 = vmatprep.subr.mxu0 0.0
    %456 = vmatpush1.xpose.msra.mxu0 0.0
    %457 = vmatprep.subr.mxu0 0.0
    %458 = vmatpush1.xpose.msra.mxu0 0.0
    %459 = vmatprep.subr.mxu0 0.0
    %460 = vmatpush1.xpose.msra.mxu0 0.0
    %461 = vmatprep.subr.mxu0 0.0
    %462 = vmatpush1.xpose.msra.mxu0 0.0
    %463 = vmatprep.subr.mxu0 0.0
    %464 = vmatpush1.xpose.msra.mxu0 0.0
    %465 = vmatprep.subr.mxu0 0.0
    %466 = vmatpush1.xpose.msra.mxu0 0.0
    %467 = vmatprep.subr.mxu0 0.0
    %468 = vmatpush1.xpose.msra.mxu0 0.0
    %469 = vmatprep.subr.mxu0 0.0
    %470 = vmatpush1.xpose.msra.mxu0 0.0
    %471 = vmatprep.subr.mxu0 0.0
    %472 = vmatpush1.xpose.msra.mxu0 0.0
    %473 = vmatprep.subr.mxu0 0.0
    %474 = vmatpush1.xpose.msra.mxu0 0.0
    %475 = vmatprep.subr.mxu0 0.0
    %476 = vmatpush1.xpose.msra.mxu0 0.0
    %477 = vmatprep.subr.mxu0 0.0
    %478 = vmatpush1.xpose.msra.mxu0 0.0
    %479 = vmatprep.subr.mxu0 0.0
    %480 = vmatpush1.xpose.msra.mxu0 0.0
    %481 = vmatprep.subr.mxu0 0.0
    %482 = vmatpush1.xpose.msra.mxu0 0.0
    %483 = vmatprep.mubr.f32.mxu0 0.0
    %484 = vmatmul.mubr.f32.gmra.mrb[0].mxu0 %v411
    %v485 = vpop.f32.mrb[0].mxu0
    %v486 = vadd.f32 0.0, %v485
    %v487 = vpop.f32.mrb[0].mxu0
    %488 = vdwg.mxu0
    %vm489 = vcmask 130048
    %v490 = vsel %vm489, %v486, -inf
    %491 = vmax.xlane.f32.xlu0 %v490
    %v492 = vpop.xlane.xlu0 %491
    %v493 = vsub.f32 %v486, %v492
    %v494 = vmul.f32 %v493, 1.442695
    %v495 = vpow.pop %v494
    %v496 = vsel %vm489, %v495, 0.0
    %497 = vadd.xlane.f32.xlu0 %v496
    %v498 = vpop.xlane.xlu0 %497
    %v499 = vrcp.pop %v498
    %v500 = vmul.f32 %v495, %v499
    %v502 = vsel %vm489, %v500, 0
    %504 = vmatprep.subr.mxu0 0.0
    %505 = vmatpush1.msra.mxu0 %v401
    %506 = vmatprep.subr.mxu0 0.0
    %507 = vmatpush1.msra.mxu0 %v406
    %508 = vmatprep.subr.mxu0 0.0
    %509 = vmatpush1.msra.mxu0 0.0
    %510 = vmatprep.subr.mxu0 0.0
    %511 = vmatpush1.msra.mxu0 0.0
    %512 = vmatprep.subr.mxu0 0.0
    %513 = vmatpush1.msra.mxu0 0.0
    %514 = vmatprep.subr.mxu0 0.0
    %515 = vmatpush1.msra.mxu0 0.0
    %516 = vmatprep.subr.mxu0 0.0
    %517 = vmatpush1.msra.mxu0 0.0
    %518 = vmatprep.subr.mxu0 0.0
    %519 = vmatpush1.msra.mxu0 0.0
    %520 = vmatprep.subr.mxu0 0.0
    %521 = vmatpush1.msra.mxu0 0.0
    %522 = vmatprep.subr.mxu0 0.0
    %523 = vmatpush1.msra.mxu0 0.0
    %524 = vmatprep.subr.mxu0 0.0
    %525 = vmatpush1.msra.mxu0 0.0
    %526 = vmatprep.subr.mxu0 0.0
    %527 = vmatpush1.msra.mxu0 0.0
    %528 = vmatprep.subr.mxu0 0.0
    %529 = vmatpush1.msra.mxu0 0.0
    %530 = vmatprep.subr.mxu0 0.0
    %531 = vmatpush1.msra.mxu0 0.0
    %532 = vmatprep.subr.mxu0 0.0
    %533 = vmatpush1.msra.mxu0 0.0
    %534 = vmatprep.subr.mxu0 0.0
    %535 = vmatpush1.msra.mxu0 0.0
    %536 = vmatprep.subr.mxu0 0.0
    %537 = vmatpush1.msra.mxu0 0.0
    %538 = vmatprep.subr.mxu0 0.0
    %539 = vmatpush1.msra.mxu0 0.0
    %540 = vmatprep.subr.mxu0 0.0
    %541 = vmatpush1.msra.mxu0 0.0
    %542 = vmatprep.subr.mxu0 0.0
    %543 = vmatpush1.msra.mxu0 0.0
    %544 = vmatprep.subr.mxu0 0.0
    %545 = vmatpush1.msra.mxu0 0.0
    %546 = vmatprep.subr.mxu0 0.0
    %547 = vmatpush1.msra.mxu0 0.0
    %548 = vmatprep.subr.mxu0 0.0
    %549 = vmatpush1.msra.mxu0 0.0
    %550 = vmatprep.subr.mxu0 0.0
    %551 = vmatpush1.msra.mxu0 0.0
    %552 = vmatprep.subr.mxu0 0.0
    %553 = vmatpush1.msra.mxu0 0.0
    %554 = vmatprep.subr.mxu0 0.0
    %555 = vmatpush1.msra.mxu0 0.0
    %556 = vmatprep.subr.mxu0 0.0
    %557 = vmatpush1.msra.mxu0 0.0
    %558 = vmatprep.subr.mxu0 0.0
    %559 = vmatpush1.msra.mxu0 0.0
    %560 = vmatprep.subr.mxu0 0.0
    %561 = vmatpush1.msra.mxu0 0.0
    %562 = vmatprep.subr.mxu0 0.0
    %563 = vmatpush1.msra.mxu0 0.0
    %564 = vmatprep.subr.mxu0 0.0
    %565 = vmatpush1.msra.mxu0 0.0
    %566 = vmatprep.subr.mxu0 0.0
    %567 = vmatpush1.msra.mxu0 0.0
    %568 = vmatprep.mubr.f32.mxu0 0.0
    %569 = vmatmul.mubr.f32.gmra.mrb[0].mxu0 %v502
    %v570 = vpop.f32.mrb[0].mxu0
    %v571 = vadd.f32 0.0, %v570
    %v572 = vpop.f32.mrb[0].mxu0
    %573 = vdwg.mxu0
    %574 = vrot.lane.b32.xlu0 %v238, 120
    %v575 = vpop.permute.xlu0 %574
    %576 = vrot.lane.b32.xlu0 %v320, 120
    %v577 = vpop.permute.xlu0 %576
    %578 = vrot.lane.b32.xlu0 %v325, 120
    %v579 = vpop.permute.xlu0 %578
    %v580 = vsel %vm409, %v575, 0
    %v582 = vsel %vm409, %v577, 0
    %v584 = vsel %vm409, %v579, 0
    %586 = vmatprep.subr.mxu0 0.0
    %587 = vmatpush1.xpose.msra.mxu0 %v582
    %588 = vmatprep.subr.mxu0 0.0
    %589 = vmatpush1.xpose.msra.mxu0 %v584
    %590 = vmatprep.subr.mxu0 0.0
    %591 = vmatpush1.xpose.msra.mxu0 0.0
    %592 = vmatprep.subr.mxu0 0.0
    %593 = vmatpush1.xpose.msra.mxu0 0.0
    %594 = vmatprep.subr.mxu0 0.0
    %595 = vmatpush1.xpose.msra.mxu0 0.0
    %596 = vmatprep.subr.mxu0 0.0
    %597 = vmatpush1.xpose.msra.mxu0 0.0
    %598 = vmatprep.subr.mxu0 0.0
    %599 = vmatpush1.xpose.msra.mxu0 0.0
    %600 = vmatprep.subr.mxu0 0.0
    %601 = vmatpush1.xpose.msra.mxu0 0.0
    %602 = vmatprep.subr.mxu0 0.0
    %603 = vmatpush1.xpose.msra.mxu0 0.0
    %604 = vmatprep.subr.mxu0 0.0
    %605 = vmatpush1.xpose.msra.mxu0 0.0
    %606 = vmatprep.subr.mxu0 0.0
    %607 = vmatpush1.xpose.msra.mxu0 0.0
    %608 = vmatprep.subr.mxu0 0.0
    %609 = vmatpush1.xpose.msra.mxu0 0.0
    %610 = vmatprep.subr.mxu0 0.0
    %611 = vmatpush1.xpose.msra.mxu0 0.0
    %612 = vmatprep.subr.mxu0 0.0
    %613 = vmatpush1.xpose.msra.mxu0 0.0
    %614 = vmatprep.subr.mxu0 0.0
    %615 = vmatpush1.xpose.msra.mxu0 0.0
    %616 = vmatprep.subr.mxu0 0.0
    %617 = vmatpush1.xpose.msra.mxu0 0.0
    %618 = vmatprep.subr.mxu0 0.0
    %619 = vmatpush1.xpose.msra.mxu0 0.0
    %620 = vmatprep.subr.mxu0 0.0
    %621 = vmatpush1.xpose.msra.mxu0 0.0
    %622 = vmatprep.subr.mxu0 0.0
    %623 = vmatpush1.xpose.msra.mxu0 0.0
    %624 = vmatprep.subr.mxu0 0.0
    %625 = vmatpush1.xpose.msra.mxu0 0.0
    %626 = vmatprep.subr.mxu0 0.0
    %627 = vmatpush1.xpose.msra.mxu0 0.0
    %628 = vmatprep.subr.mxu0 0.0
    %629 = vmatpush1.xpose.msra.mxu0 0.0
    %630 = vmatprep.subr.mxu0 0.0
    %631 = vmatpush1.xpose.msra.mxu0 0.0
    %632 = vmatprep.subr.mxu0 0.0
    %633 = vmatpush1.xpose.msra.mxu0 0.0
    %634 = vmatprep.subr.mxu0 0.0
    %635 = vmatpush1.xpose.msra.mxu0 0.0
    %636 = vmatprep.subr.mxu0 0.0
    %637 = vmatpush1.xpose.msra.mxu0 0.0
    %638 = vmatprep.subr.mxu0 0.0
    %639 = vmatpush1.xpose.msra.mxu0 0.0
    %640 = vmatprep.subr.mxu0 0.0
    %641 = vmatpush1.xpose.msra.mxu0 0.0
    %642 = vmatprep.subr.mxu0 0.0
    %643 = vmatpush1.xpose.msra.mxu0 0.0
    %644 = vmatprep.subr.mxu0 0.0
    %645 = vmatpush1.xpose.msra.mxu0 0.0
    %646 = vmatprep.subr.mxu0 0.0
    %647 = vmatpush1.xpose.msra.mxu0 0.0
    %648 = vmatprep.subr.mxu0 0.0
    %649 = vmatpush1.xpose.msra.mxu0 0.0
    %650 = vmatprep.mubr.f32.mxu0 0.0
    %651 = vmatmul.mubr.f32.gmra.mrb[0].mxu0 %v580
    %v652 = vpop.f32.mrb[0].mxu0
    %v653 = vadd.f32 0.0, %v652
    %v654 = vpop.f32.mrb[0].mxu0
    %655 = vdwg.mxu0
    %v656 = vsel %vm489, %v653, -inf
    %657 = vmax.xlane.f32.xlu0 %v656
    %v658 = vpop.xlane.xlu0 %657
    %v659 = vsub.f32 %v653, %v658
    %v660 = vmul.f32 %v659, 1.442695
    %v661 = vpow.pop %v660
    %v662 = vsel %vm489, %v661, 0.0
    %663 = vadd.xlane.f32.xlu0 %v662
    %v664 = vpop.xlane.xlu0 %663
    %v665 = vrcp.pop %v664
    %v666 = vmul.f32 %v661, %v665
    %669 = vrot.lane.b32.xlu0 %v401, 120
    %v670 = vpop.permute.xlu0 %669
    %671 = vrot.lane.b32.xlu0 %v406, 120
    %v672 = vpop.permute.xlu0 %671
    %v676 = vsel %vm489, %v666, 0
    %678 = vmatprep.subr.mxu0 0.0
    %679 = vmatpush1.msra.mxu0 %v670
    %680 = vmatprep.subr.mxu0 0.0
    %681 = vmatpush1.msra.mxu0 %v672
    %682 = vmatprep.subr.mxu0 0.0
    %683 = vmatpush1.msra.mxu0 0.0
    %684 = vmatprep.subr.mxu0 0.0
    %685 = vmatpush1.msra.mxu0 0.0
    %686 = vmatprep.subr.mxu0 0.0
    %687 = vmatpush1.msra.mxu0 0.0
    %688 = vmatprep.subr.mxu0 0.0
    %689 = vmatpush1.msra.mxu0 0.0
    %690 = vmatprep.subr.mxu0 0.0
    %691 = vmatpush1.msra.mxu0 0.0
    %692 = vmatprep.subr.mxu0 0.0
    %693 = vmatpush1.msra.mxu0 0.0
    %694 = vmatprep.subr.mxu0 0.0
    %695 = vmatpush1.msra.mxu0 0.0
    %696 = vmatprep.subr.mxu0 0.0
    %697 = vmatpush1.msra.mxu0 0.0
    %698 = vmatprep.subr.mxu0 0.0
    %699 = vmatpush1.msra.mxu0 0.0
    %700 = vmatprep.subr.mxu0 0.0
    %701 = vmatpush1.msra.mxu0 0.0
    %702 = vmatprep.subr.mxu0 0.0
    %703 = vmatpush1.msra.mxu0 0.0
    %704 = vmatprep.subr.mxu0 0.0
    %705 = vmatpush1.msra.mxu0 0.0
    %706 = vmatprep.subr.mxu0 0.0
    %707 = vmatpush1.msra.mxu0 0.0
    %708 = vmatprep.subr.mxu0 0.0
    %709 = vmatpush1.msra.mxu0 0.0
    %710 = vmatprep.subr.mxu0 0.0
    %711 = vmatpush1.msra.mxu0 0.0
    %712 = vmatprep.subr.mxu0 0.0
    %713 = vmatpush1.msra.mxu0 0.0
    %714 = vmatprep.subr.mxu0 0.0
    %715 = vmatpush1.msra.mxu0 0.0
    %716 = vmatprep.subr.mxu0 0.0
    %717 = vmatpush1.msra.mxu0 0.0
    %718 = vmatprep.subr.mxu0 0.0
    %719 = vmatpush1.msra.mxu0 0.0
    %720 = vmatprep.subr.mxu0 0.0
    %721 = vmatpush1.msra.mxu0 0.0
    %722 = vmatprep.subr.mxu0 0.0
    %723 = vmatpush1.msra.mxu0 0.0
    %724 = vmatprep.subr.mxu0 0.0
    %725 = vmatpush1.msra.mxu0 0.0
    %726 = vmatprep.subr.mxu0 0.0
    %727 = vmatpush1.msra.mxu0 0.0
    %728 = vmatprep.subr.mxu0 0.0
    %729 = vmatpush1.msra.mxu0 0.0
    %730 = vmatprep.subr.mxu0 0.0
    %731 = vmatpush1.msra.mxu0 0.0
    %732 = vmatprep.subr.mxu0 0.0
    %733 = vmatpush1.msra.mxu0 0.0
    %734 = vmatprep.subr.mxu0 0.0
    %735 = vmatpush1.msra.mxu0 0.0
    %736 = vmatprep.subr.mxu0 0.0
    %737 = vmatpush1.msra.mxu0 0.0
    %738 = vmatprep.subr.mxu0 0.0
    %739 = vmatpush1.msra.mxu0 0.0
    %740 = vmatprep.subr.mxu0 0.0
    %741 = vmatpush1.msra.mxu0 0.0
    %742 = vmatprep.mubr.f32.mxu0 0.0
    %743 = vmatmul.mubr.f32.gmra.mrb[0].mxu0 %v676
    %v744 = vpop.f32.mrb[0].mxu0
    %v745 = vadd.f32 0.0, %v744
    %v746 = vpop.f32.mrb[0].mxu0
    %747 = vdwg.mxu0
    %v749 = vsel %vm409, %v745, 0
    %751 = vmatprep.subr.mxu0 0.0
    %752 = vmatpush1.msra.mxu0 %v136
    %753 = vmatprep.subr.mxu0 0.0
    %754 = vmatpush1.msra.mxu0 0.0
    %755 = vmatprep.subr.mxu0 0.0
    %756 = vmatpush1.msra.mxu0 0.0
    %757 = vmatprep.subr.mxu0 0.0
    %758 = vmatpush1.msra.mxu0 0.0
    %759 = vmatprep.subr.mxu0 0.0
    %760 = vmatpush1.msra.mxu0 0.0
    %761 = vmatprep.subr.mxu0 0.0
    %762 = vmatpush1.msra.mxu0 0.0
    %763 = vmatprep.subr.mxu0 0.0
    %764 = vmatpush1.msra.mxu0 0.0
    %765 = vmatprep.subr.mxu0 0.0
    %766 = vmatpush1.msra.mxu0 0.0
    %767 = vmatprep.subr.mxu0 0.0
    %768 = vmatpush1.msra.mxu0 0.0
    %769 = vmatprep.subr.mxu0 0.0
    %770 = vmatpush1.msra.mxu0 0.0
    %771 = vmatprep.subr.mxu0 0.0
    %772 = vmatpush1.msra.mxu0 0.0
    %773 = vmatprep.subr.mxu0 0.0
    %774 = vmatpush1.msra.mxu0 0.0
    %775 = vmatprep.subr.mxu0 0.0
    %776 = vmatpush1.msra.mxu0 0.0
    %777 = vmatprep.subr.mxu0 0.0
    %778 = vmatpush1.msra.mxu0 0.0
    %779 = vmatprep.subr.mxu0 0.0
    %780 = vmatpush1.msra.mxu0 0.0
    %781 = vmatprep.subr.mxu0 0.0
    %782 = vmatpush1.msra.mxu0 0.0
    %783 = vmatprep.subr.mxu0 0.0
    %784 = vmatpush1.msra.mxu0 0.0
    %785 = vmatprep.subr.mxu0 0.0
    %786 = vmatpush1.msra.mxu0 0.0
    %787 = vmatprep.subr.mxu0 0.0
    %788 = vmatpush1.msra.mxu0 0.0
    %789 = vmatprep.subr.mxu0 0.0
    %790 = vmatpush1.msra.mxu0 0.0
    %791 = vmatprep.subr.mxu0 0.0
    %792 = vmatpush1.msra.mxu0 0.0
    %793 = vmatprep.subr.mxu0 0.0
    %794 = vmatpush1.msra.mxu0 0.0
    %795 = vmatprep.subr.mxu0 0.0
    %796 = vmatpush1.msra.mxu0 0.0
    %797 = vmatprep.subr.mxu0 0.0
    %798 = vmatpush1.msra.mxu0 0.0
    %799 = vmatprep.subr.mxu0 0.0
    %800 = vmatpush1.msra.mxu0 0.0
    %801 = vmatprep.subr.mxu0 0.0
    %802 = vmatpush1.msra.mxu0 0.0
    %803 = vmatprep.subr.mxu0 0.0
    %804 = vmatpush1.msra.mxu0 0.0
    %805 = vmatprep.subr.mxu0 0.0
    %806 = vmatpush1.msra.mxu0 0.0
    %807 = vmatprep.subr.mxu0 0.0
    %808 = vmatpush1.msra.mxu0 0.0
    %809 = vmatprep.subr.mxu0 0.0
    %810 = vmatpush1.msra.mxu0 0.0
    %811 = vmatprep.subr.mxu0 0.0
    %812 = vmatpush1.msra.mxu0 0.0
    %813 = vmatprep.subr.mxu0 0.0
    %814 = vmatpush1.msra.mxu0 0.0
    %815 = vmatprep.mubr.f32.mxu0 0.0
    %816 = vmatmul.mubr.f32.gmra.mrb[0].mxu0 %v749
    %v817 = vpop.f32.mrb[0].mxu0
    %v818 = vadd.f32 0.0, %v817
    %v819 = vpop.f32.mrb[0].mxu0
    %820 = vdwg.mxu0
    %v822 = vsel %vm409, %v571, 0
    %824 = vmatprep.subr.mxu0 0.0
    %825 = vmatpush1.msra.mxu0 %v135
    %826 = vmatprep.subr.mxu0 0.0
    %827 = vmatpush1.msra.mxu0 0.0
    %828 = vmatprep.subr.mxu0 0.0
    %829 = vmatpush1.msra.mxu0 0.0
    %830 = vmatprep.subr.mxu0 0.0
    %831 = vmatpush1.msra.mxu0 0.0
    %832 = vmatprep.subr.mxu0 0.0
    %833 = vmatpush1.msra.mxu0 0.0
    %834 = vmatprep.subr.mxu0 0.0
    %835 = vmatpush1.msra.mxu0 0.0
    %836 = vmatprep.subr.mxu0 0.0
    %837 = vmatpush1.msra.mxu0 0.0
    %838 = vmatprep.subr.mxu0 0.0
    %839 = vmatpush1.msra.mxu0 0.0
    %840 = vmatprep.subr.mxu0 0.0
    %841 = vmatpush1.msra.mxu0 0.0
    %842 = vmatprep.subr.mxu0 0.0
    %843 = vmatpush1.msra.mxu0 0.0
    %844 = vmatprep.subr.mxu0 0.0
    %845 = vmatpush1.msra.mxu0 0.0
    %846 = vmatprep.subr.mxu0 0.0
    %847 = vmatpush1.msra.mxu0 0.0
    %848 = vmatprep.subr.mxu0 0.0
    %849 = vmatpush1.msra.mxu0 0.0
    %850 = vmatprep.subr.mxu0 0.0
    %851 = vmatpush1.msra.mxu0 0.0
    %852 = vmatprep.subr.mxu0 0.0
    %853 = vmatpush1.msra.mxu0 0.0
    %854 = vmatprep.subr.mxu0 0.0
    %855 = vmatpush1.msra.mxu0 0.0
    %856 = vmatprep.subr.mxu0 0.0
    %857 = vmatpush1.msra.mxu0 0.0
    %858 = vmatprep.subr.mxu0 0.0
    %859 = vmatpush1.msra.mxu0 0.0
    %860 = vmatprep.subr.mxu0 0.0
    %861 = vmatpush1.msra.mxu0 0.0
    %862 = vmatprep.subr.mxu0 0.0
    %863 = vmatpush1.msra.mxu0 0.0
    %864 = vmatprep.subr.mxu0 0.0
    %865 = vmatpush1.msra.mxu0 0.0
    %866 = vmatprep.subr.mxu0 0.0
    %867 = vmatpush1.msra.mxu0 0.0
    %868 = vmatprep.subr.mxu0 0.0
    %869 = vmatpush1.msra.mxu0 0.0
    %870 = vmatprep.subr.mxu0 0.0
    %871 = vmatpush1.msra.mxu0 0.0
    %872 = vmatprep.subr.mxu0 0.0
    %873 = vmatpush1.msra.mxu0 0.0
    %874 = vmatprep.subr.mxu0 0.0
    %875 = vmatpush1.msra.mxu0 0.0
    %876 = vmatprep.subr.mxu0 0.0
    %877 = vmatpush1.msra.mxu0 0.0
    %878 = vmatprep.subr.mxu0 0.0
    %879 = vmatpush1.msra.mxu0 0.0
    %880 = vmatprep.subr.mxu0 0.0
    %881 = vmatpush1.msra.mxu0 0.0
    %882 = vmatprep.subr.mxu0 0.0
    %883 = vmatpush1.msra.mxu0 0.0
    %884 = vmatprep.subr.mxu0 0.0
    %885 = vmatpush1.msra.mxu0 0.0
    %886 = vmatprep.subr.mxu0 0.0
    %887 = vmatpush1.msra.mxu0 0.0
    %888 = vmatprep.mubr.f32.mxu0 0.0
    %889 = vmatmul.mubr.f32.gmra.mrb[0].mxu0 %v822
    %v890 = vpop.f32.mrb[0].mxu0
    %v891 = vadd.f32 %v818, %v890
    %v892 = vpop.f32.mrb[0].mxu0
    %893 = vdwg.mxu0
    %894 = vrot.lane.b32.xlu0 %v238, 112
    %v895 = vpop.permute.xlu0 %894
    %896 = vrot.lane.b32.xlu0 %v320, 112
    %v897 = vpop.permute.xlu0 %896
    %898 = vrot.lane.b32.xlu0 %v325, 112
    %v899 = vpop.permute.xlu0 %898
    %v900 = vsel %vm409, %v895, 0
    %v902 = vsel %vm409, %v897, 0
    %v904 = vsel %vm409, %v899, 0
    %906 = vmatprep.subr.mxu0 0.0
    %907 = vmatpush1.xpose.msra.mxu0 %v902
    %908 = vmatprep.subr.mxu0 0.0
    %909 = vmatpush1.xpose.msra.mxu0 %v904
    %910 = vmatprep.subr.mxu0 0.0
    %911 = vmatpush1.xpose.msra.mxu0 0.0
    %912 = vmatprep.subr.mxu0 0.0
    %913 = vmatpush1.xpose.msra.mxu0 0.0
    %914 = vmatprep.subr.mxu0 0.0
    %915 = vmatpush1.xpose.msra.mxu0 0.0
    %916 = vmatprep.subr.mxu0 0.0
    %917 = vmatpush1.xpose.msra.mxu0 0.0
    %918 = vmatprep.subr.mxu0 0.0
    %919 = vmatpush1.xpose.msra.mxu0 0.0
    %920 = vmatprep.subr.mxu0 0.0
    %921 = vmatpush1.xpose.msra.mxu0 0.0
    %922 = vmatprep.subr.mxu0 0.0
    %923 = vmatpush1.xpose.msra.mxu0 0.0
    %924 = vmatprep.subr.mxu0 0.0
    %925 = vmatpush1.xpose.msra.mxu0 0.0
    %926 = vmatprep.subr.mxu0 0.0
    %927 = vmatpush1.xpose.msra.mxu0 0.0
    %928 = vmatprep.subr.mxu0 0.0
    %929 = vmatpush1.xpose.msra.mxu0 0.0
    %930 = vmatprep.subr.mxu0 0.0
    %931 = vmatpush1.xpose.msra.mxu0 0.0
    %932 = vmatprep.subr.mxu0 0.0
    %933 = vmatpush1.xpose.msra.mxu0 0.0
    %934 = vmatprep.subr.mxu0 0.0
    %935 = vmatpush1.xpose.msra.mxu0 0.0
    %936 = vmatprep.subr.mxu0 0.0
    %937 = vmatpush1.xpose.msra.mxu0 0.0
    %938 = vmatprep.subr.mxu0 0.0
    %939 = vmatpush1.xpose.msra.mxu0 0.0
    %940 = vmatprep.subr.mxu0 0.0
    %941 = vmatpush1.xpose.msra.mxu0 0.0
    %942 = vmatprep.subr.mxu0 0.0
    %943 = vmatpush1.xpose.msra.mxu0 0.0
    %944 = vmatprep.subr.mxu0 0.0
    %945 = vmatpush1.xpose.msra.mxu0 0.0
    %946 = vmatprep.subr.mxu0 0.0
    %947 = vmatpush1.xpose.msra.mxu0 0.0
    %948 = vmatprep.subr.mxu0 0.0
    %949 = vmatpush1.xpose.msra.mxu0 0.0
    %950 = vmatprep.subr.mxu0 0.0
    %951 = vmatpush1.xpose.msra.mxu0 0.0
    %952 = vmatprep.subr.mxu0 0.0
    %953 = vmatpush1.xpose.msra.mxu0 0.0
    %954 = vmatprep.subr.mxu0 0.0
    %955 = vmatpush1.xpose.msra.mxu0 0.0
    %956 = vmatprep.subr.mxu0 0.0
    %957 = vmatpush1.xpose.msra.mxu0 0.0
    %958 = vmatprep.subr.mxu0 0.0
    %959 = vmatpush1.xpose.msra.mxu0 0.0
    %960 = vmatprep.subr.mxu0 0.0
    %961 = vmatpush1.xpose.msra.mxu0 0.0
    %962 = vmatprep.subr.mxu0 0.0
    %963 = vmatpush1.xpose.msra.mxu0 0.0
    %964 = vmatprep.subr.mxu0 0.0
    %965 = vmatpush1.xpose.msra.mxu0 0.0
    %966 = vmatprep.subr.mxu0 0.0
    %967 = vmatpush1.xpose.msra.mxu0 0.0
    %968 = vmatprep.subr.mxu0 0.0
    %969 = vmatpush1.xpose.msra.mxu0 0.0
    %970 = vmatprep.mubr.f32.mxu0 0.0
    %971 = vmatmul.mubr.f32.gmra.mrb[0].mxu0 %v900
    %v972 = vpop.f32.mrb[0].mxu0
    %v973 = vadd.f32 0.0, %v972
    %v974 = vpop.f32.mrb[0].mxu0
    %975 = vdwg.mxu0
    %v976 = vsel %vm489, %v973, -inf
    %977 = vmax.xlane.f32.xlu0 %v976
    %v978 = vpop.xlane.xlu0 %977
    %v979 = vsub.f32 %v973, %v978
    %v980 = vmul.f32 %v979, 1.442695
    %v981 = vpow.pop %v980
    %v982 = vsel %vm489, %v981, 0.0
    %983 = vadd.xlane.f32.xlu0 %v982
    %v984 = vpop.xlane.xlu0 %983
    %v985 = vrcp.pop %v984
    %v986 = vmul.f32 %v981, %v985
    %987 = vrot.lane.b32.xlu0 %v401, 112
    %v988 = vpop.permute.xlu0 %987
    %989 = vrot.lane.b32.xlu0 %v406, 112
    %v990 = vpop.permute.xlu0 %989
    %v994 = vsel %vm489, %v986, 0
    %996 = vmatprep.subr.mxu0 0.0
    %997 = vmatpush1.msra.mxu0 %v988
    %998 = vmatprep.subr.mxu0 0.0
    %999 = vmatpush1.msra.mxu0 %v990
    %1000 = vmatprep.subr.mxu0 0.0
    %1001 = vmatpush1.msra.mxu0 0.0
    %1002 = vmatprep.subr.mxu0 0.0
    %1003 = vmatpush1.msra.mxu0 0.0
    %1004 = vmatprep.subr.mxu0 0.0
    %1005 = vmatpush1.msra.mxu0 0.0
    %1006 = vmatprep.subr.mxu0 0.0
    %1007 = vmatpush1.msra.mxu0 0.0
    %1008 = vmatprep.subr.mxu0 0.0
    %1009 = vmatpush1.msra.mxu0 0.0
    %1010 = vmatprep.subr.mxu0 0.0
    %1011 = vmatpush1.msra.mxu0 0.0
    %1012 = vmatprep.subr.mxu0 0.0
    %1013 = vmatpush1.msra.mxu0 0.0
    %1014 = vmatprep.subr.mxu0 0.0
    %1015 = vmatpush1.msra.mxu0 0.0
    %1016 = vmatprep.subr.mxu0 0.0
    %1017 = vmatpush1.msra.mxu0 0.0
    %1018 = vmatprep.subr.mxu0 0.0
    %1019 = vmatpush1.msra.mxu0 0.0
    %1020 = vmatprep.subr.mxu0 0.0
    %1021 = vmatpush1.msra.mxu0 0.0
    %1022 = vmatprep.subr.mxu0 0.0
    %1023 = vmatpush1.msra.mxu0 0.0
    %1024 = vmatprep.subr.mxu0 0.0
    %1025 = vmatpush1.msra.mxu0 0.0
    %1026 = vmatprep.subr.mxu0 0.0
    %1027 = vmatpush1.msra.mxu0 0.0
    %1028 = vmatprep.subr.mxu0 0.0
    %1029 = vmatpush1.msra.mxu0 0.0
    %1030 = vmatprep.subr.mxu0 0.0
    %1031 = vmatpush1.msra.mxu0 0.0
    %1032 = vmatprep.subr.mxu0 0.0
    %1033 = vmatpush1.msra.mxu0 0.0
    %1034 = vmatprep.subr.mxu0 0.0
    %1035 = vmatpush1.msra.mxu0 0.0
    %1036 = vmatprep.subr.mxu0 0.0
    %1037 = vmatpush1.msra.mxu0 0.0
    %1038 = vmatprep.subr.mxu0 0.0
    %1039 = vmatpush1.msra.mxu0 0.0
    %1040 = vmatprep.subr.mxu0 0.0
    %1041 = vmatpush1.msra.mxu0 0.0
    %1042 = vmatprep.subr.mxu0 0.0
    %1043 = vmatpush1.msra.mxu0 0.0
    %1044 = vmatprep.subr.mxu0 0.0
    %1045 = vmatpush1.msra.mxu0 0.0
    %1046 = vmatprep.subr.mxu0 0.0
    %1047 = vmatpush1.msra.mxu0 0.0
    %1048 = vmatprep.subr.mxu0 0.0
    %1049 = vmatpush1.msra.mxu0 0.0
    %1050 = vmatprep.subr.mxu0 0.0
    %1051 = vmatpush1.msra.mxu0 0.0
    %1052 = vmatprep.subr.mxu0 0.0
    %1053 = vmatpush1.msra.mxu0 0.0
    %1054 = vmatprep.subr.mxu0 0.0
    %1055 = vmatpush1.msra.mxu0 0.0
    %1056 = vmatprep.subr.mxu0 0.0
    %1057 = vmatpush1.msra.mxu0 0.0
    %1058 = vmatprep.subr.mxu0 0.0
    %1059 = vmatpush1.msra.mxu0 0.0
    %1060 = vmatprep.mubr.f32.mxu0 0.0
    %1061 = vmatmul.mubr.f32.gmra.mrb[0].mxu0 %v994
    %v1062 = vpop.f32.mrb[0].mxu0
    %v1063 = vadd.f32 0.0, %v1062
    %v1064 = vpop.f32.mrb[0].mxu0
    %1065 = vdwg.mxu0
    %v1067 = vsel %vm409, %v1063, 0
    %1069 = vmatprep.subr.mxu0 0.0
    %1070 = vmatpush1.msra.mxu0 %v137
    %1071 = vmatprep.subr.mxu0 0.0
    %1072 = vmatpush1.msra.mxu0 0.0
    %1073 = vmatprep.subr.mxu0 0.0
    %1074 = vmatpush1.msra.mxu0 0.0
    %1075 = vmatprep.subr.mxu0 0.0
    %1076 = vmatpush1.msra.mxu0 0.0
    %1077 = vmatprep.subr.mxu0 0.0
    %1078 = vmatpush1.msra.mxu0 0.0
    %1079 = vmatprep.subr.mxu0 0.0
    %1080 = vmatpush1.msra.mxu0 0.0
    %1081 = vmatprep.subr.mxu0 0.0
    %1082 = vmatpush1.msra.mxu0 0.0
    %1083 = vmatprep.subr.mxu0 0.0
    %1084 = vmatpush1.msra.mxu0 0.0
    %1085 = vmatprep.subr.mxu0 0.0
    %1086 = vmatpush1.msra.mxu0 0.0
    %1087 = vmatprep.subr.mxu0 0.0
    %1088 = vmatpush1.msra.mxu0 0.0
    %1089 = vmatprep.subr.mxu0 0.0
    %1090 = vmatpush1.msra.mxu0 0.0
    %1091 = vmatprep.subr.mxu0 0.0
    %1092 = vmatpush1.msra.mxu0 0.0
    %1093 = vmatprep.subr.mxu0 0.0
    %1094 = vmatpush1.msra.mxu0 0.0
    %1095 = vmatprep.subr.mxu0 0.0
    %1096 = vmatpush1.msra.mxu0 0.0
    %1097 = vmatprep.subr.mxu0 0.0
    %1098 = vmatpush1.msra.mxu0 0.0
    %1099 = vmatprep.subr.mxu0 0.0
    %1100 = vmatpush1.msra.mxu0 0.0
    %1101 = vmatprep.subr.mxu0 0.0
    %1102 = vmatpush1.msra.mxu0 0.0
    %1103 = vmatprep.subr.mxu0 0.0
    %1104 = vmatpush1.msra.mxu0 0.0
    %1105 = vmatprep.subr.mxu0 0.0
    %1106 = vmatpush1.msra.mxu0 0.0
    %1107 = vmatprep.subr.mxu0 0.0
    %1108 = vmatpush1.msra.mxu0 0.0
    %1109 = vmatprep.subr.mxu0 0.0
    %1110 = vmatpush1.msra.mxu0 0.0
    %1111 = vmatprep.subr.mxu0 0.0
    %1112 = vmatpush1.msra.mxu0 0.0
    %1113 = vmatprep.subr.mxu0 0.0
    %1114 = vmatpush1.msra.mxu0 0.0
    %1115 = vmatprep.subr.mxu0 0.0
    %1116 = vmatpush1.msra.mxu0 0.0
    %1117 = vmatprep.subr.mxu0 0.0
    %1118 = vmatpush1.msra.mxu0 0.0
    %1119 = vmatprep.subr.mxu0 0.0
    %1120 = vmatpush1.msra.mxu0 0.0
    %1121 = vmatprep.subr.mxu0 0.0
    %1122 = vmatpush1.msra.mxu0 0.0
    %1123 = vmatprep.subr.mxu0 0.0
    %1124 = vmatpush1.msra.mxu0 0.0
    %1125 = vmatprep.subr.mxu0 0.0
    %1126 = vmatpush1.msra.mxu0 0.0
    %1127 = vmatprep.subr.mxu0 0.0
    %1128 = vmatpush1.msra.mxu0 0.0
    %1129 = vmatprep.subr.mxu0 0.0
    %1130 = vmatpush1.msra.mxu0 0.0
    %1131 = vmatprep.subr.mxu0 0.0
    %1132 = vmatpush1.msra.mxu0 0.0
    %1133 = vmatprep.mubr.f32.mxu0 0.0
    %1134 = vmatmul.mubr.f32.gmra.mrb[0].mxu0 %v1067
    %v1135 = vpop.f32.mrb[0].mxu0
    %v1136 = vadd.f32 0.0, %v1135
    %v1137 = vpop.f32.mrb[0].mxu0
    %1138 = vdwg.mxu0
    %v1139 = vadd.f32 %v891, %v1136
    %1140 = vrot.lane.b32.xlu0 %v238, 104
    %v1141 = vpop.permute.xlu0 %1140
    %1142 = vrot.lane.b32.xlu0 %v320, 104
    %v1143 = vpop.permute.xlu0 %1142
    %1144 = vrot.lane.b32.xlu0 %v325, 104
    %v1145 = vpop.permute.xlu0 %1144
    %v1146 = vsel %vm409, %v1141, 0
    %v1148 = vsel %vm409, %v1143, 0
    %v1150 = vsel %vm409, %v1145, 0
    %1152 = vmatprep.subr.mxu0 0.0
    %1153 = vmatpush1.xpose.msra.mxu0 %v1148
    %1154 = vmatprep.subr.mxu0 0.0
    %1155 = vmatpush1.xpose.msra.mxu0 %v1150
    %1156 = vmatprep.subr.mxu0 0.0
    %1157 = vmatpush1.xpose.msra.mxu0 0.0
    %1158 = vmatprep.subr.mxu0 0.0
    %1159 = vmatpush1.xpose.msra.mxu0 0.0
    %1160 = vmatprep.subr.mxu0 0.0
    %1161 = vmatpush1.xpose.msra.mxu0 0.0
    %1162 = vmatprep.subr.mxu0 0.0
    %1163 = vmatpush1.xpose.msra.mxu0 0.0
    %1164 = vmatprep.subr.mxu0 0.0
    %1165 = vmatpush1.xpose.msra.mxu0 0.0
    %1166 = vmatprep.subr.mxu0 0.0
    %1167 = vmatpush1.xpose.msra.mxu0 0.0
    %1168 = vmatprep.subr.mxu0 0.0
    %1169 = vmatpush1.xpose.msra.mxu0 0.0
    %1170 = vmatprep.subr.mxu0 0.0
    %1171 = vmatpush1.xpose.msra.mxu0 0.0
    %1172 = vmatprep.subr.mxu0 0.0
    %1173 = vmatpush1.xpose.msra.mxu0 0.0
    %1174 = vmatprep.subr.mxu0 0.0
    %1175 = vmatpush1.xpose.msra.mxu0 0.0
    %1176 = vmatprep.subr.mxu0 0.0
    %1177 = vmatpush1.xpose.msra.mxu0 0.0
    %1178 = vmatprep.subr.mxu0 0.0
    %1179 = vmatpush1.xpose.msra.mxu0 0.0
    %1180 = vmatprep.subr.mxu0 0.0
    %1181 = vmatpush1.xpose.msra.mxu0 0.0
    %1182 = vmatprep.subr.mxu0 0.0
    %1183 = vmatpush1.xpose.msra.mxu0 0.0
    %1184 = vmatprep.subr.mxu0 0.0
    %1185 = vmatpush1.xpose.msra.mxu0 0.0
    %1186 = vmatprep.subr.mxu0 0.0
    %1187 = vmatpush1.xpose.msra.mxu0 0.0
    %1188 = vmatprep.subr.mxu0 0.0
    %1189 = vmatpush1.xpose.msra.mxu0 0.0
    %1190 = vmatprep.subr.mxu0 0.0
    %1191 = vmatpush1.xpose.msra.mxu0 0.0
    %1192 = vmatprep.subr.mxu0 0.0
    %1193 = vmatpush1.xpose.msra.mxu0 0.0
    %1194 = vmatprep.subr.mxu0 0.0
    %1195 = vmatpush1.xpose.msra.mxu0 0.0
    %1196 = vmatprep.subr.mxu0 0.0
    %1197 = vmatpush1.xpose.msra.mxu0 0.0
    %1198 = vmatprep.subr.mxu0 0.0
    %1199 = vmatpush1.xpose.msra.mxu0 0.0
    %1200 = vmatprep.subr.mxu0 0.0
    %1201 = vmatpush1.xpose.msra.mxu0 0.0
    %1202 = vmatprep.subr.mxu0 0.0
    %1203 = vmatpush1.xpose.msra.mxu0 0.0
    %1204 = vmatprep.subr.mxu0 0.0
    %1205 = vmatpush1.xpose.msra.mxu0 0.0
    %1206 = vmatprep.subr.mxu0 0.0
    %1207 = vmatpush1.xpose.msra.mxu0 0.0
    %1208 = vmatprep.subr.mxu0 0.0
    %1209 = vmatpush1.xpose.msra.mxu0 0.0
    %1210 = vmatprep.subr.mxu0 0.0
    %1211 = vmatpush1.xpose.msra.mxu0 0.0
    %1212 = vmatprep.subr.mxu0 0.0
    %1213 = vmatpush1.xpose.msra.mxu0 0.0
    %1214 = vmatprep.subr.mxu0 0.0
    %1215 = vmatpush1.xpose.msra.mxu0 0.0
    %1216 = vmatprep.mubr.f32.mxu0 0.0
    %1217 = vmatmul.mubr.f32.gmra.mrb[0].mxu0 %v1146
    %v1218 = vpop.f32.mrb[0].mxu0
    %v1219 = vadd.f32 0.0, %v1218
    %v1220 = vpop.f32.mrb[0].mxu0
    %1221 = vdwg.mxu0
    %v1222 = vsel %vm489, %v1219, -inf
    %1223 = vmax.xlane.f32.xlu0 %v1222
    %v1224 = vpop.xlane.xlu0 %1223
    %v1225 = vsub.f32 %v1219, %v1224
    %v1226 = vmul.f32 %v1225, 1.442695
    %v1227 = vpow.pop %v1226
    %v1228 = vsel %vm489, %v1227, 0.0
    %1229 = vadd.xlane.f32.xlu0 %v1228
    %v1230 = vpop.xlane.xlu0 %1229
    %v1231 = vrcp.pop %v1230
    %v1232 = vmul.f32 %v1227, %v1231
    %1233 = vrot.lane.b32.xlu0 %v401, 104
    %v1234 = vpop.permute.xlu0 %1233
    %1235 = vrot.lane.b32.xlu0 %v406, 104
    %v1236 = vpop.permute.xlu0 %1235
    %v1240 = vsel %vm489, %v1232, 0
    %1242 = vmatprep.subr.mxu0 0.0
    %1243 = vmatpush1.msra.mxu0 %v1234
    %1244 = vmatprep.subr.mxu0 0.0
    %1245 = vmatpush1.msra.mxu0 %v1236
    %1246 = vmatprep.subr.mxu0 0.0
    %1247 = vmatpush1.msra.mxu0 0.0
    %1248 = vmatprep.subr.mxu0 0.0
    %1249 = vmatpush1.msra.mxu0 0.0
    %1250 = vmatprep.subr.mxu0 0.0
    %1251 = vmatpush1.msra.mxu0 0.0
    %1252 = vmatprep.subr.mxu0 0.0
    %1253 = vmatpush1.msra.mxu0 0.0
    %1254 = vmatprep.subr.mxu0 0.0
    %1255 = vmatpush1.msra.mxu0 0.0
    %1256 = vmatprep.subr.mxu0 0.0
    %1257 = vmatpush1.msra.mxu0 0.0
    %1258 = vmatprep.subr.mxu0 0.0
    %1259 = vmatpush1.msra.mxu0 0.0
    %1260 = vmatprep.subr.mxu0 0.0
    %1261 = vmatpush1.msra.mxu0 0.0
    %1262 = vmatprep.subr.mxu0 0.0
    %1263 = vmatpush1.msra.mxu0 0.0
    %1264 = vmatprep.subr.mxu0 0.0
    %1265 = vmatpush1.msra.mxu0 0.0
    %1266 = vmatprep.subr.mxu0 0.0
    %1267 = vmatpush1.msra.mxu0 0.0
    %1268 = vmatprep.subr.mxu0 0.0
    %1269 = vmatpush1.msra.mxu0 0.0
    %1270 = vmatprep.subr.mxu0 0.0
    %1271 = vmatpush1.msra.mxu0 0.0
    %1272 = vmatprep.subr.mxu0 0.0
    %1273 = vmatpush1.msra.mxu0 0.0
    %1274 = vmatprep.subr.mxu0 0.0
    %1275 = vmatpush1.msra.mxu0 0.0
    %1276 = vmatprep.subr.mxu0 0.0
    %1277 = vmatpush1.msra.mxu0 0.0
    %1278 = vmatprep.subr.mxu0 0.0
    %1279 = vmatpush1.msra.mxu0 0.0
    %1280 = vmatprep.subr.mxu0 0.0
    %1281 = vmatpush1.msra.mxu0 0.0
    %1282 = vmatprep.subr.mxu0 0.0
    %1283 = vmatpush1.msra.mxu0 0.0
    %1284 = vmatprep.subr.mxu0 0.0
    %1285 = vmatpush1.msra.mxu0 0.0
    %1286 = vmatprep.subr.mxu0 0.0
    %1287 = vmatpush1.msra.mxu0 0.0
    %1288 = vmatprep.subr.mxu0 0.0
    %1289 = vmatpush1.msra.mxu0 0.0
    %1290 = vmatprep.subr.mxu0 0.0
    %1291 = vmatpush1.msra.mxu0 0.0
    %1292 = vmatprep.subr.mxu0 0.0
    %1293 = vmatpush1.msra.mxu0 0.0
    %1294 = vmatprep.subr.mxu0 0.0
    %1295 = vmatpush1.msra.mxu0 0.0
    %1296 = vmatprep.subr.mxu0 0.0
    %1297 = vmatpush1.msra.mxu0 0.0
    %1298 = vmatprep.subr.mxu0 0.0
    %1299 = vmatpush1.msra.mxu0 0.0
    %1300 = vmatprep.subr.mxu0 0.0
    %1301 = vmatpush1.msra.mxu0 0.0
    %1302 = vmatprep.subr.mxu0 0.0
    %1303 = vmatpush1.msra.mxu0 0.0
    %1304 = vmatprep.subr.mxu0 0.0
    %1305 = vmatpush1.msra.mxu0 0.0
    %1306 = vmatprep.mubr.f32.mxu0 0.0
    %1307 = vmatmul.mubr.f32.gmra.mrb[0].mxu0 %v1240
    %v1308 = vpop.f32.mrb[0].mxu0
    %v1309 = vadd.f32 0.0, %v1308
    %v1310 = vpop.f32.mrb[0].mxu0
    %1311 = vdwg.mxu0
    %v1313 = vsel %vm409, %v1309, 0
    %1315 = vmatprep.subr.mxu0 0.0
    %1316 = vmatpush1.msra.mxu0 %v138
    %1317 = vmatprep.subr.mxu0 0.0
    %1318 = vmatpush1.msra.mxu0 0.0
    %1319 = vmatprep.subr.mxu0 0.0
    %1320 = vmatpush1.msra.mxu0 0.0
    %1321 = vmatprep.subr.mxu0 0.0
    %1322 = vmatpush1.msra.mxu0 0.0
    %1323 = vmatprep.subr.mxu0 0.0
    %1324 = vmatpush1.msra.mxu0 0.0
    %1325 = vmatprep.subr.mxu0 0.0
    %1326 = vmatpush1.msra.mxu0 0.0
    %1327 = vmatprep.subr.mxu0 0.0
    %1328 = vmatpush1.msra.mxu0 0.0
    %1329 = vmatprep.subr.mxu0 0.0
    %1330 = vmatpush1.msra.mxu0 0.0
    %1331 = vmatprep.subr.mxu0 0.0
    %1332 = vmatpush1.msra.mxu0 0.0
    %1333 = vmatprep.subr.mxu0 0.0
    %1334 = vmatpush1.msra.mxu0 0.0
    %1335 = vmatprep.subr.mxu0 0.0
    %1336 = vmatpush1.msra.mxu0 0.0
    %1337 = vmatprep.subr.mxu0 0.0
    %1338 = vmatpush1.msra.mxu0 0.0
    %1339 = vmatprep.subr.mxu0 0.0
    %1340 = vmatpush1.msra.mxu0 0.0
    %1341 = vmatprep.subr.mxu0 0.0
    %1342 = vmatpush1.msra.mxu0 0.0
    %1343 = vmatprep.subr.mxu0 0.0
    %1344 = vmatpush1.msra.mxu0 0.0
    %1345 = vmatprep.subr.mxu0 0.0
    %1346 = vmatpush1.msra.mxu0 0.0
    %1347 = vmatprep.subr.mxu0 0.0
    %1348 = vmatpush1.msra.mxu0 0.0
    %1349 = vmatprep.subr.mxu0 0.0
    %1350 = vmatpush1.msra.mxu0 0.0
    %1351 = vmatprep.subr.mxu0 0.0
    %1352 = vmatpush1.msra.mxu0 0.0
    %1353 = vmatprep.subr.mxu0 0.0
    %1354 = vmatpush1.msra.mxu0 0.0
    %1355 = vmatprep.subr.mxu0 0.0
    %1356 = vmatpush1.msra.mxu0 0.0
    %1357 = vmatprep.subr.mxu0 0.0
    %1358 = vmatpush1.msra.mxu0 0.0
    %1359 = vmatprep.subr.mxu0 0.0
    %1360 = vmatpush1.msra.mxu0 0.0
    %1361 = vmatprep.subr.mxu0 0.0
    %1362 = vmatpush1.msra.mxu0 0.0
    %1363 = vmatprep.subr.mxu0 0.0
    %1364 = vmatpush1.msra.mxu0 0.0
    %1365 = vmatprep.subr.mxu0 0.0
    %1366 = vmatpush1.msra.mxu0 0.0
    %1367 = vmatprep.subr.mxu0 0.0
    %1368 = vmatpush1.msra.mxu0 0.0
    %1369 = vmatprep.subr.mxu0 0.0
    %1370 = vmatpush1.msra.mxu0 0.0
    %1371 = vmatprep.subr.mxu0 0.0
    %1372 = vmatpush1.msra.mxu0 0.0
    %1373 = vmatprep.subr.mxu0 0.0
    %1374 = vmatpush1.msra.mxu0 0.0
    %1375 = vmatprep.subr.mxu0 0.0
    %1376 = vmatpush1.msra.mxu0 0.0
    %1377 = vmatprep.subr.mxu0 0.0
    %1378 = vmatpush1.msra.mxu0 0.0
    %1379 = vmatprep.mubr.f32.mxu0 0.0
    %1380 = vmatmul.mubr.f32.gmra.mrb[0].mxu0 %v1313
    %v1381 = vpop.f32.mrb[0].mxu0
    %v1382 = vadd.f32 0.0, %v1381
    %v1383 = vpop.f32.mrb[0].mxu0
    %1384 = vdwg.mxu0
    %v1385 = vadd.f32 %v1139, %v1382
    %v1387 = vlaneseq
    %v1388 = vshrl.u32 %v1387, 7
    %v1389 = vsub.s32 0, %v1388
    %v1390 = vrot.slane %v139, %v1389
    %v1392 = vadd.f32 %v1385, %v1390
    %v1393 = vadd.f32 %v158, %v1392
    %v1394 = vsel %vm167, %v1393, 0.0
    %1395 = vadd.xlane.f32.xlu0 %v1394
    %v1396 = vpop.xlane.xlu0 %1395
    %v1397 = vrcp.pop 32.0
    %v1398 = vmul.f32 %v1396, %v1397
    %v1399 = vsub.f32 %v1393, %v1398
    %v1400 = vmul.f32 %v1399, %v1399
    %v1401 = vsel %vm167, %v1400, 0.0
    %1402 = vadd.xlane.f32.xlu0 %v1401
    %v1403 = vpop.xlane.xlu0 %1402
    %v1404 = vmul.f32 %v1403, %v1397
    %v1405 = vadd.f32 %v1404, 1e-05
    %v1406 = vrsqrt.pop %v1405
    %v1407 = vmul.f32 %v1399, %v1406
    %v1409 = vlaneseq
    %v1410 = vshrl.u32 %v1409, 7
    %v1411 = vsub.s32 0, %v1410
    %v1412 = vrot.slane %v140, %v1411
    %v1414 = vmul.f32 %v1407, %v1412
    %v1416 = vlaneseq
    %v1417 = vshrl.u32 %v1416, 7
    %v1418 = vsub.s32 0, %v1417
    %v1419 = vrot.slane %v141, %v1418
    %v1421 = vadd.f32 %v1414, %v1419
    %v1423 = vlaneseq
    %v1424 = vshrl.u32 %v1423, 7
    %v1425 = vsub.s32 0, %v1424
    %v1426 = vrot.slane %v146, %v1425
    %v1429 = vsel %vm167, %v1421, 0
    %1431 = vmatprep.subr.mxu0 0.0
    %1432 = vmatpush1.msra.mxu0 %v142
    %1433 = vmatprep.subr.mxu0 0.0
    %1434 = vmatpush1.msra.mxu0 %v143
    %1435 = vmatprep.subr.mxu0 0.0
    %1436 = vmatpush1.msra.mxu0 %v144
    %1437 = vmatprep.subr.mxu0 0.0
    %1438 = vmatpush1.msra.mxu0 %v145
    %1439 = vmatprep.subr.mxu0 0.0
    %1440 = vmatpush1.msra.mxu0 0.0
    %1441 = vmatprep.subr.mxu0 0.0
    %1442 = vmatpush1.msra.mxu0 0.0
    %1443 = vmatprep.subr.mxu0 0.0
    %1444 = vmatpush1.msra.mxu0 0.0
    %1445 = vmatprep.subr.mxu0 0.0
    %1446 = vmatpush1.msra.mxu0 0.0
    %1447 = vmatprep.subr.mxu0 0.0
    %1448 = vmatpush1.msra.mxu0 0.0
    %1449 = vmatprep.subr.mxu0 0.0
    %1450 = vmatpush1.msra.mxu0 0.0
    %1451 = vmatprep.subr.mxu0 0.0
    %1452 = vmatpush1.msra.mxu0 0.0
    %1453 = vmatprep.subr.mxu0 0.0
    %1454 = vmatpush1.msra.mxu0 0.0
    %1455 = vmatprep.subr.mxu0 0.0
    %1456 = vmatpush1.msra.mxu0 0.0
    %1457 = vmatprep.subr.mxu0 0.0
    %1458 = vmatpush1.msra.mxu0 0.0
    %1459 = vmatprep.subr.mxu0 0.0
    %1460 = vmatpush1.msra.mxu0 0.0
    %1461 = vmatprep.subr.mxu0 0.0
    %1462 = vmatpush1.msra.mxu0 0.0
    %1463 = vmatprep.subr.mxu0 0.0
    %1464 = vmatpush1.msra.mxu0 0.0
    %1465 = vmatprep.subr.mxu0 0.0
    %1466 = vmatpush1.msra.mxu0 0.0
    %1467 = vmatprep.subr.mxu0 0.0
    %1468 = vmatpush1.msra.mxu0 0.0
    %1469 = vmatprep.subr.mxu0 0.0
    %1470 = vmatpush1.msra.mxu0 0.0
    %1471 = vmatprep.subr.mxu0 0.0
    %1472 = vmatpush1.msra.mxu0 0.0
    %1473 = vmatprep.subr.mxu0 0.0
    %1474 = vmatpush1.msra.mxu0 0.0
    %1475 = vmatprep.subr.mxu0 0.0
    %1476 = vmatpush1.msra.mxu0 0.0
    %1477 = vmatprep.subr.mxu0 0.0
    %1478 = vmatpush1.msra.mxu0 0.0
    %1479 = vmatprep.subr.mxu0 0.0
    %1480 = vmatpush1.msra.mxu0 0.0
    %1481 = vmatprep.subr.mxu0 0.0
    %1482 = vmatpush1.msra.mxu0 0.0
    %1483 = vmatprep.subr.mxu0 0.0
    %1484 = vmatpush1.msra.mxu0 0.0
    %1485 = vmatprep.subr.mxu0 0.0
    %1486 = vmatpush1.msra.mxu0 0.0
    %1487 = vmatprep.subr.mxu0 0.0
    %1488 = vmatpush1.msra.mxu0 0.0
    %1489 = vmatprep.subr.mxu0 0.0
    %1490 = vmatpush1.msra.mxu0 0.0
    %1491 = vmatprep.subr.mxu0 0.0
    %1492 = vmatpush1.msra.mxu0 0.0
    %1493 = vmatprep.subr.mxu0 0.0
    %1494 = vmatpush1.msra.mxu0 0.0
    %1495 = vmatprep.mubr.f32.mxu0 0.0
    %1496 = vmatmul.mubr.f32.gmra.mrb[0].mxu0 %v1429
    %v1497 = vpop.f32.mrb[0].mxu0
    %v1498 = vadd.f32 %v1426, %v1497
    %v1499 = vpop.f32.mrb[0].mxu0
    %1500 = vdwg.mxu0
    %v1501 = vmax.f32 %v1498, 0.0
    %v1503 = vlaneseq
    %v1504 = vshrl.u32 %v1503, 7
    %v1505 = vsub.s32 0, %v1504
    %v1506 = vrot.slane %v155, %v1505
    %vm1508 = vcmask 523264
    %v1510 = vsel %vm1508, %v1501, 0
    %1512 = vmatprep.subr.mxu0 0.0
    %1513 = vmatpush1.msra.mxu0 %v147
    %1514 = vmatprep.subr.mxu0 0.0
    %1515 = vmatpush1.msra.mxu0 %v148
    %1516 = vmatprep.subr.mxu0 0.0
    %1517 = vmatpush1.msra.mxu0 %v149
    %1518 = vmatprep.subr.mxu0 0.0
    %1519 = vmatpush1.msra.mxu0 %v150
    %1520 = vmatprep.subr.mxu0 0.0
    %1521 = vmatpush1.msra.mxu0 %v151
    %1522 = vmatprep.subr.mxu0 0.0
    %1523 = vmatpush1.msra.mxu0 %v152
    %1524 = vmatprep.subr.mxu0 0.0
    %1525 = vmatpush1.msra.mxu0 %v153
    %1526 = vmatprep.subr.mxu0 0.0
    %1527 = vmatpush1.msra.mxu0 %v154
    %1528 = vmatprep.subr.mxu0 0.0
    %1529 = vmatpush1.msra.mxu0 0.0
    %1530 = vmatprep.subr.mxu0 0.0
    %1531 = vmatpush1.msra.mxu0 0.0
    %1532 = vmatprep.subr.mxu0 0.0
    %1533 = vmatpush1.msra.mxu0 0.0
    %1534 = vmatprep.subr.mxu0 0.0
    %1535 = vmatpush1.msra.mxu0 0.0
    %1536 = vmatprep.subr.mxu0 0.0
    %1537 = vmatpush1.msra.mxu0 0.0
    %1538 = vmatprep.subr.mxu0 0.0
    %1539 = vmatpush1.msra.mxu0 0.0
    %1540 = vmatprep.subr.mxu0 0.0
    %1541 = vmatpush1.msra.mxu0 0.0
    %1542 = vmatprep.subr.mxu0 0.0
    %1543 = vmatpush1.msra.mxu0 0.0
    %1544 = vmatprep.subr.mxu0 0.0
    %1545 = vmatpush1.msra.mxu0 0.0
    %1546 = vmatprep.subr.mxu0 0.0
    %1547 = vmatpush1.msra.mxu0 0.0
    %1548 = vmatprep.subr.mxu0 0.0
    %1549 = vmatpush1.msra.mxu0 0.0
    %1550 = vmatprep.subr.mxu0 0.0
    %1551 = vmatpush1.msra.mxu0 0.0
    %1552 = vmatprep.subr.mxu0 0.0
    %1553 = vmatpush1.msra.mxu0 0.0
    %1554 = vmatprep.subr.mxu0 0.0
    %1555 = vmatpush1.msra.mxu0 0.0
    %1556 = vmatprep.subr.mxu0 0.0
    %1557 = vmatpush1.msra.mxu0 0.0
    %1558 = vmatprep.subr.mxu0 0.0
    %1559 = vmatpush1.msra.mxu0 0.0
    %1560 = vmatprep.subr.mxu0 0.0
    %1561 = vmatpush1.msra.mxu0 0.0
    %1562 = vmatprep.subr.mxu0 0.0
    %1563 = vmatpush1.msra.mxu0 0.0
    %1564 = vmatprep.subr.mxu0 0.0
    %1565 = vmatpush1.msra.mxu0 0.0
    %1566 = vmatprep.subr.mxu0 0.0
    %1567 = vmatpush1.msra.mxu0 0.0
    %1568 = vmatprep.subr.mxu0 0.0
    %1569 = vmatpush1.msra.mxu0 0.0
    %1570 = vmatprep.subr.mxu0 0.0
    %1571 = vmatpush1.msra.mxu0 0.0
    %1572 = vmatprep.subr.mxu0 0.0
    %1573 = vmatpush1.msra.mxu0 0.0
    %1574 = vmatprep.subr.mxu0 0.0
    %1575 = vmatpush1.msra.mxu0 0.0
    %1576 = vmatprep.mubr.f32.mxu0 0.0
    %1577 = vmatmul.mubr.f32.gmra.mrb[0].mxu0 %v1510
    %v1578 = vpop.f32.mrb[0].mxu0
    %v1579 = vadd.f32 %v1506, %v1578
    %v1580 = vpop.f32.mrb[0].mxu0
    %1581 = vdwg.mxu0
    %v1582 = vadd.f32 %v1421, %v1579
    %v1583 = vsel %vm167, %v1582, 0.0
    %1584 = vadd.xlane.f32.xlu0 %v1583
    %v1585 = vpop.xlane.xlu0 %1584
    %v1586 = vmul.f32 %v1585, %v1397
    %v1587 = vsub.f32 %v1582, %v1586
    %v1588 = vmul.f32 %v1587, %v1587
    %v1589 = vsel %vm167, %v1588, 0.0
    %1590 = vadd.xlane.f32.xlu0 %v1589
    %v1591 = vpop.xlane.xlu0 %1590
    %v1592 = vmul.f32 %v1591, %v1397
    %v1593 = vadd.f32 %v1592, 1e-05
    %v1594 = vrsqrt.pop %v1593
    %v1595 = vmul.f32 %v1587, %v1594
    %v1597 = vlaneseq
    %v1598 = vshrl.u32 %v1597, 7
    %v1599 = vsub.s32 0, %v1598
    %v1600 = vrot.slane %v156, %v1599
    %v1602 = vmul.f32 %v1595, %v1600
    %v1604 = vlaneseq
    %v1605 = vshrl.u32 %v1604, 7
    %v1606 = vsub.s32 0, %v1605
    %v1607 = vrot.slane %v157, %v1606
    %v1609 = vadd.f32 %v1602, %v1607
    %1610 = vst.msk [vmem:[#allocation10] sm:$0xff] %vm167, %v1609
    %s1611 = scalar_lea.vmem [#allocation2], 8
    %v1612 = vld [vmem:[%s1611] sm:$0xff]
    %s1613 = scalar_lea.vmem %s1, 16
    %v1614 = vld [vmem:[%s1613] sm:$0xff]
    %v1615 = vld [vmem:[%s1613 + $0x8] sm:$0xff]
    %v1617 = vsel %vm167, %v1612, 0
    %1619 = vmatprep.subr.mxu0 0.0
    %1620 = vmatpush1.msra.mxu0 %v119
    %1621 = vmatprep.subr.mxu0 0.0
    %1622 = vmatpush1.msra.mxu0 %v120
    %1623 = vmatprep.subr.mxu0 0.0
    %1624 = vmatpush1.msra.mxu0 %v121
    %1625 = vmatprep.subr.mxu0 0.0
    %1626 = vmatpush1.msra.mxu0 %v122
    %1627 = vmatprep.subr.mxu0 0.0
    %1628 = vmatpush1.msra.mxu0 0.0
    %1629 = vmatprep.subr.mxu0 0.0
    %1630 = vmatpush1.msra.mxu0 0.0
    %1631 = vmatprep.subr.mxu0 0.0
    %1632 = vmatpush1.msra.mxu0 0.0
    %1633 = vmatprep.subr.mxu0 0.0
    %1634 = vmatpush1.msra.mxu0 0.0
    %1635 = vmatprep.subr.mxu0 0.0
    %1636 = vmatpush1.msra.mxu0 0.0
    %1637 = vmatprep.subr.mxu0 0.0
    %1638 = vmatpush1.msra.mxu0 0.0
    %1639 = vmatprep.subr.mxu0 0.0
    %1640 = vmatpush1.msra.mxu0 0.0
    %1641 = vmatprep.subr.mxu0 0.0
    %1642 = vmatpush1.msra.mxu0 0.0
    %1643 = vmatprep.subr.mxu0 0.0
    %1644 = vmatpush1.msra.mxu0 0.0
    %1645 = vmatprep.subr.mxu0 0.0
    %1646 = vmatpush1.msra.mxu0 0.0
    %1647 = vmatprep.subr.mxu0 0.0
    %1648 = vmatpush1.msra.mxu0 0.0
    %1649 = vmatprep.subr.mxu0 0.0
    %1650 = vmatpush1.msra.mxu0 0.0
    %1651 = vmatprep.subr.mxu0 0.0
    %1652 = vmatpush1.msra.mxu0 0.0
    %1653 = vmatprep.subr.mxu0 0.0
    %1654 = vmatpush1.msra.mxu0 0.0
    %1655 = vmatprep.subr.mxu0 0.0
    %1656 = vmatpush1.msra.mxu0 0.0
    %1657 = vmatprep.subr.mxu0 0.0
    %1658 = vmatpush1.msra.mxu0 0.0
    %1659 = vmatprep.subr.mxu0 0.0
    %1660 = vmatpush1.msra.mxu0 0.0
    %1661 = vmatprep.subr.mxu0 0.0
    %1662 = vmatpush1.msra.mxu0 0.0
    %1663 = vmatprep.subr.mxu0 0.0
    %1664 = vmatpush1.msra.mxu0 0.0
    %1665 = vmatprep.subr.mxu0 0.0
    %1666 = vmatpush1.msra.mxu0 0.0
    %1667 = vmatprep.subr.mxu0 0.0
    %1668 = vmatpush1.msra.mxu0 0.0
    %1669 = vmatprep.subr.mxu0 0.0
    %1670 = vmatpush1.msra.mxu0 0.0
    %1671 = vmatprep.subr.mxu0 0.0
    %1672 = vmatpush1.msra.mxu0 0.0
    %1673 = vmatprep.subr.mxu0 0.0
    %1674 = vmatpush1.msra.mxu0 0.0
    %1675 = vmatprep.subr.mxu0 0.0
    %1676 = vmatpush1.msra.mxu0 0.0
    %1677 = vmatprep.subr.mxu0 0.0
    %1678 = vmatpush1.msra.mxu0 0.0
    %1679 = vmatprep.subr.mxu0 0.0
    %1680 = vmatpush1.msra.mxu0 0.0
    %1681 = vmatprep.subr.mxu0 0.0
    %1682 = vmatpush1.msra.mxu0 0.0
    %1683 = vmatprep.mubr.f32.mxu0 0.0
    %1684 = vmatmul.mubr.f32.gmra.mrb[0].mxu0 %v1617
    %v1685 = vpop.f32.mrb[0].mxu0
    %v1686 = vadd.f32 %v165, %v1685
    %v1687 = vpop.f32.mrb[0].mxu0
    %1688 = vdwg.mxu0
    %v1690 = vsel %vm167, %v1614, 0
    %v1693 = vsel %vm167, %v1615, 0
    %1695 = vmatprep.subr.mxu0 0.0
    %1696 = vmatpush1.msra.mxu0 %v125
    %1697 = vmatprep.subr.mxu0 0.0
    %1698 = vmatpush1.msra.mxu0 %v126
    %1699 = vmatprep.subr.mxu0 0.0
    %1700 = vmatpush1.msra.mxu0 %v127
    %1701 = vmatprep.subr.mxu0 0.0
    %1702 = vmatpush1.msra.mxu0 %v128
    %1703 = vmatprep.subr.mxu0 0.0
    %1704 = vmatpush1.msra.mxu0 0.0
    %1705 = vmatprep.subr.mxu0 0.0
    %1706 = vmatpush1.msra.mxu0 0.0
    %1707 = vmatprep.subr.mxu0 0.0
    %1708 = vmatpush1.msra.mxu0 0.0
    %1709 = vmatprep.subr.mxu0 0.0
    %1710 = vmatpush1.msra.mxu0 0.0
    %1711 = vmatprep.subr.mxu0 0.0
    %1712 = vmatpush1.msra.mxu0 0.0
    %1713 = vmatprep.subr.mxu0 0.0
    %1714 = vmatpush1.msra.mxu0 0.0
    %1715 = vmatprep.subr.mxu0 0.0
    %1716 = vmatpush1.msra.mxu0 0.0
    %1717 = vmatprep.subr.mxu0 0.0
    %1718 = vmatpush1.msra.mxu0 0.0
    %1719 = vmatprep.subr.mxu0 0.0
    %1720 = vmatpush1.msra.mxu0 0.0
    %1721 = vmatprep.subr.mxu0 0.0
    %1722 = vmatpush1.msra.mxu0 0.0
    %1723 = vmatprep.subr.mxu0 0.0
    %1724 = vmatpush1.msra.mxu0 0.0
    %1725 = vmatprep.subr.mxu0 0.0
    %1726 = vmatpush1.msra.mxu0 0.0
    %1727 = vmatprep.subr.mxu0 0.0
    %1728 = vmatpush1.msra.mxu0 0.0
    %1729 = vmatprep.subr.mxu0 0.0
    %1730 = vmatpush1.msra.mxu0 0.0
    %1731 = vmatprep.subr.mxu0 0.0
    %1732 = vmatpush1.msra.mxu0 0.0
    %1733 = vmatprep.subr.mxu0 0.0
    %1734 = vmatpush1.msra.mxu0 0.0
    %1735 = vmatprep.subr.mxu0 0.0
    %1736 = vmatpush1.msra.mxu0 0.0
    %1737 = vmatprep.subr.mxu0 0.0
    %1738 = vmatpush1.msra.mxu0 0.0
    %1739 = vmatprep.subr.mxu0 0.0
    %1740 = vmatpush1.msra.mxu0 0.0
    %1741 = vmatprep.subr.mxu0 0.0
    %1742 = vmatpush1.msra.mxu0 0.0
    %1743 = vmatprep.subr.mxu0 0.0
    %1744 = vmatpush1.msra.mxu0 0.0
    %1745 = vmatprep.subr.mxu0 0.0
    %1746 = vmatpush1.msra.mxu0 0.0
    %1747 = vmatprep.subr.mxu0 0.0
    %1748 = vmatpush1.msra.mxu0 0.0
    %1749 = vmatprep.subr.mxu0 0.0
    %1750 = vmatpush1.msra.mxu0 0.0
    %1751 = vmatprep.subr.mxu0 0.0
    %1752 = vmatpush1.msra.mxu0 0.0
    %1753 = vmatprep.subr.mxu0 0.0
    %1754 = vmatpush1.msra.mxu0 0.0
    %1755 = vmatprep.subr.mxu0 0.0
    %1756 = vmatpush1.msra.mxu0 0.0
    %1757 = vmatprep.subr.mxu0 0.0
    %1758 = vmatpush1.msra.mxu0 0.0
    %1759 = vmatprep.mubr.f32.mxu0 0.0
    %1760 = vmatmul.mubr.f32.gmra.mrb[0].mxu0 %v1690
    %v1761 = vpop.f32.mrb[0].mxu0
    %v1762 = vadd.f32 %v245, %v1761
    %v1763 = vpop.f32.mrb[0].mxu0
    %1764 = vmatprep.mubr.f32.mxu0 0.0
    %1765 = vmatmul.mubr.f32.gmra.mrb[0].mxu0 %v1693
    %v1766 = vpop.f32.mrb[0].mxu0
    %v1767 = vadd.f32 %v245, %v1766
    %v1768 = vpop.f32.mrb[0].mxu0
    %1769 = vdwg.mxu0
    %1770 = vmatprep.subr.mxu0 0.0
    %1771 = vmatpush1.msra.mxu0 %v130
    %1772 = vmatprep.subr.mxu0 0.0
    %1773 = vmatpush1.msra.mxu0 %v131
    %1774 = vmatprep.subr.mxu0 0.0
    %1775 = vmatpush1.msra.mxu0 %v132
    %1776 = vmatprep.subr.mxu0 0.0
    %1777 = vmatpush1.msra.mxu0 %v133
    %1778 = vmatprep.subr.mxu0 0.0
    %1779 = vmatpush1.msra.mxu0 0.0
    %1780 = vmatprep.subr.mxu0 0.0
    %1781 = vmatpush1.msra.mxu0 0.0
    %1782 = vmatprep.subr.mxu0 0.0
    %1783 = vmatpush1.msra.mxu0 0.0
    %1784 = vmatprep.subr.mxu0 0.0
    %1785 = vmatpush1.msra.mxu0 0.0
    %1786 = vmatprep.subr.mxu0 0.0
    %1787 = vmatpush1.msra.mxu0 0.0
    %1788 = vmatprep.subr.mxu0 0.0
    %1789 = vmatpush1.msra.mxu0 0.0
    %1790 = vmatprep.subr.mxu0 0.0
    %1791 = vmatpush1.msra.mxu0 0.0
    %1792 = vmatprep.subr.mxu0 0.0
    %1793 = vmatpush1.msra.mxu0 0.0
    %1794 = vmatprep.subr.mxu0 0.0
    %1795 = vmatpush1.msra.mxu0 0.0
    %1796 = vmatprep.subr.mxu0 0.0
    %1797 = vmatpush1.msra.mxu0 0.0
    %1798 = vmatprep.subr.mxu0 0.0
    %1799 = vmatpush1.msra.mxu0 0.0
    %1800 = vmatprep.subr.mxu0 0.0
    %1801 = vmatpush1.msra.mxu0 0.0
    %1802 = vmatprep.subr.mxu0 0.0
    %1803 = vmatpush1.msra.mxu0 0.0
    %1804 = vmatprep.subr.mxu0 0.0
    %1805 = vmatpush1.msra.mxu0 0.0
    %1806 = vmatprep.subr.mxu0 0.0
    %1807 = vmatpush1.msra.mxu0 0.0
    %1808 = vmatprep.subr.mxu0 0.0
    %1809 = vmatpush1.msra.mxu0 0.0
    %1810 = vmatprep.subr.mxu0 0.0
    %1811 = vmatpush1.msra.mxu0 0.0
    %1812 = vmatprep.subr.mxu0 0.0
    %1813 = vmatpush1.msra.mxu0 0.0
    %1814 = vmatprep.subr.mxu0 0.0
    %1815 = vmatpush1.msra.mxu0 0.0
    %1816 = vmatprep.subr.mxu0 0.0
    %1817 = vmatpush1.msra.mxu0 0.0
    %1818 = vmatprep.subr.mxu0 0.0
    %1819 = vmatpush1.msra.mxu0 0.0
    %1820 = vmatprep.subr.mxu0 0.0
    %1821 = vmatpush1.msra.mxu0 0.0
    %1822 = vmatprep.subr.mxu0 0.0
    %1823 = vmatpush1.msra.mxu0 0.0
    %1824 = vmatprep.subr.mxu0 0.0
    %1825 = vmatpush1.msra.mxu0 0.0
    %1826 = vmatprep.subr.mxu0 0.0
    %1827 = vmatpush1.msra.mxu0 0.0
    %1828 = vmatprep.subr.mxu0 0.0
    %1829 = vmatpush1.msra.mxu0 0.0
    %1830 = vmatprep.subr.mxu0 0.0
    %1831 = vmatpush1.msra.mxu0 0.0
    %1832 = vmatprep.subr.mxu0 0.0
    %1833 = vmatpush1.msra.mxu0 0.0
    %1834 = vmatprep.mubr.f32.mxu0 0.0
    %1835 = vmatmul.mubr.f32.gmra.mrb[0].mxu0 %v1690
    %v1836 = vpop.f32.mrb[0].mxu0
    %v1837 = vadd.f32 %v332, %v1836
    %v1838 = vpop.f32.mrb[0].mxu0
    %1839 = vmatprep.mubr.f32.mxu0 0.0
    %1840 = vmatmul.mubr.f32.gmra.mrb[0].mxu0 %v1693
    %v1841 = vpop.f32.mrb[0].mxu0
    %v1842 = vadd.f32 %v332, %v1841
    %v1843 = vpop.f32.mrb[0].mxu0
    %1844 = vdwg.mxu0
    %v1846 = vsel %vm409, %v1686, 0
    %v1849 = vsel %vm409, %v1762, 0
    %v1852 = vsel %vm409, %v1767, 0
    %1854 = vmatprep.subr.mxu0 0.0
    %1855 = vmatpush1.xpose.msra.mxu0 %v1849
    %1856 = vmatprep.subr.mxu0 0.0
    %1857 = vmatpush1.xpose.msra.mxu0 %v1852
    %1858 = vmatprep.subr.mxu0 0.0
    %1859 = vmatpush1.xpose.msra.mxu0 0.0
    %1860 = vmatprep.subr.mxu0 0.0
    %1861 = vmatpush1.xpose.msra.mxu0 0.0
    %1862 = vmatprep.subr.mxu0 0.0
    %1863 = vmatpush1.xpose.msra.mxu0 0.0
    %1864 = vmatprep.subr.mxu0 0.0
    %1865 = vmatpush1.xpose.msra.mxu0 0.0
    %1866 = vmatprep.subr.mxu0 0.0
    %1867 = vmatpush1.xpose.msra.mxu0 0.0
    %1868 = vmatprep.subr.mxu0 0.0
    %1869 = vmatpush1.xpose.msra.mxu0 0.0
    %1870 = vmatprep.subr.mxu0 0.0
    %1871 = vmatpush1.xpose.msra.mxu0 0.0
    %1872 = vmatprep.subr.mxu0 0.0
    %1873 = vmatpush1.xpose.msra.mxu0 0.0
    %1874 = vmatprep.subr.mxu0 0.0
    %1875 = vmatpush1.xpose.msra.mxu0 0.0
    %1876 = vmatprep.subr.mxu0 0.0
    %1877 = vmatpush1.xpose.msra.mxu0 0.0
    %1878 = vmatprep.subr.mxu0 0.0
    %1879 = vmatpush1.xpose.msra.mxu0 0.0
    %1880 = vmatprep.subr.mxu0 0.0
    %1881 = vmatpush1.xpose.msra.mxu0 0.0
    %1882 = vmatprep.subr.mxu0 0.0
    %1883 = vmatpush1.xpose.msra.mxu0 0.0
    %1884 = vmatprep.subr.mxu0 0.0
    %1885 = vmatpush1.xpose.msra.mxu0 0.0
    %1886 = vmatprep.subr.mxu0 0.0
    %1887 = vmatpush1.xpose.msra.mxu0 0.0
    %1888 = vmatprep.subr.mxu0 0.0
    %1889 = vmatpush1.xpose.msra.mxu0 0.0
    %1890 = vmatprep.subr.mxu0 0.0
    %1891 = vmatpush1.xpose.msra.mxu0 0.0
    %1892 = vmatprep.subr.mxu0 0.0
    %1893 = vmatpush1.xpose.msra.mxu0 0.0
    %1894 = vmatprep.subr.mxu0 0.0
    %1895 = vmatpush1.xpose.msra.mxu0 0.0
    %1896 = vmatprep.subr.mxu0 0.0
    %1897 = vmatpush1.xpose.msra.mxu0 0.0
    %1898 = vmatprep.subr.mxu0 0.0
    %1899 = vmatpush1.xpose.msra.mxu0 0.0
    %1900 = vmatprep.subr.mxu0 0.0
    %1901 = vmatpush1.xpose.msra.mxu0 0.0
    %1902 = vmatprep.subr.mxu0 0.0
    %1903 = vmatpush1.xpose.msra.mxu0 0.0
    %1904 = vmatprep.subr.mxu0 0.0
    %1905 = vmatpush1.xpose.msra.mxu0 0.0
    %1906 = vmatprep.subr.mxu0 0.0
    %1907 = vmatpush1.xpose.msra.mxu0 0.0
    %1908 = vmatprep.subr.mxu0 0.0
    %1909 = vmatpush1.xpose.msra.mxu0 0.0
    %1910 = vmatprep.subr.mxu0 0.0
    %1911 = vmatpush1.xpose.msra.mxu0 0.0
    %1912 = vmatprep.subr.mxu0 0.0
    %1913 = vmatpush1.xpose.msra.mxu0 0.0
    %1914 = vmatprep.subr.mxu0 0.0
    %1915 = vmatpush1.xpose.msra.mxu0 0.0
    %1916 = vmatprep.subr.mxu0 0.0
    %1917 = vmatpush1.xpose.msra.mxu0 0.0
    %1918 = vmatprep.mubr.f32.mxu0 0.0
    %1919 = vmatmul.mubr.f32.gmra.mrb[0].mxu0 %v1846
    %v1920 = vpop.f32.mrb[0].mxu0
    %v1921 = vadd.f32 0.0, %v1920
    %v1922 = vpop.f32.mrb[0].mxu0
    %1923 = vdwg.mxu0
    %v1924 = vsel %vm489, %v1921, -inf
    %1925 = vmax.xlane.f32.xlu0 %v1924
    %v1926 = vpop.xlane.xlu0 %1925
    %v1927 = vsub.f32 %v1921, %v1926
    %v1928 = vmul.f32 %v1927, 1.442695
    %v1929 = vpow.pop %v1928
    %v1930 = vsel %vm489, %v1929, 0.0
    %1931 = vadd.xlane.f32.xlu0 %v1930
    %v1932 = vpop.xlane.xlu0 %1931
    %v1933 = vrcp.pop %v1932
    %v1934 = vmul.f32 %v1929, %v1933
    %v1936 = vsel %vm489, %v1934, 0
    %1938 = vmatprep.subr.mxu0 0.0
    %1939 = vmatpush1.msra.mxu0 %v1837
    %1940 = vmatprep.subr.mxu0 0.0
    %1941 = vmatpush1.msra.mxu0 %v1842
    %1942 = vmatprep.subr.mxu0 0.0
    %1943 = vmatpush1.msra.mxu0 0.0
    %1944 = vmatprep.subr.mxu0 0.0
    %1945 = vmatpush1.msra.mxu0 0.0
    %1946 = vmatprep.subr.mxu0 0.0
    %1947 = vmatpush1.msra.mxu0 0.0
    %1948 = vmatprep.subr.mxu0 0.0
    %1949 = vmatpush1.msra.mxu0 0.0
    %1950 = vmatprep.subr.mxu0 0.0
    %1951 = vmatpush1.msra.mxu0 0.0
    %1952 = vmatprep.subr.mxu0 0.0
    %1953 = vmatpush1.msra.mxu0 0.0
    %1954 = vmatprep.subr.mxu0 0.0
    %1955 = vmatpush1.msra.mxu0 0.0
    %1956 = vmatprep.subr.mxu0 0.0
    %1957 = vmatpush1.msra.mxu0 0.0
    %1958 = vmatprep.subr.mxu0 0.0
    %1959 = vmatpush1.msra.mxu0 0.0
    %1960 = vmatprep.subr.mxu0 0.0
    %1961 = vmatpush1.msra.mxu0 0.0
    %1962 = vmatprep.subr.mxu0 0.0
    %1963 = vmatpush1.msra.mxu0 0.0
    %1964 = vmatprep.subr.mxu0 0.0
    %1965 = vmatpush1.msra.mxu0 0.0
    %1966 = vmatprep.subr.mxu0 0.0
    %1967 = vmatpush1.msra.mxu0 0.0
    %1968 = vmatprep.subr.mxu0 0.0
    %1969 = vmatpush1.msra.mxu0 0.0
    %1970 = vmatprep.subr.mxu0 0.0
    %1971 = vmatpush1.msra.mxu0 0.0
    %1972 = vmatprep.subr.mxu0 0.0
    %1973 = vmatpush1.msra.mxu0 0.0
    %1974 = vmatprep.subr.mxu0 0.0
    %1975 = vmatpush1.msra.mxu0 0.0
    %1976 = vmatprep.subr.mxu0 0.0
    %1977 = vmatpush1.msra.mxu0 0.0
    %1978 = vmatprep.subr.mxu0 0.0
    %1979 = vmatpush1.msra.mxu0 0.0
    %1980 = vmatprep.subr.mxu0 0.0
    %1981 = vmatpush1.msra.mxu0 0.0
    %1982 = vmatprep.subr.mxu0 0.0
    %1983 = vmatpush1.msra.mxu0 0.0
    %1984 = vmatprep.subr.mxu0 0.0
    %1985 = vmatpush1.msra.mxu0 0.0
    %1986 = vmatprep.subr.mxu0 0.0
    %1987 = vmatpush1.msra.mxu0 0.0
    %1988 = vmatprep.subr.mxu0 0.0
    %1989 = vmatpush1.msra.mxu0 0.0
    %1990 = vmatprep.subr.mxu0 0.0
    %1991 = vmatpush1.msra.mxu0 0.0
    %1992 = vmatprep.subr.mxu0 0.0
    %1993 = vmatpush1.msra.mxu0 0.0
    %1994 = vmatprep.subr.mxu0 0.0
    %1995 = vmatpush1.msra.mxu0 0.0
    %1996 = vmatprep.subr.mxu0 0.0
    %1997 = vmatpush1.msra.mxu0 0.0
    %1998 = vmatprep.subr.mxu0 0.0
    %1999 = vmatpush1.msra.mxu0 0.0
    %2000 = vmatprep.subr.mxu0 0.0
    %2001 = vmatpush1.msra.mxu0 0.0
    %2002 = vmatprep.mubr.f32.mxu0 0.0
    %2003 = vmatmul.mubr.f32.gmra.mrb[0].mxu0 %v1936
    %v2004 = vpop.f32.mrb[0].mxu0
    %v2005 = vadd.f32 0.0, %v2004
    %v2006 = vpop.f32.mrb[0].mxu0
    %2007 = vdwg.mxu0
    %2008 = vrot.lane.b32.xlu0 %v1686, 120
    %v2009 = vpop.permute.xlu0 %2008
    %2010 = vrot.lane.b32.xlu0 %v1762, 120
    %v2011 = vpop.permute.xlu0 %2010
    %2012 = vrot.lane.b32.xlu0 %v1767, 120
    %v2013 = vpop.permute.xlu0 %2012
    %v2014 = vsel %vm409, %v2009, 0
    %v2016 = vsel %vm409, %v2011, 0
    %v2018 = vsel %vm409, %v2013, 0
    %2020 = vmatprep.subr.mxu0 0.0
    %2021 = vmatpush1.xpose.msra.mxu0 %v2016
    %2022 = vmatprep.subr.mxu0 0.0
    %2023 = vmatpush1.xpose.msra.mxu0 %v2018
    %2024 = vmatprep.subr.mxu0 0.0
    %2025 = vmatpush1.xpose.msra.mxu0 0.0
    %2026 = vmatprep.subr.mxu0 0.0
    %2027 = vmatpush1.xpose.msra.mxu0 0.0
    %2028 = vmatprep.subr.mxu0 0.0
    %2029 = vmatpush1.xpose.msra.mxu0 0.0
    %2030 = vmatprep.subr.mxu0 0.0
    %2031 = vmatpush1.xpose.msra.mxu0 0.0
    %2032 = vmatprep.subr.mxu0 0.0
    %2033 = vmatpush1.xpose.msra.mxu0 0.0
    %2034 = vmatprep.subr.mxu0 0.0
    %2035 = vmatpush1.xpose.msra.mxu0 0.0
    %2036 = vmatprep.subr.mxu0 0.0
    %2037 = vmatpush1.xpose.msra.mxu0 0.0
    %2038 = vmatprep.subr.mxu0 0.0
    %2039 = vmatpush1.xpose.msra.mxu0 0.0
    %2040 = vmatprep.subr.mxu0 0.0
    %2041 = vmatpush1.xpose.msra.mxu0 0.0
    %2042 = vmatprep.subr.mxu0 0.0
    %2043 = vmatpush1.xpose.msra.mxu0 0.0
    %2044 = vmatprep.subr.mxu0 0.0
    %2045 = vmatpush1.xpose.msra.mxu0 0.0
    %2046 = vmatprep.subr.mxu0 0.0
    %2047 = vmatpush1.xpose.msra.mxu0 0.0
    %2048 = vmatprep.subr.mxu0 0.0
    %2049 = vmatpush1.xpose.msra.mxu0 0.0
    %2050 = vmatprep.subr.mxu0 0.0
    %2051 = vmatpush1.xpose.msra.mxu0 0.0
    %2052 = vmatprep.subr.mxu0 0.0
    %2053 = vmatpush1.xpose.msra.mxu0 0.0
    %2054 = vmatprep.subr.mxu0 0.0
    %2055 = vmatpush1.xpose.msra.mxu0 0.0
    %2056 = vmatprep.subr.mxu0 0.0
    %2057 = vmatpush1.xpose.msra.mxu0 0.0
    %2058 = vmatprep.subr.mxu0 0.0
    %2059 = vmatpush1.xpose.msra.mxu0 0.0
    %2060 = vmatprep.subr.mxu0 0.0
    %2061 = vmatpush1.xpose.msra.mxu0 0.0
    %2062 = vmatprep.subr.mxu0 0.0
    %2063 = vmatpush1.xpose.msra.mxu0 0.0
    %2064 = vmatprep.subr.mxu0 0.0
    %2065 = vmatpush1.xpose.msra.mxu0 0.0
    %2066 = vmatprep.subr.mxu0 0.0
    %2067 = vmatpush1.xpose.msra.mxu0 0.0
    %2068 = vmatprep.subr.mxu0 0.0
    %2069 = vmatpush1.xpose.msra.mxu0 0.0
    %2070 = vmatprep.subr.mxu0 0.0
    %2071 = vmatpush1.xpose.msra.mxu0 0.0
    %2072 = vmatprep.subr.mxu0 0.0
    %2073 = vmatpush1.xpose.msra.mxu0 0.0
    %2074 = vmatprep.subr.mxu0 0.0
    %2075 = vmatpush1.xpose.msra.mxu0 0.0
    %2076 = vmatprep.subr.mxu0 0.0
    %2077 = vmatpush1.xpose.msra.mxu0 0.0
    %2078 = vmatprep.subr.mxu0 0.0
    %2079 = vmatpush1.xpose.msra.mxu0 0.0
    %2080 = vmatprep.subr.mxu0 0.0
    %2081 = vmatpush1.xpose.msra.mxu0 0.0
    %2082 = vmatprep.subr.mxu0 0.0
    %2083 = vmatpush1.xpose.msra.mxu0 0.0
    %2084 = vmatprep.mubr.f32.mxu0 0.0
    %2085 = vmatmul.mubr.f32.gmra.mrb[0].mxu0 %v2014
    %v2086 = vpop.f32.mrb[0].mxu0
    %v2087 = vadd.f32 0.0, %v2086
    %v2088 = vpop.f32.mrb[0].mxu0
    %2089 = vdwg.mxu0
    %v2090 = vsel %vm489, %v2087, -inf
    %2091 = vmax.xlane.f32.xlu0 %v2090
    %v2092 = vpop.xlane.xlu0 %2091
    %v2093 = vsub.f32 %v2087, %v2092
    %v2094 = vmul.f32 %v2093, 1.442695
    %v2095 = vpow.pop %v2094
    %v2096 = vsel %vm489, %v2095, 0.0
    %2097 = vadd.xlane.f32.xlu0 %v2096
    %v2098 = vpop.xlane.xlu0 %2097
    %v2099 = vrcp.pop %v2098
    %v2100 = vmul.f32 %v2095, %v2099
    %2103 = vrot.lane.b32.xlu0 %v1837, 120
    %v2104 = vpop.permute.xlu0 %2103
    %2105 = vrot.lane.b32.xlu0 %v1842, 120
    %v2106 = vpop.permute.xlu0 %2105
    %v2110 = vsel %vm489, %v2100, 0
    %2112 = vmatprep.subr.mxu0 0.0
    %2113 = vmatpush1.msra.mxu0 %v2104
    %2114 = vmatprep.subr.mxu0 0.0
    %2115 = vmatpush1.msra.mxu0 %v2106
    %2116 = vmatprep.subr.mxu0 0.0
    %2117 = vmatpush1.msra.mxu0 0.0
    %2118 = vmatprep.subr.mxu0 0.0
    %2119 = vmatpush1.msra.mxu0 0.0
    %2120 = vmatprep.subr.mxu0 0.0
    %2121 = vmatpush1.msra.mxu0 0.0
    %2122 = vmatprep.subr.mxu0 0.0
    %2123 = vmatpush1.msra.mxu0 0.0
    %2124 = vmatprep.subr.mxu0 0.0
    %2125 = vmatpush1.msra.mxu0 0.0
    %2126 = vmatprep.subr.mxu0 0.0
    %2127 = vmatpush1.msra.mxu0 0.0
    %2128 = vmatprep.subr.mxu0 0.0
    %2129 = vmatpush1.msra.mxu0 0.0
    %2130 = vmatprep.subr.mxu0 0.0
    %2131 = vmatpush1.msra.mxu0 0.0
    %2132 = vmatprep.subr.mxu0 0.0
    %2133 = vmatpush1.msra.mxu0 0.0
    %2134 = vmatprep.subr.mxu0 0.0
    %2135 = vmatpush1.msra.mxu0 0.0
    %2136 = vmatprep.subr.mxu0 0.0
    %2137 = vmatpush1.msra.mxu0 0.0
    %2138 = vmatprep.subr.mxu0 0.0
    %2139 = vmatpush1.msra.mxu0 0.0
    %2140 = vmatprep.subr.mxu0 0.0
    %2141 = vmatpush1.msra.mxu0 0.0
    %2142 = vmatprep.subr.mxu0 0.0
    %2143 = vmatpush1.msra.mxu0 0.0
    %2144 = vmatprep.subr.mxu0 0.0
    %2145 = vmatpush1.msra.mxu0 0.0
    %2146 = vmatprep.subr.mxu0 0.0
    %2147 = vmatpush1.msra.mxu0 0.0
    %2148 = vmatprep.subr.mxu0 0.0
    %2149 = vmatpush1.msra.mxu0 0.0
    %2150 = vmatprep.subr.mxu0 0.0
    %2151 = vmatpush1.msra.mxu0 0.0
    %2152 = vmatprep.subr.mxu0 0.0
    %2153 = vmatpush1.msra.mxu0 0.0
    %2154 = vmatprep.subr.mxu0 0.0
    %2155 = vmatpush1.msra.mxu0 0.0
    %2156 = vmatprep.subr.mxu0 0.0
    %2157 = vmatpush1.msra.mxu0 0.0
    %2158 = vmatprep.subr.mxu0 0.0
    %2159 = vmatpush1.msra.mxu0 0.0
    %2160 = vmatprep.subr.mxu0 0.0
    %2161 = vmatpush1.msra.mxu0 0.0
    %2162 = vmatprep.subr.mxu0 0.0
    %2163 = vmatpush1.msra.mxu0 0.0
    %2164 = vmatprep.subr.mxu0 0.0
    %2165 = vmatpush1.msra.mxu0 0.0
    %2166 = vmatprep.subr.mxu0 0.0
    %2167 = vmatpush1.msra.mxu0 0.0
    %2168 = vmatprep.subr.mxu0 0.0
    %2169 = vmatpush1.msra.mxu0 0.0
    %2170 = vmatprep.subr.mxu0 0.0
    %2171 = vmatpush1.msra.mxu0 0.0
    %2172 = vmatprep.subr.mxu0 0.0
    %2173 = vmatpush1.msra.mxu0 0.0
    %2174 = vmatprep.subr.mxu0 0.0
    %2175 = vmatpush1.msra.mxu0 0.0
    %2176 = vmatprep.mubr.f32.mxu0 0.0
    %2177 = vmatmul.mubr.f32.gmra.mrb[0].mxu0 %v2110
    %v2178 = vpop.f32.mrb[0].mxu0
    %v2179 = vadd.f32 0.0, %v2178
    %v2180 = vpop.f32.mrb[0].mxu0
    %2181 = vdwg.mxu0
    %v2183 = vsel %vm409, %v2179, 0
    %2185 = vmatprep.subr.mxu0 0.0
    %2186 = vmatpush1.msra.mxu0 %v136
    %2187 = vmatprep.subr.mxu0 0.0
    %2188 = vmatpush1.msra.mxu0 0.0
    %2189 = vmatprep.subr.mxu0 0.0
    %2190 = vmatpush1.msra.mxu0 0.0
    %2191 = vmatprep.subr.mxu0 0.0
    %2192 = vmatpush1.msra.mxu0 0.0
    %2193 = vmatprep.subr.mxu0 0.0
    %2194 = vmatpush1.msra.mxu0 0.0
    %2195 = vmatprep.subr.mxu0 0.0
    %2196 = vmatpush1.msra.mxu0 0.0
    %2197 = vmatprep.subr.mxu0 0.0
    %2198 = vmatpush1.msra.mxu0 0.0
    %2199 = vmatprep.subr.mxu0 0.0
    %2200 = vmatpush1.msra.mxu0 0.0
    %2201 = vmatprep.subr.mxu0 0.0
    %2202 = vmatpush1.msra.mxu0 0.0
    %2203 = vmatprep.subr.mxu0 0.0
    %2204 = vmatpush1.msra.mxu0 0.0
    %2205 = vmatprep.subr.mxu0 0.0
    %2206 = vmatpush1.msra.mxu0 0.0
    %2207 = vmatprep.subr.mxu0 0.0
    %2208 = vmatpush1.msra.mxu0 0.0
    %2209 = vmatprep.subr.mxu0 0.0
    %2210 = vmatpush1.msra.mxu0 0.0
    %2211 = vmatprep.subr.mxu0 0.0
    %2212 = vmatpush1.msra.mxu0 0.0
    %2213 = vmatprep.subr.mxu0 0.0
    %2214 = vmatpush1.msra.mxu0 0.0
    %2215 = vmatprep.subr.mxu0 0.0
    %2216 = vmatpush1.msra.mxu0 0.0
    %2217 = vmatprep.subr.mxu0 0.0
    %2218 = vmatpush1.msra.mxu0 0.0
    %2219 = vmatprep.subr.mxu0 0.0
    %2220 = vmatpush1.msra.mxu0 0.0
    %2221 = vmatprep.subr.mxu0 0.0
    %2222 = vmatpush1.msra.mxu0 0.0
    %2223 = vmatprep.subr.mxu0 0.0
    %2224 = vmatpush1.msra.mxu0 0.0
    %2225 = vmatprep.subr.mxu0 0.0
    %2226 = vmatpush1.msra.mxu0 0.0
    %2227 = vmatprep.subr.mxu0 0.0
    %2228 = vmatpush1.msra.mxu0 0.0
    %2229 = vmatprep.subr.mxu0 0.0
    %2230 = vmatpush1.msra.mxu0 0.0
    %2231 = vmatprep.subr.mxu0 0.0
    %2232 = vmatpush1.msra.mxu0 0.0
    %2233 = vmatprep.subr.mxu0 0.0
    %2234 = vmatpush1.msra.mxu0 0.0
    %2235 = vmatprep.subr.mxu0 0.0
    %2236 = vmatpush1.msra.mxu0 0.0
    %2237 = vmatprep.subr.mxu0 0.0
    %2238 = vmatpush1.msra.mxu0 0.0
    %2239 = vmatprep.subr.mxu0 0.0
    %2240 = vmatpush1.msra.mxu0 0.0
    %2241 = vmatprep.subr.mxu0 0.0
    %2242 = vmatpush1.msra.mxu0 0.0
    %2243 = vmatprep.subr.mxu0 0.0
    %2244 = vmatpush1.msra.mxu0 0.0
    %2245 = vmatprep.subr.mxu0 0.0
    %2246 = vmatpush1.msra.mxu0 0.0
    %2247 = vmatprep.subr.mxu0 0.0
    %2248 = vmatpush1.msra.mxu0 0.0
    %2249 = vmatprep.mubr.f32.mxu0 0.0
    %2250 = vmatmul.mubr.f32.gmra.mrb[0].mxu0 %v2183
    %v2251 = vpop.f32.mrb[0].mxu0
    %v2252 = vadd.f32 0.0, %v2251
    %v2253 = vpop.f32.mrb[0].mxu0
    %2254 = vdwg.mxu0
    %v2256 = vsel %vm409, %v2005, 0
    %2258 = vmatprep.subr.mxu0 0.0
    %2259 = vmatpush1.msra.mxu0 %v135
    %2260 = vmatprep.subr.mxu0 0.0
    %2261 = vmatpush1.msra.mxu0 0.0
    %2262 = vmatprep.subr.mxu0 0.0
    %2263 = vmatpush1.msra.mxu0 0.0
    %2264 = vmatprep.subr.mxu0 0.0
    %2265 = vmatpush1.msra.mxu0 0.0
    %2266 = vmatprep.subr.mxu0 0.0
    %2267 = vmatpush1.msra.mxu0 0.0
    %2268 = vmatprep.subr.mxu0 0.0
    %2269 = vmatpush1.msra.mxu0 0.0
    %2270 = vmatprep.subr.mxu0 0.0
    %2271 = vmatpush1.msra.mxu0 0.0
    %2272 = vmatprep.subr.mxu0 0.0
    %2273 = vmatpush1.msra.mxu0 0.0
    %2274 = vmatprep.subr.mxu0 0.0
    %2275 = vmatpush1.msra.mxu0 0.0
    %2276 = vmatprep.subr.mxu0 0.0
    %2277 = vmatpush1.msra.mxu0 0.0
    %2278 = vmatprep.subr.mxu0 0.0
    %2279 = vmatpush1.msra.mxu0 0.0
    %2280 = vmatprep.subr.mxu0 0.0
    %2281 = vmatpush1.msra.mxu0 0.0
    %2282 = vmatprep.subr.mxu0 0.0
    %2283 = vmatpush1.msra.mxu0 0.0
    %2284 = vmatprep.subr.mxu0 0.0
    %2285 = vmatpush1.msra.mxu0 0.0
    %2286 = vmatprep.subr.mxu0 0.0
    %2287 = vmatpush1.msra.mxu0 0.0
    %2288 = vmatprep.subr.mxu0 0.0
    %2289 = vmatpush1.msra.mxu0 0.0
    %2290 = vmatprep.subr.mxu0 0.0
    %2291 = vmatpush1.msra.mxu0 0.0
    %2292 = vmatprep.subr.mxu0 0.0
    %2293 = vmatpush1.msra.mxu0 0.0
    %2294 = vmatprep.subr.mxu0 0.0
    %2295 = vmatpush1.msra.mxu0 0.0
    %2296 = vmatprep.subr.mxu0 0.0
    %2297 = vmatpush1.msra.mxu0 0.0
    %2298 = vmatprep.subr.mxu0 0.0
    %2299 = vmatpush1.msra.mxu0 0.0
    %2300 = vmatprep.subr.mxu0 0.0
    %2301 = vmatpush1.msra.mxu0 0.0
    %2302 = vmatprep.subr.mxu0 0.0
    %2303 = vmatpush1.msra.mxu0 0.0
    %2304 = vmatprep.subr.mxu0 0.0
    %2305 = vmatpush1.msra.mxu0 0.0
    %2306 = vmatprep.subr.mxu0 0.0
    %2307 = vmatpush1.msra.mxu0 0.0
    %2308 = vmatprep.subr.mxu0 0.0
    %2309 = vmatpush1.msra.mxu0 0.0
    %2310 = vmatprep.subr.mxu0 0.0
    %2311 = vmatpush1.msra.mxu0 0.0
    %2312 = vmatprep.subr.mxu0 0.0
    %2313 = vmatpush1.msra.mxu0 0.0
    %2314 = vmatprep.subr.mxu0 0.0
    %2315 = vmatpush1.msra.mxu0 0.0
    %2316 = vmatprep.subr.mxu0 0.0
    %2317 = vmatpush1.msra.mxu0 0.0
    %2318 = vmatprep.subr.mxu0 0.0
    %2319 = vmatpush1.msra.mxu0 0.0
    %2320 = vmatprep.subr.mxu0 0.0
    %2321 = vmatpush1.msra.mxu0 0.0
    %2322 = vmatprep.mubr.f32.mxu0 0.0
    %2323 = vmatmul.mubr.f32.gmra.mrb[0].mxu0 %v2256
    %v2324 = vpop.f32.mrb[0].mxu0
    %v2325 = vadd.f32 %v2252, %v2324
    %v2326 = vpop.f32.mrb[0].mxu0
    %2327 = vdwg.mxu0
    %2328 = vrot.lane.b32.xlu0 %v1686, 112
    %v2329 = vpop.permute.xlu0 %2328
    %2330 = vrot.lane.b32.xlu0 %v1762, 112
    %v2331 = vpop.permute.xlu0 %2330
    %2332 = vrot.lane.b32.xlu0 %v1767, 112
    %v2333 = vpop.permute.xlu0 %2332
    %v2334 = vsel %vm409, %v2329, 0
    %v2336 = vsel %vm409, %v2331, 0
    %v2338 = vsel %vm409, %v2333, 0
    %2340 = vmatprep.subr.mxu0 0.0
    %2341 = vmatpush1.xpose.msra.mxu0 %v2336
    %2342 = vmatprep.subr.mxu0 0.0
    %2343 = vmatpush1.xpose.msra.mxu0 %v2338
    %2344 = vmatprep.subr.mxu0 0.0
    %2345 = vmatpush1.xpose.msra.mxu0 0.0
    %2346 = vmatprep.subr.mxu0 0.0
    %2347 = vmatpush1.xpose.msra.mxu0 0.0
    %2348 = vmatprep.subr.mxu0 0.0
    %2349 = vmatpush1.xpose.msra.mxu0 0.0
    %2350 = vmatprep.subr.mxu0 0.0
    %2351 = vmatpush1.xpose.msra.mxu0 0.0
    %2352 = vmatprep.subr.mxu0 0.0
    %2353 = vmatpush1.xpose.msra.mxu0 0.0
    %2354 = vmatprep.subr.mxu0 0.0
    %2355 = vmatpush1.xpose.msra.mxu0 0.0
    %2356 = vmatprep.subr.mxu0 0.0
    %2357 = vmatpush1.xpose.msra.mxu0 0.0
    %2358 = vmatprep.subr.mxu0 0.0
    %2359 = vmatpush1.xpose.msra.mxu0 0.0
    %2360 = vmatprep.subr.mxu0 0.0
    %2361 = vmatpush1.xpose.msra.mxu0 0.0
    %2362 = vmatprep.subr.mxu0 0.0
    %2363 = vmatpush1.xpose.msra.mxu0 0.0
    %2364 = vmatprep.subr.mxu0 0.0
    %2365 = vmatpush1.xpose.msra.mxu0 0.0
    %2366 = vmatprep.subr.mxu0 0.0
    %2367 = vmatpush1.xpose.msra.mxu0 0.0
    %2368 = vmatprep.subr.mxu0 0.0
    %2369 = vmatpush1.xpose.msra.mxu0 0.0
    %2370 = vmatprep.subr.mxu0 0.0
    %2371 = vmatpush1.xpose.msra.mxu0 0.0
    %2372 = vmatprep.subr.mxu0 0.0
    %2373 = vmatpush1.xpose.msra.mxu0 0.0
    %2374 = vmatprep.subr.mxu0 0.0
    %2375 = vmatpush1.xpose.msra.mxu0 0.0
    %2376 = vmatprep.subr.mxu0 0.0
    %2377 = vmatpush1.xpose.msra.mxu0 0.0
    %2378 = vmatprep.subr.mxu0 0.0
    %2379 = vmatpush1.xpose.msra.mxu0 0.0
    %2380 = vmatprep.subr.mxu0 0.0
    %2381 = vmatpush1.xpose.msra.mxu0 0.0
    %2382 = vmatprep.subr.mxu0 0.0
    %2383 = vmatpush1.xpose.msra.mxu0 0.0
    %2384 = vmatprep.subr.mxu0 0.0
    %2385 = vmatpush1.xpose.msra.mxu0 0.0
    %2386 = vmatprep.subr.mxu0 0.0
    %2387 = vmatpush1.xpose.msra.mxu0 0.0
    %2388 = vmatprep.subr.mxu0 0.0
    %2389 = vmatpush1.xpose.msra.mxu0 0.0
    %2390 = vmatprep.subr.mxu0 0.0
    %2391 = vmatpush1.xpose.msra.mxu0 0.0
    %2392 = vmatprep.subr.mxu0 0.0
    %2393 = vmatpush1.xpose.msra.mxu0 0.0
    %2394 = vmatprep.subr.mxu0 0.0
    %2395 = vmatpush1.xpose.msra.mxu0 0.0
    %2396 = vmatprep.subr.mxu0 0.0
    %2397 = vmatpush1.xpose.msra.mxu0 0.0
    %2398 = vmatprep.subr.mxu0 0.0
    %2399 = vmatpush1.xpose.msra.mxu0 0.0
    %2400 = vmatprep.subr.mxu0 0.0
    %2401 = vmatpush1.xpose.msra.mxu0 0.0
    %2402 = vmatprep.subr.mxu0 0.0
    %2403 = vmatpush1.xpose.msra.mxu0 0.0
    %2404 = vmatprep.mubr.f32.mxu0 0.0
    %2405 = vmatmul.mubr.f32.gmra.mrb[0].mxu0 %v2334
    %v2406 = vpop.f32.mrb[0].mxu0
    %v2407 = vadd.f32 0.0, %v2406
    %v2408 = vpop.f32.mrb[0].mxu0
    %2409 = vdwg.mxu0
    %v2410 = vsel %vm489, %v2407, -inf
    %2411 = vmax.xlane.f32.xlu0 %v2410
    %v2412 = vpop.xlane.xlu0 %2411
    %v2413 = vsub.f32 %v2407, %v2412
    %v2414 = vmul.f32 %v2413, 1.442695
    %v2415 = vpow.pop %v2414
    %v2416 = vsel %vm489, %v2415, 0.0
    %2417 = vadd.xlane.f32.xlu0 %v2416
    %v2418 = vpop.xlane.xlu0 %2417
    %v2419 = vrcp.pop %v2418
    %v2420 = vmul.f32 %v2415, %v2419
    %2421 = vrot.lane.b32.xlu0 %v1837, 112
    %v2422 = vpop.permute.xlu0 %2421
    %2423 = vrot.lane.b32.xlu0 %v1842, 112
    %v2424 = vpop.permute.xlu0 %2423
    %v2428 = vsel %vm489, %v2420, 0
    %2430 = vmatprep.subr.mxu0 0.0
    %2431 = vmatpush1.msra.mxu0 %v2422
    %2432 = vmatprep.subr.mxu0 0.0
    %2433 = vmatpush1.msra.mxu0 %v2424
    %2434 = vmatprep.subr.mxu0 0.0
    %2435 = vmatpush1.msra.mxu0 0.0
    %2436 = vmatprep.subr.mxu0 0.0
    %2437 = vmatpush1.msra.mxu0 0.0
    %2438 = vmatprep.subr.mxu0 0.0
    %2439 = vmatpush1.msra.mxu0 0.0
    %2440 = vmatprep.subr.mxu0 0.0
    %2441 = vmatpush1.msra.mxu0 0.0
    %2442 = vmatprep.subr.mxu0 0.0
    %2443 = vmatpush1.msra.mxu0 0.0
    %2444 = vmatprep.subr.mxu0 0.0
    %2445 = vmatpush1.msra.mxu0 0.0
    %2446 = vmatprep.subr.mxu0 0.0
    %2447 = vmatpush1.msra.mxu0 0.0
    %2448 = vmatprep.subr.mxu0 0.0
    %2449 = vmatpush1.msra.mxu0 0.0
    %2450 = vmatprep.subr.mxu0 0.0
    %2451 = vmatpush1.msra.mxu0 0.0
    %2452 = vmatprep.subr.mxu0 0.0
    %2453 = vmatpush1.msra.mxu0 0.0
    %2454 = vmatprep.subr.mxu0 0.0
    %2455 = vmatpush1.msra.mxu0 0.0
    %2456 = vmatprep.subr.mxu0 0.0
    %2457 = vmatpush1.msra.mxu0 0.0
    %2458 = vmatprep.subr.mxu0 0.0
    %2459 = vmatpush1.msra.mxu0 0.0
    %2460 = vmatprep.subr.mxu0 0.0
    %2461 = vmatpush1.msra.mxu0 0.0
    %2462 = vmatprep.subr.mxu0 0.0
    %2463 = vmatpush1.msra.mxu0 0.0
    %2464 = vmatprep.subr.mxu0 0.0
    %2465 = vmatpush1.msra.mxu0 0.0
    %2466 = vmatprep.subr.mxu0 0.0
    %2467 = vmatpush1.msra.mxu0 0.0
    %2468 = vmatprep.subr.mxu0 0.0
    %2469 = vmatpush1.msra.mxu0 0.0
    %2470 = vmatprep.subr.mxu0 0.0
    %2471 = vmatpush1.msra.mxu0 0.0
    %2472 = vmatprep.subr.mxu0 0.0
    %2473 = vmatpush1.msra.mxu0 0.0
    %2474 = vmatprep.subr.mxu0 0.0
    %2475 = vmatpush1.msra.mxu0 0.0
    %2476 = vmatprep.subr.mxu0 0.0
    %2477 = vmatpush1.msra.mxu0 0.0
    %2478 = vmatprep.subr.mxu0 0.0
    %2479 = vmatpush1.msra.mxu0 0.0
    %2480 = vmatprep.subr.mxu0 0.0
    %2481 = vmatpush1.msra.mxu0 0.0
    %2482 = vmatprep.subr.mxu0 0.0
    %2483 = vmatpush1.msra.mxu0 0.0
    %2484 = vmatprep.subr.mxu0 0.0
    %2485 = vmatpush1.msra.mxu0 0.0
    %2486 = vmatprep.subr.mxu0 0.0
    %2487 = vmatpush1.msra.mxu0 0.0
    %2488 = vmatprep.subr.mxu0 0.0
    %2489 = vmatpush1.msra.mxu0 0.0
    %2490 = vmatprep.subr.mxu0 0.0
    %2491 = vmatpush1.msra.mxu0 0.0
    %2492 = vmatprep.subr.mxu0 0.0
    %2493 = vmatpush1.msra.mxu0 0.0
    %2494 = vmatprep.mubr.f32.mxu0 0.0
    %2495 = vmatmul.mubr.f32.gmra.mrb[0].mxu0 %v2428
    %v2496 = vpop.f32.mrb[0].mxu0
    %v2497 = vadd.f32 0.0, %v2496
    %v2498 = vpop.f32.mrb[0].mxu0
    %2499 = vdwg.mxu0
    %v2501 = vsel %vm409, %v2497, 0
    %2503 = vmatprep.subr.mxu0 0.0
    %2504 = vmatpush1.msra.mxu0 %v137
    %2505 = vmatprep.subr.mxu0 0.0
    %2506 = vmatpush1.msra.mxu0 0.0
    %2507 = vmatprep.subr.mxu0 0.0
    %2508 = vmatpush1.msra.mxu0 0.0
    %2509 = vmatprep.subr.mxu0 0.0
    %2510 = vmatpush1.msra.mxu0 0.0
    %2511 = vmatprep.subr.mxu0 0.0
    %2512 = vmatpush1.msra.mxu0 0.0
    %2513 = vmatprep.subr.mxu0 0.0
    %2514 = vmatpush1.msra.mxu0 0.0
    %2515 = vmatprep.subr.mxu0 0.0
    %2516 = vmatpush1.msra.mxu0 0.0
    %2517 = vmatprep.subr.mxu0 0.0
    %2518 = vmatpush1.msra.mxu0 0.0
    %2519 = vmatprep.subr.mxu0 0.0
    %2520 = vmatpush1.msra.mxu0 0.0
    %2521 = vmatprep.subr.mxu0 0.0
    %2522 = vmatpush1.msra.mxu0 0.0
    %2523 = vmatprep.subr.mxu0 0.0
    %2524 = vmatpush1.msra.mxu0 0.0
    %2525 = vmatprep.subr.mxu0 0.0
    %2526 = vmatpush1.msra.mxu0 0.0
    %2527 = vmatprep.subr.mxu0 0.0
    %2528 = vmatpush1.msra.mxu0 0.0
    %2529 = vmatprep.subr.mxu0 0.0
    %2530 = vmatpush1.msra.mxu0 0.0
    %2531 = vmatprep.subr.mxu0 0.0
    %2532 = vmatpush1.msra.mxu0 0.0
    %2533 = vmatprep.subr.mxu0 0.0
    %2534 = vmatpush1.msra.mxu0 0.0
    %2535 = vmatprep.subr.mxu0 0.0
    %2536 = vmatpush1.msra.mxu0 0.0
    %2537 = vmatprep.subr.mxu0 0.0
    %2538 = vmatpush1.msra.mxu0 0.0
    %2539 = vmatprep.subr.mxu0 0.0
    %2540 = vmatpush1.msra.mxu0 0.0
    %2541 = vmatprep.subr.mxu0 0.0
    %2542 = vmatpush1.msra.mxu0 0.0
    %2543 = vmatprep.subr.mxu0 0.0
    %2544 = vmatpush1.msra.mxu0 0.0
    %2545 = vmatprep.subr.mxu0 0.0
    %2546 = vmatpush1.msra.mxu0 0.0
    %2547 = vmatprep.subr.mxu0 0.0
    %2548 = vmatpush1.msra.mxu0 0.0
    %2549 = vmatprep.subr.mxu0 0.0
    %2550 = vmatpush1.msra.mxu0 0.0
    %2551 = vmatprep.subr.mxu0 0.0
    %2552 = vmatpush1.msra.mxu0 0.0
    %2553 = vmatprep.subr.mxu0 0.0
    %2554 = vmatpush1.msra.mxu0 0.0
    %2555 = vmatprep.subr.mxu0 0.0
    %2556 = vmatpush1.msra.mxu0 0.0
    %2557 = vmatprep.subr.mxu0 0.0
    %2558 = vmatpush1.msra.mxu0 0.0
    %2559 = vmatprep.subr.mxu0 0.0
    %2560 = vmatpush1.msra.mxu0 0.0
    %2561 = vmatprep.subr.mxu0 0.0
    %2562 = vmatpush1.msra.mxu0 0.0
    %2563 = vmatprep.subr.mxu0 0.0
    %2564 = vmatpush1.msra.mxu0 0.0
    %2565 = vmatprep.subr.mxu0 0.0
    %2566 = vmatpush1.msra.mxu0 0.0
    %2567 = vmatprep.mubr.f32.mxu0 0.0
    %2568 = vmatmul.mubr.f32.gmra.mrb[0].mxu0 %v2501
    %v2569 = vpop.f32.mrb[0].mxu0
    %v2570 = vadd.f32 0.0, %v2569
    %v2571 = vpop.f32.mrb[0].mxu0
    %2572 = vdwg.mxu0
    %v2573 = vadd.f32 %v2325, %v2570
    %2574 = vrot.lane.b32.xlu0 %v1686, 104
    %v2575 = vpop.permute.xlu0 %2574
    %2576 = vrot.lane.b32.xlu0 %v1762, 104
    %v2577 = vpop.permute.xlu0 %2576
    %2578 = vrot.lane.b32.xlu0 %v1767, 104
    %v2579 = vpop.permute.xlu0 %2578
    %v2580 = vsel %vm409, %v2575, 0
    %v2582 = vsel %vm409, %v2577, 0
    %v2584 = vsel %vm409, %v2579, 0
    %2586 = vmatprep.subr.mxu0 0.0
    %2587 = vmatpush1.xpose.msra.mxu0 %v2582
    %2588 = vmatprep.subr.mxu0 0.0
    %2589 = vmatpush1.xpose.msra.mxu0 %v2584
    %2590 = vmatprep.subr.mxu0 0.0
    %2591 = vmatpush1.xpose.msra.mxu0 0.0
    %2592 = vmatprep.subr.mxu0 0.0
    %2593 = vmatpush1.xpose.msra.mxu0 0.0
    %2594 = vmatprep.subr.mxu0 0.0
    %2595 = vmatpush1.xpose.msra.mxu0 0.0
    %2596 = vmatprep.subr.mxu0 0.0
    %2597 = vmatpush1.xpose.msra.mxu0 0.0
    %2598 = vmatprep.subr.mxu0 0.0
    %2599 = vmatpush1.xpose.msra.mxu0 0.0
    %2600 = vmatprep.subr.mxu0 0.0
    %2601 = vmatpush1.xpose.msra.mxu0 0.0
    %2602 = vmatprep.subr.mxu0 0.0
    %2603 = vmatpush1.xpose.msra.mxu0 0.0
    %2604 = vmatprep.subr.mxu0 0.0
    %2605 = vmatpush1.xpose.msra.mxu0 0.0
    %2606 = vmatprep.subr.mxu0 0.0
    %2607 = vmatpush1.xpose.msra.mxu0 0.0
    %2608 = vmatprep.subr.mxu0 0.0
    %2609 = vmatpush1.xpose.msra.mxu0 0.0
    %2610 = vmatprep.subr.mxu0 0.0
    %2611 = vmatpush1.xpose.msra.mxu0 0.0
    %2612 = vmatprep.subr.mxu0 0.0
    %2613 = vmatpush1.xpose.msra.mxu0 0.0
    %2614 = vmatprep.subr.mxu0 0.0
    %2615 = vmatpush1.xpose.msra.mxu0 0.0
    %2616 = vmatprep.subr.mxu0 0.0
    %2617 = vmatpush1.xpose.msra.mxu0 0.0
    %2618 = vmatprep.subr.mxu0 0.0
    %2619 = vmatpush1.xpose.msra.mxu0 0.0
    %2620 = vmatprep.subr.mxu0 0.0
    %2621 = vmatpush1.xpose.msra.mxu0 0.0
    %2622 = vmatprep.subr.mxu0 0.0
    %2623 = vmatpush1.xpose.msra.mxu0 0.0
    %2624 = vmatprep.subr.mxu0 0.0
    %2625 = vmatpush1.xpose.msra.mxu0 0.0
    %2626 = vmatprep.subr.mxu0 0.0
    %2627 = vmatpush1.xpose.msra.mxu0 0.0
    %2628 = vmatprep.subr.mxu0 0.0
    %2629 = vmatpush1.xpose.msra.mxu0 0.0
    %2630 = vmatprep.subr.mxu0 0.0
    %2631 = vmatpush1.xpose.msra.mxu0 0.0
    %2632 = vmatprep.subr.mxu0 0.0
    %2633 = vmatpush1.xpose.msra.mxu0 0.0
    %2634 = vmatprep.subr.mxu0 0.0
    %2635 = vmatpush1.xpose.msra.mxu0 0.0
    %2636 = vmatprep.subr.mxu0 0.0
    %2637 = vmatpush1.xpose.msra.mxu0 0.0
    %2638 = vmatprep.subr.mxu0 0.0
    %2639 = vmatpush1.xpose.msra.mxu0 0.0
    %2640 = vmatprep.subr.mxu0 0.0
    %2641 = vmatpush1.xpose.msra.mxu0 0.0
    %2642 = vmatprep.subr.mxu0 0.0
    %2643 = vmatpush1.xpose.msra.mxu0 0.0
    %2644 = vmatprep.subr.mxu0 0.0
    %2645 = vmatpush1.xpose.msra.mxu0 0.0
    %2646 = vmatprep.subr.mxu0 0.0
    %2647 = vmatpush1.xpose.msra.mxu0 0.0
    %2648 = vmatprep.subr.mxu0 0.0
    %2649 = vmatpush1.xpose.msra.mxu0 0.0
    %2650 = vmatprep.mubr.f32.mxu0 0.0
    %2651 = vmatmul.mubr.f32.gmra.mrb[0].mxu0 %v2580
    %v2652 = vpop.f32.mrb[0].mxu0
    %v2653 = vadd.f32 0.0, %v2652
    %v2654 = vpop.f32.mrb[0].mxu0
    %2655 = vdwg.mxu0
    %v2656 = vsel %vm489, %v2653, -inf
    %2657 = vmax.xlane.f32.xlu0 %v2656
    %v2658 = vpop.xlane.xlu0 %2657
    %v2659 = vsub.f32 %v2653, %v2658
    %v2660 = vmul.f32 %v2659, 1.442695
    %v2661 = vpow.pop %v2660
    %v2662 = vsel %vm489, %v2661, 0.0
    %2663 = vadd.xlane.f32.xlu0 %v2662
    %v2664 = vpop.xlane.xlu0 %2663
    %v2665 = vrcp.pop %v2664
    %v2666 = vmul.f32 %v2661, %v2665
    %2667 = vrot.lane.b32.xlu0 %v1837, 104
    %v2668 = vpop.permute.xlu0 %2667
    %2669 = vrot.lane.b32.xlu0 %v1842, 104
    %v2670 = vpop.permute.xlu0 %2669
    %v2674 = vsel %vm489, %v2666, 0
    %2676 = vmatprep.subr.mxu0 0.0
    %2677 = vmatpush1.msra.mxu0 %v2668
    %2678 = vmatprep.subr.mxu0 0.0
    %2679 = vmatpush1.msra.mxu0 %v2670
    %2680 = vmatprep.subr.mxu0 0.0
    %2681 = vmatpush1.msra.mxu0 0.0
    %2682 = vmatprep.subr.mxu0 0.0
    %2683 = vmatpush1.msra.mxu0 0.0
    %2684 = vmatprep.subr.mxu0 0.0
    %2685 = vmatpush1.msra.mxu0 0.0
    %2686 = vmatprep.subr.mxu0 0.0
    %2687 = vmatpush1.msra.mxu0 0.0
    %2688 = vmatprep.subr.mxu0 0.0
    %2689 = vmatpush1.msra.mxu0 0.0
    %2690 = vmatprep.subr.mxu0 0.0
    %2691 = vmatpush1.msra.mxu0 0.0
    %2692 = vmatprep.subr.mxu0 0.0
    %2693 = vmatpush1.msra.mxu0 0.0
    %2694 = vmatprep.subr.mxu0 0.0
    %2695 = vmatpush1.msra.mxu0 0.0
    %2696 = vmatprep.subr.mxu0 0.0
    %2697 = vmatpush1.msra.mxu0 0.0
    %2698 = vmatprep.subr.mxu0 0.0
    %2699 = vmatpush1.msra.mxu0 0.0
    %2700 = vmatprep.subr.mxu0 0.0
    %2701 = vmatpush1.msra.mxu0 0.0
    %2702 = vmatprep.subr.mxu0 0.0
    %2703 = vmatpush1.msra.mxu0 0.0
    %2704 = vmatprep.subr.mxu0 0.0
    %2705 = vmatpush1.msra.mxu0 0.0
    %2706 = vmatprep.subr.mxu0 0.0
    %2707 = vmatpush1.msra.mxu0 0.0
    %2708 = vmatprep.subr.mxu0 0.0
    %2709 = vmatpush1.msra.mxu0 0.0
    %2710 = vmatprep.subr.mxu0 0.0
    %2711 = vmatpush1.msra.mxu0 0.0
    %2712 = vmatprep.subr.mxu0 0.0
    %2713 = vmatpush1.msra.mxu0 0.0
    %2714 = vmatprep.subr.mxu0 0.0
    %2715 = vmatpush1.msra.mxu0 0.0
    %2716 = vmatprep.subr.mxu0 0.0
    %2717 = vmatpush1.msra.mxu0 0.0
    %2718 = vmatprep.subr.mxu0 0.0
    %2719 = vmatpush1.msra.mxu0 0.0
    %2720 = vmatprep.subr.mxu0 0.0
    %2721 = vmatpush1.msra.mxu0 0.0
    %2722 = vmatprep.subr.mxu0 0.0
    %2723 = vmatpush1.msra.mxu0 0.0
    %2724 = vmatprep.subr.mxu0 0.0
    %2725 = vmatpush1.msra.mxu0 0.0
    %2726 = vmatprep.subr.mxu0 0.0
    %2727 = vmatpush1.msra.mxu0 0.0
    %2728 = vmatprep.subr.mxu0 0.0
    %2729 = vmatpush1.msra.mxu0 0.0
    %2730 = vmatprep.subr.mxu0 0.0
    %2731 = vmatpush1.msra.mxu0 0.0
    %2732 = vmatprep.subr.mxu0 0.0
    %2733 = vmatpush1.msra.mxu0 0.0
    %2734 = vmatprep.subr.mxu0 0.0
    %2735 = vmatpush1.msra.mxu0 0.0
    %2736 = vmatprep.subr.mxu0 0.0
    %2737 = vmatpush1.msra.mxu0 0.0
    %2738 = vmatprep.subr.mxu0 0.0
    %2739 = vmatpush1.msra.mxu0 0.0
    %2740 = vmatprep.mubr.f32.mxu0 0.0
    %2741 = vmatmul.mubr.f32.gmra.mrb[0].mxu0 %v2674
    %v2742 = vpop.f32.mrb[0].mxu0
    %v2743 = vadd.f32 0.0, %v2742
    %v2744 = vpop.f32.mrb[0].mxu0
    %2745 = vdwg.mxu0
    %v2747 = vsel %vm409, %v2743, 0
    %2749 = vmatprep.subr.mxu0 0.0
    %2750 = vmatpush1.msra.mxu0 %v138
    %2751 = vmatprep.subr.mxu0 0.0
    %2752 = vmatpush1.msra.mxu0 0.0
    %2753 = vmatprep.subr.mxu0 0.0
    %2754 = vmatpush1.msra.mxu0 0.0
    %2755 = vmatprep.subr.mxu0 0.0
    %2756 = vmatpush1.msra.mxu0 0.0
    %2757 = vmatprep.subr.mxu0 0.0
    %2758 = vmatpush1.msra.mxu0 0.0
    %2759 = vmatprep.subr.mxu0 0.0
    %2760 = vmatpush1.msra.mxu0 0.0
    %2761 = vmatprep.subr.mxu0 0.0
    %2762 = vmatpush1.msra.mxu0 0.0
    %2763 = vmatprep.subr.mxu0 0.0
    %2764 = vmatpush1.msra.mxu0 0.0
    %2765 = vmatprep.subr.mxu0 0.0
    %2766 = vmatpush1.msra.mxu0 0.0
    %2767 = vmatprep.subr.mxu0 0.0
    %2768 = vmatpush1.msra.mxu0 0.0
    %2769 = vmatprep.subr.mxu0 0.0
    %2770 = vmatpush1.msra.mxu0 0.0
    %2771 = vmatprep.subr.mxu0 0.0
    %2772 = vmatpush1.msra.mxu0 0.0
    %2773 = vmatprep.subr.mxu0 0.0
    %2774 = vmatpush1.msra.mxu0 0.0
    %2775 = vmatprep.subr.mxu0 0.0
    %2776 = vmatpush1.msra.mxu0 0.0
    %2777 = vmatprep.subr.mxu0 0.0
    %2778 = vmatpush1.msra.mxu0 0.0
    %2779 = vmatprep.subr.mxu0 0.0
    %2780 = vmatpush1.msra.mxu0 0.0
    %2781 = vmatprep.subr.mxu0 0.0
    %2782 = vmatpush1.msra.mxu0 0.0
    %2783 = vmatprep.subr.mxu0 0.0
    %2784 = vmatpush1.msra.mxu0 0.0
    %2785 = vmatprep.subr.mxu0 0.0
    %2786 = vmatpush1.msra.mxu0 0.0
    %2787 = vmatprep.subr.mxu0 0.0
    %2788 = vmatpush1.msra.mxu0 0.0
    %2789 = vmatprep.subr.mxu0 0.0
    %2790 = vmatpush1.msra.mxu0 0.0
    %2791 = vmatprep.subr.mxu0 0.0
    %2792 = vmatpush1.msra.mxu0 0.0
    %2793 = vmatprep.subr.mxu0 0.0
    %2794 = vmatpush1.msra.mxu0 0.0
    %2795 = vmatprep.subr.mxu0 0.0
    %2796 = vmatpush1.msra.mxu0 0.0
    %2797 = vmatprep.subr.mxu0 0.0
    %2798 = vmatpush1.msra.mxu0 0.0
    %2799 = vmatprep.subr.mxu0 0.0
    %2800 = vmatpush1.msra.mxu0 0.0
    %2801 = vmatprep.subr.mxu0 0.0
    %2802 = vmatpush1.msra.mxu0 0.0
    %2803 = vmatprep.subr.mxu0 0.0
    %2804 = vmatpush1.msra.mxu0 0.0
    %2805 = vmatprep.subr.mxu0 0.0
    %2806 = vmatpush1.msra.mxu0 0.0
    %2807 = vmatprep.subr.mxu0 0.0
    %2808 = vmatpush1.msra.mxu0 0.0
    %2809 = vmatprep.subr.mxu0 0.0
    %2810 = vmatpush1.msra.mxu0 0.0
    %2811 = vmatprep.subr.mxu0 0.0
    %2812 = vmatpush1.msra.mxu0 0.0
    %2813 = vmatprep.mubr.f32.mxu0 0.0
    %2814 = vmatmul.mubr.f32.gmra.mrb[0].mxu0 %v2747
    %v2815 = vpop.f32.mrb[0].mxu0
    %v2816 = vadd.f32 0.0, %v2815
    %v2817 = vpop.f32.mrb[0].mxu0
    %2818 = vdwg.mxu0
    %v2819 = vadd.f32 %v2573, %v2816
    %v2820 = vadd.f32 %v2819, %v1390
    %v2821 = vadd.f32 %v1612, %v2820
    %v2822 = vsel %vm167, %v2821, 0.0
    %2823 = vadd.xlane.f32.xlu0 %v2822
    %v2824 = vpop.xlane.xlu0 %2823
    %v2825 = vmul.f32 %v2824, %v1397
    %v2826 = vsub.f32 %v2821, %v2825
    %v2827 = vmul.f32 %v2826, %v2826
    %v2828 = vsel %vm167, %v2827, 0.0
    %2829 = vadd.xlane.f32.xlu0 %v2828
    %v2830 = vpop.xlane.xlu0 %2829
    %v2831 = vmul.f32 %v2830, %v1397
    %v2832 = vadd.f32 %v2831, 1e-05
    %v2833 = vrsqrt.pop %v2832
    %v2834 = vmul.f32 %v2826, %v2833
    %v2835 = vmul.f32 %v2834, %v1412
    %v2836 = vadd.f32 %v2835, %v1419
    %v2838 = vsel %vm167, %v2836, 0
    %2840 = vmatprep.subr.mxu0 0.0
    %2841 = vmatpush1.msra.mxu0 %v142
    %2842 = vmatprep.subr.mxu0 0.0
    %2843 = vmatpush1.msra.mxu0 %v143
    %2844 = vmatprep.subr.mxu0 0.0
    %2845 = vmatpush1.msra.mxu0 %v144
    %2846 = vmatprep.subr.mxu0 0.0
    %2847 = vmatpush1.msra.mxu0 %v145
    %2848 = vmatprep.subr.mxu0 0.0
    %2849 = vmatpush1.msra.mxu0 0.0
    %2850 = vmatprep.subr.mxu0 0.0
    %2851 = vmatpush1.msra.mxu0 0.0
    %2852 = vmatprep.subr.mxu0 0.0
    %2853 = vmatpush1.msra.mxu0 0.0
    %2854 = vmatprep.subr.mxu0 0.0
    %2855 = vmatpush1.msra.mxu0 0.0
    %2856 = vmatprep.subr.mxu0 0.0
    %2857 = vmatpush1.msra.mxu0 0.0
    %2858 = vmatprep.subr.mxu0 0.0
    %2859 = vmatpush1.msra.mxu0 0.0
    %2860 = vmatprep.subr.mxu0 0.0
    %2861 = vmatpush1.msra.mxu0 0.0
    %2862 = vmatprep.subr.mxu0 0.0
    %2863 = vmatpush1.msra.mxu0 0.0
    %2864 = vmatprep.subr.mxu0 0.0
    %2865 = vmatpush1.msra.mxu0 0.0
    %2866 = vmatprep.subr.mxu0 0.0
    %2867 = vmatpush1.msra.mxu0 0.0
    %2868 = vmatprep.subr.mxu0 0.0
    %2869 = vmatpush1.msra.mxu0 0.0
    %2870 = vmatprep.subr.mxu0 0.0
    %2871 = vmatpush1.msra.mxu0 0.0
    %2872 = vmatprep.subr.mxu0 0.0
    %2873 = vmatpush1.msra.mxu0 0.0
    %2874 = vmatprep.subr.mxu0 0.0
    %2875 = vmatpush1.msra.mxu0 0.0
    %2876 = vmatprep.subr.mxu0 0.0
    %2877 = vmatpush1.msra.mxu0 0.0
    %2878 = vmatprep.subr.mxu0 0.0
    %2879 = vmatpush1.msra.mxu0 0.0
    %2880 = vmatprep.subr.mxu0 0.0
    %2881 = vmatpush1.msra.mxu0 0.0
    %2882 = vmatprep.subr.mxu0 0.0
    %2883 = vmatpush1.msra.mxu0 0.0
    %2884 = vmatprep.subr.mxu0 0.0
    %2885 = vmatpush1.msra.mxu0 0.0
    %2886 = vmatprep.subr.mxu0 0.0
    %2887 = vmatpush1.msra.mxu0 0.0
    %2888 = vmatprep.subr.mxu0 0.0
    %2889 = vmatpush1.msra.mxu0 0.0
    %2890 = vmatprep.subr.mxu0 0.0
    %2891 = vmatpush1.msra.mxu0 0.0
    %2892 = vmatprep.subr.mxu0 0.0
    %2893 = vmatpush1.msra.mxu0 0.0
    %2894 = vmatprep.subr.mxu0 0.0
    %2895 = vmatpush1.msra.mxu0 0.0
    %2896 = vmatprep.subr.mxu0 0.0
    %2897 = vmatpush1.msra.mxu0 0.0
    %2898 = vmatprep.subr.mxu0 0.0
    %2899 = vmatpush1.msra.mxu0 0.0
    %2900 = vmatprep.subr.mxu0 0.0
    %2901 = vmatpush1.msra.mxu0 0.0
    %2902 = vmatprep.subr.mxu0 0.0
    %2903 = vmatpush1.msra.mxu0 0.0
    %2904 = vmatprep.mubr.f32.mxu0 0.0
    %2905 = vmatmul.mubr.f32.gmra.mrb[0].mxu0 %v2838
    %v2906 = vpop.f32.mrb[0].mxu0
    %v2907 = vadd.f32 %v1426, %v2906
    %v2908 = vpop.f32.mrb[0].mxu0
    %2909 = vdwg.mxu0
    %v2910 = vmax.f32 %v2907, 0.0
    %v2912 = vsel %vm1508, %v2910, 0
    %2914 = vmatprep.subr.mxu0 0.0
    %2915 = vmatpush1.msra.mxu0 %v147
    %2916 = vmatprep.subr.mxu0 0.0
    %2917 = vmatpush1.msra.mxu0 %v148
    %2918 = vmatprep.subr.mxu0 0.0
    %2919 = vmatpush1.msra.mxu0 %v149
    %2920 = vmatprep.subr.mxu0 0.0
    %2921 = vmatpush1.msra.mxu0 %v150
    %2922 = vmatprep.subr.mxu0 0.0
    %2923 = vmatpush1.msra.mxu0 %v151
    %2924 = vmatprep.subr.mxu0 0.0
    %2925 = vmatpush1.msra.mxu0 %v152
    %2926 = vmatprep.subr.mxu0 0.0
    %2927 = vmatpush1.msra.mxu0 %v153
    %2928 = vmatprep.subr.mxu0 0.0
    %2929 = vmatpush1.msra.mxu0 %v154
    %2930 = vmatprep.subr.mxu0 0.0
    %2931 = vmatpush1.msra.mxu0 0.0
    %2932 = vmatprep.subr.mxu0 0.0
    %2933 = vmatpush1.msra.mxu0 0.0
    %2934 = vmatprep.subr.mxu0 0.0
    %2935 = vmatpush1.msra.mxu0 0.0
    %2936 = vmatprep.subr.mxu0 0.0
    %2937 = vmatpush1.msra.mxu0 0.0
    %2938 = vmatprep.subr.mxu0 0.0
    %2939 = vmatpush1.msra.mxu0 0.0
    %2940 = vmatprep.subr.mxu0 0.0
    %2941 = vmatpush1.msra.mxu0 0.0
    %2942 = vmatprep.subr.mxu0 0.0
    %2943 = vmatpush1.msra.mxu0 0.0
    %2944 = vmatprep.subr.mxu0 0.0
    %2945 = vmatpush1.msra.mxu0 0.0
    %2946 = vmatprep.subr.mxu0 0.0
    %2947 = vmatpush1.msra.mxu0 0.0
    %2948 = vmatprep.subr.mxu0 0.0
    %2949 = vmatpush1.msra.mxu0 0.0
    %2950 = vmatprep.subr.mxu0 0.0
    %2951 = vmatpush1.msra.mxu0 0.0
    %2952 = vmatprep.subr.mxu0 0.0
    %2953 = vmatpush1.msra.mxu0 0.0
    %2954 = vmatprep.subr.mxu0 0.0
    %2955 = vmatpush1.msra.mxu0 0.0
    %2956 = vmatprep.subr.mxu0 0.0
    %2957 = vmatpush1.msra.mxu0 0.0
    %2958 = vmatprep.subr.mxu0 0.0
    %2959 = vmatpush1.msra.mxu0 0.0
    %2960 = vmatprep.subr.mxu0 0.0
    %2961 = vmatpush1.msra.mxu0 0.0
    %2962 = vmatprep.subr.mxu0 0.0
    %2963 = vmatpush1.msra.mxu0 0.0
    %2964 = vmatprep.subr.mxu0 0.0
    %2965 = vmatpush1.msra.mxu0 0.0
    %2966 = vmatprep.subr.mxu0 0.0
    %2967 = vmatpush1.msra.mxu0 0.0
    %2968 = vmatprep.subr.mxu0 0.0
    %2969 = vmatpush1.msra.mxu0 0.0
    %2970 = vmatprep.subr.mxu0 0.0
    %2971 = vmatpush1.msra.mxu0 0.0
    %2972 = vmatprep.subr.mxu0 0.0
    %2973 = vmatpush1.msra.mxu0 0.0
    %2974 = vmatprep.subr.mxu0 0.0
    %2975 = vmatpush1.msra.mxu0 0.0
    %2976 = vmatprep.subr.mxu0 0.0
    %2977 = vmatpush1.msra.mxu0 0.0
    %2978 = vmatprep.mubr.f32.mxu0 0.0
    %2979 = vmatmul.mubr.f32.gmra.mrb[0].mxu0 %v2912
    %v2980 = vpop.f32.mrb[0].mxu0
    %v2981 = vadd.f32 %v1506, %v2980
    %v2982 = vpop.f32.mrb[0].mxu0
    %2983 = vdwg.mxu0
    %v2984 = vadd.f32 %v2836, %v2981
    %v2985 = vsel %vm167, %v2984, 0.0
    %2986 = vadd.xlane.f32.xlu0 %v2985
    %v2987 = vpop.xlane.xlu0 %2986
    %v2988 = vmul.f32 %v2987, %v1397
    %v2989 = vsub.f32 %v2984, %v2988
    %v2990 = vmul.f32 %v2989, %v2989
    %v2991 = vsel %vm167, %v2990, 0.0
    %2992 = vadd.xlane.f32.xlu0 %v2991
    %v2993 = vpop.xlane.xlu0 %2992
    %v2994 = vmul.f32 %v2993, %v1397
    %v2995 = vadd.f32 %v2994, 1e-05
    %v2996 = vrsqrt.pop %v2995
    %v2997 = vmul.f32 %v2989, %v2996
    %v2998 = vmul.f32 %v2997, %v1600
    %v2999 = vadd.f32 %v2998, %v1607
    %s3000 = scalar_lea.vmem [#allocation10], 8
    %3001 = vst.msk [vmem:[%s3000] sm:$0xff] %vm167, %v2999
    // Predicated region
    $region90: #{tpu_custom_call.1} parent=1 // pred_check
      _
    $region91: #{tpu_custom_call.1} parent=1 // pred_check_branch
      %3003 = sbr.rel (0) target = $region93
    $region92: #{tpu_custom_call.1} parent=1 // pred_region
      %s3005 = ssub.s32 256, 256
      %3006 = vsyncadd [#allocation4], %s3005
      %s3007 = sshll.u32 [#allocation10], 4
      %s3008 = int_to_ptr.vmem [resolvable:$true] %s3007
      %3013 = dma.vmem_to_hbm [thread:$0]  %s3008, 256, %s18, [#allocation4], 128, 128, 8
    $region93: #{tpu_custom_call.1} parent=1 // pred_fallthru
      _
    // Predicated region
    $region94: #{tpu_custom_call.1} parent=1 // pred_check
      _
    $region95: #{tpu_custom_call.1} parent=1 // pred_check_branch
      %3015 = sbr.rel (0) target = $region97
    $region96: #{tpu_custom_call.1} parent=1 // pred_region
      %3016 = dma.done [#allocation4], 256
    $region97: #{tpu_custom_call.1} parent=1 // pred_fallthru
      _
    %3017 = vsyncpa [#allocation3], 1
    %3018 = vsyncpa [#allocation6], 1
    %3019 = vsyncpa [#allocation9], 1
    %3020 = vsyncpa [#allocation4], 1

</llo_original>
